<compile_context>
chip_gen: v7x
topology: tpu7x:2x2x1
jax: 0.10.0
libtpu: 0.0.40
codegen_flags: <defaults>
</compile_context>

<pallas_src>
import functools

import jax
import jax.numpy as jnp
from jax.experimental import pallas as pl
from jax.experimental.pallas import tpu as pltpu

VMEM_SPEC = pl.BlockSpec(memory_space=pltpu.MemorySpace.VMEM)

_LANE = 128
_SUBLANE = 8


def _ceil_to(x, m):
    return ((x + m - 1) // m) * m


def _pad2(a, rows, cols):
    r, c = a.shape
    return jnp.pad(a, ((0, rows - r), (0, cols - c)))


# ----------------------------- fused Pallas kernel ---------------------------

def _fused_gnn_kernel(x_ref, lhat_ref, in_w_ref, in_b_ref,
                      w_ref, b_ref, gamma_ref, beta_ref,
                      out_w_ref, out_b_ref, o_ref,
                      *, num_layers, num_taps, hidden_real):
    """Entire SpectralGNN forward, everything VMEM-resident, single program.

    Padded shapes: x (Np, Cinp) bf16, lhat (Np, Np) bf16, in_w (Cinp, Hp) bf16,
    in_b (1, Hp) f32, w (L, K, Hp, Hp) bf16, b/gamma/beta (L, 1, Hp) f32,
    out_w (Hp, Coutp) bf16, out_b (1, Coutp) f32, o (Np, Coutp) f32.
    """
    f32 = jnp.float32
    bf16 = jnp.bfloat16

    lhat = lhat_ref[...]                                               # (Np, Np) bf16

    # input projection (bf16 MXU, f32 accumulate)
    h = (jnp.dot(x_ref[...], in_w_ref[...], preferred_element_type=f32)
         + in_b_ref[...])                                              # (Np, Hp) f32

    hp = h.shape[-1]
    # channel mask: padded hidden lanes must not perturb the LayerNorm variance
    ch_mask = (jax.lax.broadcasted_iota(jnp.int32, (1, hp), 1)
               < hidden_real).astype(f32)
    inv_h = jnp.float32(1.0 / hidden_real)

    for l in range(num_layers):
        # Chebyshev recursion, per-tap accumulated MXU dots (no concat buffer):
        #   T0 = h, T1 = Lhat h, Tk = 2 Lhat T_{k-1} - T_{k-2}
        t_prev = h                                                     # f32
        z = jnp.dot(t_prev.astype(bf16), w_ref[l, 0],
                    preferred_element_type=f32)
        if num_taps >= 2:
            t_cur = jnp.dot(lhat, t_prev.astype(bf16),
                            preferred_element_type=f32)
            z = z + jnp.dot(t_cur.astype(bf16), w_ref[l, 1],
                            preferred_element_type=f32)
            for k in range(2, num_taps):
                t_next = (2.0 * jnp.dot(lhat, t_cur.astype(bf16),
                                        preferred_element_type=f32) - t_prev)
                z = z + jnp.dot(t_next.astype(bf16), w_ref[l, k],
                                preferred_element_type=f32)
                t_prev, t_cur = t_cur, t_next

        z = z + b_ref[l]
        z = jnp.maximum(z, 0.0)            # ReLU
        # TODO(synk): F.dropout with training=True would need pltpu PRNG; eval mode => identity.
        z = z + h                          # residual

        # LayerNorm over the real hidden channels (eps=1e-5, biased variance).
        # Padded lanes of z are exactly zero (zero-padded weights/biases), so the mean
        # sum needs no mask; only `diff` must be masked for the variance, and the
        # padded lanes of the output stay zero because gamma/beta are zero there.
        mean = jnp.sum(z, axis=-1, keepdims=True) * inv_h
        diff = (z - mean) * ch_mask
        var = jnp.sum(diff * diff, axis=-1, keepdims=True) * inv_h
        h = diff * jax.lax.rsqrt(var + 1e-5) * gamma_ref[l] + beta_ref[l]

    # output projection
    o_ref[...] = (jnp.dot(h.astype(bf16), out_w_ref[...],
                          preferred_element_type=f32) + out_b_ref[...]
                  ).astype(o_ref.dtype)


# ------------------------------ wrappers --------------------------------------

def build_lhat(edge_index, num_nodes, padded_nodes=None):
    """Dense scaled Laplacian used by ChebConv (sym norm, lambda_max=2):
       Lhat = (2/lambda_max) * (I - D^{-1/2} A D^{-1/2}) - I = -D^{-1/2} A D^{-1/2}.
       Padded rows/cols (if any) are zero, so they never contaminate real nodes."""
    pn = num_nodes if padded_nodes is None else padded_nodes
    row, col = edge_index[0], edge_index[1]
    adj = jnp.zeros((pn, pn), jnp.float32).at[row, col].add(1.0)
    deg = adj.sum(axis=1)
    dinv = jnp.where(deg > 0.0, 1.0 / jnp.sqrt(deg), 0.0)
    return -(dinv[:, None] * adj * dinv[None, :])


def init_params(key, in_channels, hidden, out_channels, num_layers=3, K=3):
    keys = jax.random.split(key, 2 + num_layers)
    scale_in = 1.0 / jnp.sqrt(in_channels)
    scale_h = 1.0 / jnp.sqrt(hidden)
    params = {
        "in_w": jax.random.uniform(keys[0], (in_channels, hidden),
                                   minval=-scale_in, maxval=scale_in, dtype=jnp.float32),
        "in_b": jnp.zeros((1, hidden), jnp.float32),
        "out_w": jax.random.uniform(keys[1], (hidden, out_channels),
                                    minval=-scale_h, maxval=scale_h, dtype=jnp.float32),
        "out_b": jnp.zeros((1, out_channels), jnp.float32),
        "layers": [],
    }
    for li in range(num_layers):
        lk = jax.random.split(keys[2 + li], K)
        layer = {
            "w": [jax.random.uniform(lk[k], (hidden, hidden),
                                     minval=-scale_h, maxval=scale_h, dtype=jnp.float32)
                  for k in range(K)],
            "b": jnp.zeros((1, hidden), jnp.float32),
            "gamma": jnp.ones((1, hidden), jnp.float32),
            "beta": jnp.zeros((1, hidden), jnp.float32),
        }
        params["layers"].append(layer)
    return params


def prepare_spectral_gnn(params, edge_index, num_nodes):
    """One-time (per graph / per weights) padding, stacking and bf16 casting.
    Keeps the per-forward wrapper free of the dense Lhat scatter-add and weight re-stack."""
    in_channels, hidden = params["in_w"].shape
    out_channels = params["out_w"].shape[1]
    num_layers = len(params["layers"])
    num_taps = len(params["layers"][0]["w"])

    np_ = _ceil_to(max(num_nodes, _SUBLANE), _LANE)
    cin_p = _ceil_to(in_channels, _LANE)
    hid_p = _ceil_to(hidden, _LANE)
    cout_p = _ceil_to(out_channels, _LANE)

    # TODO(synk): for N beyond a few thousand nodes the dense (N,N) Lhat exceeds VMEM
    # (especially v7x's 64 MiB); switch to a row-tiled / block-sparse ChebConv with a
    # "parallel" node-row grid axis (dual TensorCore on v7x) streamed via BlockSpec.
    lhat = build_lhat(edge_index, num_nodes, np_).astype(jnp.bfloat16)

    prepared = {
        "lhat": lhat,
        "in_w": _pad2(params["in_w"], cin_p, hid_p).astype(jnp.bfloat16),
        "in_b": _pad2(params["in_b"], 1, hid_p).astype(jnp.float32),
        "out_w": _pad2(params["out_w"], hid_p, cout_p).astype(jnp.bfloat16),
        "out_b": _pad2(params["out_b"], 1, cout_p).astype(jnp.float32),
        # (L, K, Hp, Hp) stacked Cheb weights, bf16; tap order matches the recursion.
        "w_stk": jnp.stack([
            jnp.stack([_pad2(w, hid_p, hid_p) for w in layer["w"]])
            for layer in params["layers"]]).astype(jnp.bfloat16),
        "b_stk": jnp.stack([_pad2(l["b"], 1, hid_p) for l in params["layers"]]
                           ).astype(jnp.float32),
        "g_stk": jnp.stack([_pad2(l["gamma"], 1, hid_p) for l in params["layers"]]
                           ).astype(jnp.float32),
        "beta_stk": jnp.stack([_pad2(l["beta"], 1, hid_p) for l in params["layers"]]
                              ).astype(jnp.float32),
    }
    meta = dict(num_nodes=num_nodes, in_channels=in_channels, hidden=hidden,
                out_channels=out_channels, num_layers=num_layers, num_taps=num_taps,
                np_=np_, cin_p=cin_p, hid_p=hid_p, cout_p=cout_p)
    return prepared, meta


def spectral_gnn_forward(prepared, x, *, hidden, out_channels):
    """Jit-friendly forward: pads x and launches the fused kernel."""
    n, c_in = x.shape
    np_, _ = prepared["lhat"].shape
    cin_p, hid_p = prepared["in_w"].shape
    cout_p = prepared["out_w"].shape[1]
    num_layers, num_taps = prepared["w_stk"].shape[0], prepared["w_stk"].shape[1]

    x_p = _pad2(x.astype(jnp.float32), np_, cin_p).astype(jnp.bfloat16)

    operands = (x_p, prepared["lhat"], prepared["in_w"], prepared["in_b"],
                prepared["w_stk"], prepared["b_stk"], prepared["g_stk"],
                prepared["beta_stk"], prepared["out_w"], prepared["out_b"])

    # Cost estimate for the XLA scheduler.
    flops = (2 * np_ * cin_p * hid_p
             + num_layers * (2 * (num_taps - 1) * np_ * np_ * hid_p   # Lhat propagations
                             + 2 * num_taps * np_ * hid_p * hid_p)    # per-tap matmuls
             + 2 * np_ * hid_p * cout_p)
    bytes_accessed = (sum(int(a.size) * a.dtype.itemsize for a in operands)
                      + np_ * cout_p * 4)

    # Scoped-VMEM limit from the actual resident set (params + live f32 intermediates),
    # with headroom; defaults (16/32 MiB) are hit long before physical VMEM otherwise.
    resident_bytes = sum(int(a.size) * a.dtype.itemsize for a in operands) + np_ * cout_p * 4
    live_bytes = 8 * np_ * hid_p * 4          # h, taps, z, diff, etc. (f32)
    vmem_limit = int(2 * (resident_bytes + live_bytes)) + (8 << 20)
    vmem_limit = max(vmem_limit, 32 << 20)
    vmem_limit = min(vmem_limit, 64 << 20)    # never above v7x physical VMEM

    kernel = functools.partial(_fused_gnn_kernel,
                               num_layers=num_layers, num_taps=num_taps,
                               hidden_real=hidden)

    out_p = pl.pallas_call(
        kernel,
        out_shape=jax.ShapeDtypeStruct((np_, cout_p), jnp.float32),
        in_specs=[VMEM_SPEC] * len(operands),
        out_specs=VMEM_SPEC,
        compiler_params=pltpu.CompilerParams(vmem_limit_bytes=vmem_limit),
        cost_estimate=pl.CostEstimate(flops=flops,
                                      transcendentals=num_layers * np_,
                                      bytes_accessed=bytes_accessed),
    )(*operands)

    return out_p[:n, :out_channels]


def spectral_gnn_apply(params, x, edge_index, batch=None):
    """Convenience wrapper matching the original module interface."""
    del batch  # unused by the reference forward
    prepared, meta = prepare_spectral_gnn(params, edge_index, x.shape[0])
    return spectral_gnn_forward(prepared, x, hidden=meta["hidden"],
                                out_channels=meta["out_channels"])


# ---------------------- pure-JAX reference (unpadded) -------------------------

def _ref_forward(params, x, edge_index, matmul_dtype=jnp.float32):
    """Reference forward. matmul_dtype=bf16 mirrors the kernel's MXU input precision
    (f32 accumulation) for a tight kernel-correctness check."""
    md = matmul_dtype

    def mm(a, b):
        return jnp.dot(a.astype(md), b.astype(md),
                       preferred_element_type=jnp.float32)

    lhat = build_lhat(edge_index, x.shape[0])
    h = mm(x, params["in_w"]) + params["in_b"]
    for layer in params["layers"]:
        K = len(layer["w"])
        t_prev = h
        z = mm(t_prev, layer["w"][0])
        if K >= 2:
            t_cur = mm(lhat, t_prev)
            z = z + mm(t_cur, layer["w"][1])
            for k in range(2, K):
                t_next = 2.0 * mm(lhat, t_cur) - t_prev
                z = z + mm(t_next, layer["w"][k])
                t_prev, t_cur = t_cur, t_next
        z = jnp.maximum(z + layer["b"], 0.0) + h
        mean = jnp.mean(z, axis=-1, keepdims=True)
        var = jnp.mean((z - mean) ** 2, axis=-1, keepdims=True)
        h = (z - mean) * jax.lax.rsqrt(var + 1e-5) * layer["gamma"] + layer["beta"]
    return mm(h, params["out_w"]) + params["out_b"]


if __name__ == "__main__":
    key = jax.random.PRNGKey(0)
    k_x, k_p = jax.random.split(key)

    num_nodes = 16
    in_channels, hidden_channels, out_channels = 4, 32, 4

    # node features
    x = jax.random.normal(k_x, (num_nodes, in_channels), dtype=jnp.float32)

    # bidirectional ring graph -> edge_index of shape (2, 2*N)
    src = jnp.arange(num_nodes, dtype=jnp.int32)
    dst = (src + 1) % num_nodes
    edge_index = jnp.stack(
        [jnp.concatenate([src, dst]), jnp.concatenate([dst, src])], axis=0
    )
    batch = jnp.zeros((num_nodes,), jnp.int32)  # single graph (unused)

    params = init_params(k_p, in_channels, hidden_channels, out_channels,
                         num_layers=3, K=3)

    # One-time prep (Lhat densification, padding, stacking, bf16 casts), then a jitted
    # forward that only pads x and launches the fused kernel.
    prepared, meta = prepare_spectral_gnn(params, edge_index, num_nodes)
    fwd = jax.jit(functools.partial(spectral_gnn_forward,
                                    hidden=meta["hidden"],
                                    out_channels=meta["out_channels"]))

    out = jax.block_until_ready(fwd(prepared, x))
    assert out.shape == (num_nodes, out_channels)

    # Tight check vs. a bf16-matched reference (same matmul precision as the kernel).
    ref_bf16 = jax.block_until_ready(
        _ref_forward(params, x, edge_index, matmul_dtype=jnp.bfloat16))
    assert jnp.allclose(out, ref_bf16, atol=5e-3, rtol=5e-3), (
        "bf16-matched max diff", float(jnp.max(jnp.abs(out - ref_bf16))))

    # Looser check vs. the full-f32 reference (module semantics, bf16 rounding only).
    ref_f32 = jax.block_until_ready(_ref_forward(params, x, edge_index))
    assert jnp.allclose(out, ref_f32, atol=1.5e-1, rtol=1e-1), (
        "f32 max diff", float(jnp.max(jnp.abs(out - ref_f32))))

    print("KERNEL_OK")
</pallas_src>

<mosaic_0001>
module attributes {stable_mosaic.version = 11 : i64} {
  func.func @_fused_gnn_kernel(%arg0: memref<128x128xbf16, #tpu.memory_space<vmem>>, %arg1: memref<128x128xbf16, #tpu.memory_space<vmem>>, %arg2: memref<128x128xbf16, #tpu.memory_space<vmem>>, %arg3: memref<1x128xf32, #tpu.memory_space<vmem>>, %arg4: memref<3x3x128x128xbf16, #tpu.memory_space<vmem>>, %arg5: memref<3x1x128xf32, #tpu.memory_space<vmem>>, %arg6: memref<3x1x128xf32, #tpu.memory_space<vmem>>, %arg7: memref<3x1x128xf32, #tpu.memory_space<vmem>>, %arg8: memref<128x128xbf16, #tpu.memory_space<vmem>>, %arg9: memref<1x128xf32, #tpu.memory_space<vmem>>, %arg10: memref<128x128xf32, #tpu.memory_space<vmem>>) attributes {dimension_semantics = [], scalar_prefetch = 0 : i64, scratch_operands = 0 : i64, tpu.core_type = #tpu.core_type<tc>} {
    %c0 = arith.constant 0 : index
    %c0_0 = arith.constant 0 : index
    %0 = vector.load %arg1[%c0, %c0_0] : memref<128x128xbf16, #tpu.memory_space<vmem>>, vector<128x128xbf16>
    %c0_1 = arith.constant 0 : index
    %c0_2 = arith.constant 0 : index
    %1 = vector.load %arg0[%c0_1, %c0_2] : memref<128x128xbf16, #tpu.memory_space<vmem>>, vector<128x128xbf16>
    %c0_3 = arith.constant 0 : index
    %c0_4 = arith.constant 0 : index
    %2 = vector.load %arg2[%c0_3, %c0_4] : memref<128x128xbf16, #tpu.memory_space<vmem>>, vector<128x128xbf16>
    %cst = arith.constant dense<0.000000e+00> : vector<128x128xf32>
    %3 = tpu.matmul %1, %2, %cst {dimension_numbers = #tpu.dot_dimension_numbers<[1], [0], [0], [1], [0, 0, 1, 1], [], []>} : vector<128x128xbf16>, vector<128x128xbf16>, vector<128x128xf32> -> vector<128x128xf32>
    %c0_5 = arith.constant 0 : index
    %c0_6 = arith.constant 0 : index
    %4 = vector.load %arg3[%c0_5, %c0_6] : memref<1x128xf32, #tpu.memory_space<vmem>>, vector<1x128xf32>
    %5 = vector.broadcast %4 : vector<1x128xf32> to vector<128x128xf32>
    %6 = arith.addf %3, %5 : vector<128x128xf32>
    %7 = tpu.iota {dimensions = array<i32: 1>} : vector<1x128xi32>
    %c32_i32 = arith.constant 32 : i32
    %8 = vector.broadcast %c32_i32 : i32 to vector<1x128xi32>
    %9 = arith.cmpi slt, %7, %8 : vector<1x128xi32>
    %10 = arith.extui %9 : vector<1x128xi1> to vector<1x128xi32>
    %11 = arith.sitofp %10 : vector<1x128xi32> to vector<1x128xf32>
    %12 = arith.truncf %6 : vector<128x128xf32> to vector<128x128xbf16>
    %c0_7 = arith.constant 0 : index
    %c0_8 = arith.constant 0 : index
    %c0_9 = arith.constant 0 : index
    %c0_10 = arith.constant 0 : index
    %13 = vector.load %arg4[%c0_7, %c0_8, %c0_9, %c0_10] : memref<3x3x128x128xbf16, #tpu.memory_space<vmem>>, vector<1x1x128x128xbf16>
    %14 = vector.shape_cast %13 : vector<1x1x128x128xbf16> to vector<128x128xbf16>
    %cst_11 = arith.constant dense<0.000000e+00> : vector<128x128xf32>
    %15 = tpu.matmul %12, %14, %cst_11 {dimension_numbers = #tpu.dot_dimension_numbers<[1], [0], [0], [1], [0, 0, 1, 1], [], []>} : vector<128x128xbf16>, vector<128x128xbf16>, vector<128x128xf32> -> vector<128x128xf32>
    %16 = arith.truncf %6 : vector<128x128xf32> to vector<128x128xbf16>
    %cst_12 = arith.constant dense<0.000000e+00> : vector<128x128xf32>
    %17 = tpu.matmul %0, %16, %cst_12 {dimension_numbers = #tpu.dot_dimension_numbers<[1], [0], [0], [1], [0, 0, 1, 1], [], []>} : vector<128x128xbf16>, vector<128x128xbf16>, vector<128x128xf32> -> vector<128x128xf32>
    %18 = arith.truncf %17 : vector<128x128xf32> to vector<128x128xbf16>
    %c0_13 = arith.constant 0 : index
    %c1 = arith.constant 1 : index
    %c0_14 = arith.constant 0 : index
    %c0_15 = arith.constant 0 : index
    %19 = vector.load %arg4[%c0_13, %c1, %c0_14, %c0_15] : memref<3x3x128x128xbf16, #tpu.memory_space<vmem>>, vector<1x1x128x128xbf16>
    %20 = vector.shape_cast %19 : vector<1x1x128x128xbf16> to vector<128x128xbf16>
    %cst_16 = arith.constant dense<0.000000e+00> : vector<128x128xf32>
    %21 = tpu.matmul %18, %20, %cst_16 {dimension_numbers = #tpu.dot_dimension_numbers<[1], [0], [0], [1], [0, 0, 1, 1], [], []>} : vector<128x128xbf16>, vector<128x128xbf16>, vector<128x128xf32> -> vector<128x128xf32>
    %22 = arith.addf %15, %21 : vector<128x128xf32>
    %23 = arith.truncf %17 : vector<128x128xf32> to vector<128x128xbf16>
    %cst_17 = arith.constant dense<0.000000e+00> : vector<128x128xf32>
    %24 = tpu.matmul %0, %23, %cst_17 {dimension_numbers = #tpu.dot_dimension_numbers<[1], [0], [0], [1], [0, 0, 1, 1], [], []>} : vector<128x128xbf16>, vector<128x128xbf16>, vector<128x128xf32> -> vector<128x128xf32>
    %cst_18 = arith.constant 2.000000e+00 : f32
    %25 = vector.broadcast %cst_18 : f32 to vector<128x128xf32>
    %26 = arith.mulf %25, %24 : vector<128x128xf32>
    %27 = arith.subf %26, %6 : vector<128x128xf32>
    %28 = arith.truncf %27 : vector<128x128xf32> to vector<128x128xbf16>
    %c0_19 = arith.constant 0 : index
    %c2 = arith.constant 2 : index
    %c0_20 = arith.constant 0 : index
    %c0_21 = arith.constant 0 : index
    %29 = vector.load %arg4[%c0_19, %c2, %c0_20, %c0_21] : memref<3x3x128x128xbf16, #tpu.memory_space<vmem>>, vector<1x1x128x128xbf16>
    %30 = vector.shape_cast %29 : vector<1x1x128x128xbf16> to vector<128x128xbf16>
    %cst_22 = arith.constant dense<0.000000e+00> : vector<128x128xf32>
    %31 = tpu.matmul %28, %30, %cst_22 {dimension_numbers = #tpu.dot_dimension_numbers<[1], [0], [0], [1], [0, 0, 1, 1], [], []>} : vector<128x128xbf16>, vector<128x128xbf16>, vector<128x128xf32> -> vector<128x128xf32>
    %32 = arith.addf %22, %31 : vector<128x128xf32>
    %c0_23 = arith.constant 0 : index
    %c0_24 = arith.constant 0 : index
    %c0_25 = arith.constant 0 : index
    %33 = vector.load %arg5[%c0_23, %c0_24, %c0_25] : memref<3x1x128xf32, #tpu.memory_space<vmem>>, vector<1x1x128xf32>
    %34 = vector.shape_cast %33 : vector<1x1x128xf32> to vector<1x128xf32>
    %35 = vector.broadcast %34 : vector<1x128xf32> to vector<128x128xf32>
    %36 = arith.addf %32, %35 : vector<128x128xf32>
    %cst_26 = arith.constant 0.000000e+00 : f32
    %37 = vector.broadcast %cst_26 : f32 to vector<128x128xf32>
    %38 = arith.maximumf %36, %37 : vector<128x128xf32>
    %39 = arith.addf %38, %6 : vector<128x128xf32>
    %cst_27 = arith.constant dense<0.000000e+00> : vector<128xf32>
    %40 = vector.multi_reduction <add>, %39, %cst_27 [1] : vector<128x128xf32> to vector<128xf32>
    %41 = vector.shape_cast %40 : vector<128xf32> to vector<128x1xf32>
    %cst_28 = arith.constant 3.125000e-02 : f32
    %42 = vector.broadcast %cst_28 : f32 to vector<128x1xf32>
    %43 = arith.mulf %41, %42 : vector<128x1xf32>
    %44 = vector.broadcast %43 : vector<128x1xf32> to vector<128x128xf32>
    %45 = arith.subf %39, %44 : vector<128x128xf32>
    %46 = vector.broadcast %11 : vector<1x128xf32> to vector<128x128xf32>
    %47 = arith.mulf %45, %46 : vector<128x128xf32>
    %48 = arith.mulf %47, %47 : vector<128x128xf32>
    %cst_29 = arith.constant dense<0.000000e+00> : vector<128xf32>
    %49 = vector.multi_reduction <add>, %48, %cst_29 [1] : vector<128x128xf32> to vector<128xf32>
    %50 = vector.shape_cast %49 : vector<128xf32> to vector<128x1xf32>
    %cst_30 = arith.constant 3.125000e-02 : f32
    %51 = vector.broadcast %cst_30 : f32 to vector<128x1xf32>
    %52 = arith.mulf %50, %51 : vector<128x1xf32>
    %cst_31 = arith.constant 9.99999974E-6 : f32
    %53 = vector.broadcast %cst_31 : f32 to vector<128x1xf32>
    %54 = arith.addf %52, %53 : vector<128x1xf32>
    %55 = math.rsqrt %54 : vector<128x1xf32>
    %56 = vector.broadcast %55 : vector<128x1xf32> to vector<128x128xf32>
    %57 = arith.mulf %47, %56 : vector<128x128xf32>
    %c0_32 = arith.constant 0 : index
    %c0_33 = arith.constant 0 : index
    %c0_34 = arith.constant 0 : index
    %58 = vector.load %arg6[%c0_32, %c0_33, %c0_34] : memref<3x1x128xf32, #tpu.memory_space<vmem>>, vector<1x1x128xf32>
    %59 = vector.shape_cast %58 : vector<1x1x128xf32> to vector<1x128xf32>
    %60 = vector.broadcast %59 : vector<1x128xf32> to vector<128x128xf32>
    %61 = arith.mulf %57, %60 : vector<128x128xf32>
    %c0_35 = arith.constant 0 : index
    %c0_36 = arith.constant 0 : index
    %c0_37 = arith.constant 0 : index
    %62 = vector.load %arg7[%c0_35, %c0_36, %c0_37] : memref<3x1x128xf32, #tpu.memory_space<vmem>>, vector<1x1x128xf32>
    %63 = vector.shape_cast %62 : vector<1x1x128xf32> to vector<1x128xf32>
    %64 = vector.broadcast %63 : vector<1x128xf32> to vector<128x128xf32>
    %65 = arith.addf %61, %64 : vector<128x128xf32>
    %66 = arith.truncf %65 : vector<128x128xf32> to vector<128x128xbf16>
    %c1_38 = arith.constant 1 : index
    %c0_39 = arith.constant 0 : index
    %c0_40 = arith.constant 0 : index
    %c0_41 = arith.constant 0 : index
    %67 = vector.load %arg4[%c1_38, %c0_39, %c0_40, %c0_41] : memref<3x3x128x128xbf16, #tpu.memory_space<vmem>>, vector<1x1x128x128xbf16>
    %68 = vector.shape_cast %67 : vector<1x1x128x128xbf16> to vector<128x128xbf16>
    %cst_42 = arith.constant dense<0.000000e+00> : vector<128x128xf32>
    %69 = tpu.matmul %66, %68, %cst_42 {dimension_numbers = #tpu.dot_dimension_numbers<[1], [0], [0], [1], [0, 0, 1, 1], [], []>} : vector<128x128xbf16>, vector<128x128xbf16>, vector<128x128xf32> -> vector<128x128xf32>
    %70 = arith.truncf %65 : vector<128x128xf32> to vector<128x128xbf16>
    %cst_43 = arith.constant dense<0.000000e+00> : vector<128x128xf32>
    %71 = tpu.matmul %0, %70, %cst_43 {dimension_numbers = #tpu.dot_dimension_numbers<[1], [0], [0], [1], [0, 0, 1, 1], [], []>} : vector<128x128xbf16>, vector<128x128xbf16>, vector<128x128xf32> -> vector<128x128xf32>
    %72 = arith.truncf %71 : vector<128x128xf32> to vector<128x128xbf16>
    %c1_44 = arith.constant 1 : index
    %c1_45 = arith.constant 1 : index
    %c0_46 = arith.constant 0 : index
    %c0_47 = arith.constant 0 : index
    %73 = vector.load %arg4[%c1_44, %c1_45, %c0_46, %c0_47] : memref<3x3x128x128xbf16, #tpu.memory_space<vmem>>, vector<1x1x128x128xbf16>
    %74 = vector.shape_cast %73 : vector<1x1x128x128xbf16> to vector<128x128xbf16>
    %cst_48 = arith.constant dense<0.000000e+00> : vector<128x128xf32>
    %75 = tpu.matmul %72, %74, %cst_48 {dimension_numbers = #tpu.dot_dimension_numbers<[1], [0], [0], [1], [0, 0, 1, 1], [], []>} : vector<128x128xbf16>, vector<128x128xbf16>, vector<128x128xf32> -> vector<128x128xf32>
    %76 = arith.addf %69, %75 : vector<128x128xf32>
    %77 = arith.truncf %71 : vector<128x128xf32> to vector<128x128xbf16>
    %cst_49 = arith.constant dense<0.000000e+00> : vector<128x128xf32>
    %78 = tpu.matmul %0, %77, %cst_49 {dimension_numbers = #tpu.dot_dimension_numbers<[1], [0], [0], [1], [0, 0, 1, 1], [], []>} : vector<128x128xbf16>, vector<128x128xbf16>, vector<128x128xf32> -> vector<128x128xf32>
    %cst_50 = arith.constant 2.000000e+00 : f32
    %79 = vector.broadcast %cst_50 : f32 to vector<128x128xf32>
    %80 = arith.mulf %79, %78 : vector<128x128xf32>
    %81 = arith.subf %80, %65 : vector<128x128xf32>
    %82 = arith.truncf %81 : vector<128x128xf32> to vector<128x128xbf16>
    %c1_51 = arith.constant 1 : index
    %c2_52 = arith.constant 2 : index
    %c0_53 = arith.constant 0 : index
    %c0_54 = arith.constant 0 : index
    %83 = vector.load %arg4[%c1_51, %c2_52, %c0_53, %c0_54] : memref<3x3x128x128xbf16, #tpu.memory_space<vmem>>, vector<1x1x128x128xbf16>
    %84 = vector.shape_cast %83 : vector<1x1x128x128xbf16> to vector<128x128xbf16>
    %cst_55 = arith.constant dense<0.000000e+00> : vector<128x128xf32>
    %85 = tpu.matmul %82, %84, %cst_55 {dimension_numbers = #tpu.dot_dimension_numbers<[1], [0], [0], [1], [0, 0, 1, 1], [], []>} : vector<128x128xbf16>, vector<128x128xbf16>, vector<128x128xf32> -> vector<128x128xf32>
    %86 = arith.addf %76, %85 : vector<128x128xf32>
    %c1_56 = arith.constant 1 : index
    %c0_57 = arith.constant 0 : index
    %c0_58 = arith.constant 0 : index
    %87 = vector.load %arg5[%c1_56, %c0_57, %c0_58] : memref<3x1x128xf32, #tpu.memory_space<vmem>>, vector<1x1x128xf32>
    %88 = vector.shape_cast %87 : vector<1x1x128xf32> to vector<1x128xf32>
    %89 = vector.broadcast %88 : vector<1x128xf32> to vector<128x128xf32>
    %90 = arith.addf %86, %89 : vector<128x128xf32>
    %cst_59 = arith.constant 0.000000e+00 : f32
    %91 = vector.broadcast %cst_59 : f32 to vector<128x128xf32>
    %92 = arith.maximumf %90, %91 : vector<128x128xf32>
    %93 = arith.addf %92, %65 : vector<128x128xf32>
    %cst_60 = arith.constant dense<0.000000e+00> : vector<128xf32>
    %94 = vector.multi_reduction <add>, %93, %cst_60 [1] : vector<128x128xf32> to vector<128xf32>
    %95 = vector.shape_cast %94 : vector<128xf32> to vector<128x1xf32>
    %cst_61 = arith.constant 3.125000e-02 : f32
    %96 = vector.broadcast %cst_61 : f32 to vector<128x1xf32>
    %97 = arith.mulf %95, %96 : vector<128x1xf32>
    %98 = vector.broadcast %97 : vector<128x1xf32> to vector<128x128xf32>
    %99 = arith.subf %93, %98 : vector<128x128xf32>
    %100 = vector.broadcast %11 : vector<1x128xf32> to vector<128x128xf32>
    %101 = arith.mulf %99, %100 : vector<128x128xf32>
    %102 = arith.mulf %101, %101 : vector<128x128xf32>
    %cst_62 = arith.constant dense<0.000000e+00> : vector<128xf32>
    %103 = vector.multi_reduction <add>, %102, %cst_62 [1] : vector<128x128xf32> to vector<128xf32>
    %104 = vector.shape_cast %103 : vector<128xf32> to vector<128x1xf32>
    %cst_63 = arith.constant 3.125000e-02 : f32
    %105 = vector.broadcast %cst_63 : f32 to vector<128x1xf32>
    %106 = arith.mulf %104, %105 : vector<128x1xf32>
    %cst_64 = arith.constant 9.99999974E-6 : f32
    %107 = vector.broadcast %cst_64 : f32 to vector<128x1xf32>
    %108 = arith.addf %106, %107 : vector<128x1xf32>
    %109 = math.rsqrt %108 : vector<128x1xf32>
    %110 = vector.broadcast %109 : vector<128x1xf32> to vector<128x128xf32>
    %111 = arith.mulf %101, %110 : vector<128x128xf32>
    %c1_65 = arith.constant 1 : index
    %c0_66 = arith.constant 0 : index
    %c0_67 = arith.constant 0 : index
    %112 = vector.load %arg6[%c1_65, %c0_66, %c0_67] : memref<3x1x128xf32, #tpu.memory_space<vmem>>, vector<1x1x128xf32>
    %113 = vector.shape_cast %112 : vector<1x1x128xf32> to vector<1x128xf32>
    %114 = vector.broadcast %113 : vector<1x128xf32> to vector<128x128xf32>
    %115 = arith.mulf %111, %114 : vector<128x128xf32>
    %c1_68 = arith.constant 1 : index
    %c0_69 = arith.constant 0 : index
    %c0_70 = arith.constant 0 : index
    %116 = vector.load %arg7[%c1_68, %c0_69, %c0_70] : memref<3x1x128xf32, #tpu.memory_space<vmem>>, vector<1x1x128xf32>
    %117 = vector.shape_cast %116 : vector<1x1x128xf32> to vector<1x128xf32>
    %118 = vector.broadcast %117 : vector<1x128xf32> to vector<128x128xf32>
    %119 = arith.addf %115, %118 : vector<128x128xf32>
    %120 = arith.truncf %119 : vector<128x128xf32> to vector<128x128xbf16>
    %c2_71 = arith.constant 2 : index
    %c0_72 = arith.constant 0 : index
    %c0_73 = arith.constant 0 : index
    %c0_74 = arith.constant 0 : index
    %121 = vector.load %arg4[%c2_71, %c0_72, %c0_73, %c0_74] : memref<3x3x128x128xbf16, #tpu.memory_space<vmem>>, vector<1x1x128x128xbf16>
    %122 = vector.shape_cast %121 : vector<1x1x128x128xbf16> to vector<128x128xbf16>
    %cst_75 = arith.constant dense<0.000000e+00> : vector<128x128xf32>
    %123 = tpu.matmul %120, %122, %cst_75 {dimension_numbers = #tpu.dot_dimension_numbers<[1], [0], [0], [1], [0, 0, 1, 1], [], []>} : vector<128x128xbf16>, vector<128x128xbf16>, vector<128x128xf32> -> vector<128x128xf32>
    %124 = arith.truncf %119 : vector<128x128xf32> to vector<128x128xbf16>
    %cst_76 = arith.constant dense<0.000000e+00> : vector<128x128xf32>
    %125 = tpu.matmul %0, %124, %cst_76 {dimension_numbers = #tpu.dot_dimension_numbers<[1], [0], [0], [1], [0, 0, 1, 1], [], []>} : vector<128x128xbf16>, vector<128x128xbf16>, vector<128x128xf32> -> vector<128x128xf32>
    %126 = arith.truncf %125 : vector<128x128xf32> to vector<128x128xbf16>
    %c2_77 = arith.constant 2 : index
    %c1_78 = arith.constant 1 : index
    %c0_79 = arith.constant 0 : index
    %c0_80 = arith.constant 0 : index
    %127 = vector.load %arg4[%c2_77, %c1_78, %c0_79, %c0_80] : memref<3x3x128x128xbf16, #tpu.memory_space<vmem>>, vector<1x1x128x128xbf16>
    %128 = vector.shape_cast %127 : vector<1x1x128x128xbf16> to vector<128x128xbf16>
    %cst_81 = arith.constant dense<0.000000e+00> : vector<128x128xf32>
    %129 = tpu.matmul %126, %128, %cst_81 {dimension_numbers = #tpu.dot_dimension_numbers<[1], [0], [0], [1], [0, 0, 1, 1], [], []>} : vector<128x128xbf16>, vector<128x128xbf16>, vector<128x128xf32> -> vector<128x128xf32>
    %130 = arith.addf %123, %129 : vector<128x128xf32>
    %131 = arith.truncf %125 : vector<128x128xf32> to vector<128x128xbf16>
    %cst_82 = arith.constant dense<0.000000e+00> : vector<128x128xf32>
    %132 = tpu.matmul %0, %131, %cst_82 {dimension_numbers = #tpu.dot_dimension_numbers<[1], [0], [0], [1], [0, 0, 1, 1], [], []>} : vector<128x128xbf16>, vector<128x128xbf16>, vector<128x128xf32> -> vector<128x128xf32>
    %cst_83 = arith.constant 2.000000e+00 : f32
    %133 = vector.broadcast %cst_83 : f32 to vector<128x128xf32>
    %134 = arith.mulf %133, %132 : vector<128x128xf32>
    %135 = arith.subf %134, %119 : vector<128x128xf32>
    %136 = arith.truncf %135 : vector<128x128xf32> to vector<128x128xbf16>
    %c2_84 = arith.constant 2 : index
    %c2_85 = arith.constant 2 : index
    %c0_86 = arith.constant 0 : index
    %c0_87 = arith.constant 0 : index
    %137 = vector.load %arg4[%c2_84, %c2_85, %c0_86, %c0_87] : memref<3x3x128x128xbf16, #tpu.memory_space<vmem>>, vector<1x1x128x128xbf16>
    %138 = vector.shape_cast %137 : vector<1x1x128x128xbf16> to vector<128x128xbf16>
    %cst_88 = arith.constant dense<0.000000e+00> : vector<128x128xf32>
    %139 = tpu.matmul %136, %138, %cst_88 {dimension_numbers = #tpu.dot_dimension_numbers<[1], [0], [0], [1], [0, 0, 1, 1], [], []>} : vector<128x128xbf16>, vector<128x128xbf16>, vector<128x128xf32> -> vector<128x128xf32>
    %140 = arith.addf %130, %139 : vector<128x128xf32>
    %c2_89 = arith.constant 2 : index
    %c0_90 = arith.constant 0 : index
    %c0_91 = arith.constant 0 : index
    %141 = vector.load %arg5[%c2_89, %c0_90, %c0_91] : memref<3x1x128xf32, #tpu.memory_space<vmem>>, vector<1x1x128xf32>
    %142 = vector.shape_cast %141 : vector<1x1x128xf32> to vector<1x128xf32>
    %143 = vector.broadcast %142 : vector<1x128xf32> to vector<128x128xf32>
    %144 = arith.addf %140, %143 : vector<128x128xf32>
    %cst_92 = arith.constant 0.000000e+00 : f32
    %145 = vector.broadcast %cst_92 : f32 to vector<128x128xf32>
    %146 = arith.maximumf %144, %145 : vector<128x128xf32>
    %147 = arith.addf %146, %119 : vector<128x128xf32>
    %cst_93 = arith.constant dense<0.000000e+00> : vector<128xf32>
    %148 = vector.multi_reduction <add>, %147, %cst_93 [1] : vector<128x128xf32> to vector<128xf32>
    %149 = vector.shape_cast %148 : vector<128xf32> to vector<128x1xf32>
    %cst_94 = arith.constant 3.125000e-02 : f32
    %150 = vector.broadcast %cst_94 : f32 to vector<128x1xf32>
    %151 = arith.mulf %149, %150 : vector<128x1xf32>
    %152 = vector.broadcast %151 : vector<128x1xf32> to vector<128x128xf32>
    %153 = arith.subf %147, %152 : vector<128x128xf32>
    %154 = vector.broadcast %11 : vector<1x128xf32> to vector<128x128xf32>
    %155 = arith.mulf %153, %154 : vector<128x128xf32>
    %156 = arith.mulf %155, %155 : vector<128x128xf32>
    %cst_95 = arith.constant dense<0.000000e+00> : vector<128xf32>
    %157 = vector.multi_reduction <add>, %156, %cst_95 [1] : vector<128x128xf32> to vector<128xf32>
    %158 = vector.shape_cast %157 : vector<128xf32> to vector<128x1xf32>
    %cst_96 = arith.constant 3.125000e-02 : f32
    %159 = vector.broadcast %cst_96 : f32 to vector<128x1xf32>
    %160 = arith.mulf %158, %159 : vector<128x1xf32>
    %cst_97 = arith.constant 9.99999974E-6 : f32
    %161 = vector.broadcast %cst_97 : f32 to vector<128x1xf32>
    %162 = arith.addf %160, %161 : vector<128x1xf32>
    %163 = math.rsqrt %162 : vector<128x1xf32>
    %164 = vector.broadcast %163 : vector<128x1xf32> to vector<128x128xf32>
    %165 = arith.mulf %155, %164 : vector<128x128xf32>
    %c2_98 = arith.constant 2 : index
    %c0_99 = arith.constant 0 : index
    %c0_100 = arith.constant 0 : index
    %166 = vector.load %arg6[%c2_98, %c0_99, %c0_100] : memref<3x1x128xf32, #tpu.memory_space<vmem>>, vector<1x1x128xf32>
    %167 = vector.shape_cast %166 : vector<1x1x128xf32> to vector<1x128xf32>
    %168 = vector.broadcast %167 : vector<1x128xf32> to vector<128x128xf32>
    %169 = arith.mulf %165, %168 : vector<128x128xf32>
    %c2_101 = arith.constant 2 : index
    %c0_102 = arith.constant 0 : index
    %c0_103 = arith.constant 0 : index
    %170 = vector.load %arg7[%c2_101, %c0_102, %c0_103] : memref<3x1x128xf32, #tpu.memory_space<vmem>>, vector<1x1x128xf32>
    %171 = vector.shape_cast %170 : vector<1x1x128xf32> to vector<1x128xf32>
    %172 = vector.broadcast %171 : vector<1x128xf32> to vector<128x128xf32>
    %173 = arith.addf %169, %172 : vector<128x128xf32>
    %174 = arith.truncf %173 : vector<128x128xf32> to vector<128x128xbf16>
    %c0_104 = arith.constant 0 : index
    %c0_105 = arith.constant 0 : index
    %175 = vector.load %arg8[%c0_104, %c0_105] : memref<128x128xbf16, #tpu.memory_space<vmem>>, vector<128x128xbf16>
    %cst_106 = arith.constant dense<0.000000e+00> : vector<128x128xf32>
    %176 = tpu.matmul %174, %175, %cst_106 {dimension_numbers = #tpu.dot_dimension_numbers<[1], [0], [0], [1], [0, 0, 1, 1], [], []>} : vector<128x128xbf16>, vector<128x128xbf16>, vector<128x128xf32> -> vector<128x128xf32>
    %c0_107 = arith.constant 0 : index
    %c0_108 = arith.constant 0 : index
    %177 = vector.load %arg9[%c0_107, %c0_108] : memref<1x128xf32, #tpu.memory_space<vmem>>, vector<1x128xf32>
    %178 = vector.broadcast %177 : vector<1x128xf32> to vector<128x128xf32>
    %179 = arith.addf %176, %178 : vector<128x128xf32>
    %c0_109 = arith.constant 0 : index
    %c0_110 = arith.constant 0 : index
    %180 = vector.load %arg10[%c0_109, %c0_110] : memref<128x128xf32, #tpu.memory_space<vmem>>, vector<128x128xf32>
    tpu.vector_store %arg10[%c0_109, %c0_110], %179 {strides = array<i32>} : memref<128x128xf32, #tpu.memory_space<vmem>>, vector<128x128xf32>,
    return
  }
}

</mosaic_0001>

<llo_original>
// kernel: spectral_gnn_forward.1
$region0: #{spectral_gnn_forward.1}
  #allocation0 [shape = 'u32[]', space=smem, size = 0x4, offset = 0x4, fixed_abs, tag = 'smem constant byte address 0x4 - core index']
  #allocation1 [shape = 'u32[144,128]{1,0:T(1,128)}', space=vmem, size = 0x12000, scoped, tag = 'internal scratch']
  %s0 = inlined_call_operand.vmem [shape: bf16[128,128], index: 0, kind: input, shape index: {}]
  %s1 = inlined_call_operand.vmem [shape: bf16[128,128], index: 1, kind: input, shape index: {}]
  %s2 = inlined_call_operand.hbm [shape: bf16[128,128], index: 2, kind: input, shape index: {}]
  %s3 = inlined_call_operand.vmem [shape: f32[1,128], index: 3, kind: input, shape index: {}]
  %s4 = inlined_call_operand.hbm [shape: bf16[3,3,128,128], index: 4, kind: input, shape index: {}]
  %s5 = inlined_call_operand.vmem [shape: f32[3,1,128], index: 5, kind: input, shape index: {}]
  %s6 = inlined_call_operand.vmem [shape: f32[3,1,128], index: 6, kind: input, shape index: {}]
  %s7 = inlined_call_operand.vmem [shape: f32[3,1,128], index: 7, kind: input, shape index: {}]
  %s8 = inlined_call_operand.hbm [shape: bf16[128,128], index: 8, kind: input, shape index: {}]
  %s9 = inlined_call_operand.vmem [shape: f32[1,128], index: 9, kind: input, shape index: {}]
  %s10 = inlined_call_operand.vmem [shape: f32[128,128], index: 10, kind: output, shape index: {}]
  %s11 = sld [smem:[#allocation0]]
  $region62: #{spectral_gnn_forward.1} parent=0
    _
  %s13 = ssub.s32 1, %s11
  %s14 = scalar_select 0, %s13, %s11
  $region1: #{spectral_gnn_forward.1} parent=0
    #allocation2 [shape = 'u8[32768]{0}', space=vmem, size = 0x8000, scoped, tag = 'input window, operand 2, single buffered']
    #allocation3 [shape = 's32[1]{0}', space=sflag, size = 0x4, scoped, tag = 'scoped memory for spectral_gnn_forward.1']
    #allocation4 [shape = 'u8[294912]{0}', space=vmem, size = 0x48000, scoped, tag = 'input window, operand 4, single buffered']
    #allocation5 [shape = 's32[1]{0}', space=sflag, size = 0x4, scoped, tag = 'scoped memory for spectral_gnn_forward.1']
    #allocation6 [shape = 'u8[32768]{0}', space=vmem, size = 0x8000, scoped, tag = 'input window, operand 8, single buffered']
    %15 = vsyncpa [#allocation3], 0
    %16 = vsyncpa [#allocation5], 0
    // Predicated region
    $region2: #{spectral_gnn_forward.1} parent=1 // pred_check
      _
    $region3: #{spectral_gnn_forward.1} parent=1 // pred_check_branch
      %18 = sbr.rel (0) target = $region5
    $region4: #{spectral_gnn_forward.1} parent=1 // pred_region
      _
    $region5: #{spectral_gnn_forward.1} parent=1 // pred_fallthru
      _
    // Predicated region
    $region6: #{spectral_gnn_forward.1} parent=1 // pred_check
      _
    $region7: #{spectral_gnn_forward.1} parent=1 // pred_check_branch
      %20 = sbr.rel (0) target = $region9
    $region8: #{spectral_gnn_forward.1} parent=1 // pred_region
      _
    $region9: #{spectral_gnn_forward.1} parent=1 // pred_fallthru
      _
    // Predicated region
    $region10: #{spectral_gnn_forward.1} parent=1 // pred_check
      _
    $region11: #{spectral_gnn_forward.1} parent=1 // pred_check_branch
      %22 = sbr.rel (0) target = $region13
    $region12: #{spectral_gnn_forward.1} parent=1 // pred_region
      %s24 = ssub.s32 1024, 1024
      %25 = vsyncadd [#allocation3], %s24
      %s26 = sshll.u32 [#allocation2], 4
      %s27 = int_to_ptr.vmem [resolvable:$true] %s26
      %32 = dma.hbm_to_vmem [thread:$0]  %s2, 1024, %s27, [#allocation3], 64, 64, 4
    $region13: #{spectral_gnn_forward.1} parent=1 // pred_fallthru
      _
    // Predicated region
    $region14: #{spectral_gnn_forward.1} parent=1 // pred_check
      _
    $region15: #{spectral_gnn_forward.1} parent=1 // pred_check_branch
      %34 = sbr.rel (0) target = $region17
    $region16: #{spectral_gnn_forward.1} parent=1 // pred_region
      _
    $region17: #{spectral_gnn_forward.1} parent=1 // pred_fallthru
      _
    // Predicated region
    $region18: #{spectral_gnn_forward.1} parent=1 // pred_check
      _
    $region19: #{spectral_gnn_forward.1} parent=1 // pred_check_branch
      %36 = sbr.rel (0) target = $region21
    $region20: #{spectral_gnn_forward.1} parent=1 // pred_region
      %s38 = ssub.s32 9216, 9216
      %39 = vsyncadd [#allocation5], %s38
      %s40 = sshll.u32 [#allocation4], 4
      %s41 = int_to_ptr.vmem [resolvable:$true] %s40
      %46 = dma.hbm_to_vmem [thread:$0]  %s4, 9216, %s41, [#allocation5], 64, 64, 4
    $region21: #{spectral_gnn_forward.1} parent=1 // pred_fallthru
      _
    // Predicated region
    $region22: #{spectral_gnn_forward.1} parent=1 // pred_check
      _
    $region23: #{spectral_gnn_forward.1} parent=1 // pred_check_branch
      %48 = sbr.rel (0) target = $region25
    $region24: #{spectral_gnn_forward.1} parent=1 // pred_region
      _
    $region25: #{spectral_gnn_forward.1} parent=1 // pred_fallthru
      _
    // Predicated region
    $region26: #{spectral_gnn_forward.1} parent=1 // pred_check
      _
    $region27: #{spectral_gnn_forward.1} parent=1 // pred_check_branch
      %50 = sbr.rel (0) target = $region29
    $region28: #{spectral_gnn_forward.1} parent=1 // pred_region
      _
    $region29: #{spectral_gnn_forward.1} parent=1 // pred_fallthru
      _
    // Predicated region
    $region30: #{spectral_gnn_forward.1} parent=1 // pred_check
      _
    $region31: #{spectral_gnn_forward.1} parent=1 // pred_check_branch
      %52 = sbr.rel (0) target = $region33
    $region32: #{spectral_gnn_forward.1} parent=1 // pred_region
      _
    $region33: #{spectral_gnn_forward.1} parent=1 // pred_fallthru
      _
    // Predicated region
    $region34: #{spectral_gnn_forward.1} parent=1 // pred_check
      _
    $region35: #{spectral_gnn_forward.1} parent=1 // pred_check_branch
      %54 = sbr.rel (0) target = $region37
    $region36: #{spectral_gnn_forward.1} parent=1 // pred_region
      %s56 = ssub.s32 1024, 1024
      %57 = vsyncadd [#allocation5], %s56
      %s58 = sshll.u32 [#allocation6], 4
      %s59 = int_to_ptr.vmem [resolvable:$true] %s58
      %64 = dma.hbm_to_vmem [thread:$0]  %s8, 1024, %s59, [#allocation5], 64, 64, 4
    $region37: #{spectral_gnn_forward.1} parent=1 // pred_fallthru
      _
    // Predicated region
    $region38: #{spectral_gnn_forward.1} parent=1 // pred_check
      _
    $region39: #{spectral_gnn_forward.1} parent=1 // pred_check_branch
      %66 = sbr.rel (0) target = $region41
    $region40: #{spectral_gnn_forward.1} parent=1 // pred_region
      _
    $region41: #{spectral_gnn_forward.1} parent=1 // pred_fallthru
      _
    // Predicated region
    $region42: #{spectral_gnn_forward.1} parent=1 // pred_check
      _
    $region43: #{spectral_gnn_forward.1} parent=1 // pred_check_branch
      %68 = sbr.rel (0) target = $region45
    $region44: #{spectral_gnn_forward.1} parent=1 // pred_region
      %69 = dma.done [#allocation3], 1024
    $region45: #{spectral_gnn_forward.1} parent=1 // pred_fallthru
      _
    // Predicated region
    $region46: #{spectral_gnn_forward.1} parent=1 // pred_check
      _
    $region47: #{spectral_gnn_forward.1} parent=1 // pred_check_branch
      %71 = sbr.rel (0) target = $region49
    $region48: #{spectral_gnn_forward.1} parent=1 // pred_region
      %72 = dma.done [#allocation5], 9216
    $region49: #{spectral_gnn_forward.1} parent=1 // pred_fallthru
      _
    // Predicated region
    $region50: #{spectral_gnn_forward.1} parent=1 // pred_check
      _
    $region51: #{spectral_gnn_forward.1} parent=1 // pred_check_branch
      %74 = sbr.rel (0) target = $region53
    $region52: #{spectral_gnn_forward.1} parent=1 // pred_region
      %75 = dma.done [#allocation5], 1024
    $region53: #{spectral_gnn_forward.1} parent=1 // pred_fallthru
      _
    %v77 = vld [vmem:[%s1] sm:$0xf]
    %v78 = vld [vmem:[%s1 + $0x4] sm:$0xf]
    %v79 = vld [vmem:[%s1 + $0x8] sm:$0xf]
    %v80 = vld [vmem:[%s1 + $0xc] sm:$0xf]
    %v81 = vld [vmem:[%s1 + $0x10] sm:$0xf]
    %v82 = vld [vmem:[%s1 + $0x14] sm:$0xf]
    %v83 = vld [vmem:[%s1 + $0x18] sm:$0xf]
    %v84 = vld [vmem:[%s1 + $0x1c] sm:$0xf]
    %v85 = vld [vmem:[%s1 + $0x20] sm:$0xf]
    %v86 = vld [vmem:[%s1 + $0x24] sm:$0xf]
    %v87 = vld [vmem:[%s1 + $0x28] sm:$0xf]
    %v88 = vld [vmem:[%s1 + $0x2c] sm:$0xf]
    %v89 = vld [vmem:[%s1 + $0x30] sm:$0xf]
    %v90 = vld [vmem:[%s1 + $0x34] sm:$0xf]
    %v91 = vld [vmem:[%s1 + $0x38] sm:$0xf]
    %v92 = vld [vmem:[%s1 + $0x3c] sm:$0xf]
    %v93 = vld [vmem:[%s0] sm:$0xf]
    %v94 = vld [vmem:[%s0 + $0x4] sm:$0xf]
    %v95 = vld [vmem:[%s0 + $0x8] sm:$0xf]
    %v96 = vld [vmem:[%s0 + $0xc] sm:$0xf]
    %v97 = vld [vmem:[%s0 + $0x10] sm:$0xf]
    %v98 = vld [vmem:[%s0 + $0x14] sm:$0xf]
    %v99 = vld [vmem:[%s0 + $0x18] sm:$0xf]
    %v100 = vld [vmem:[%s0 + $0x1c] sm:$0xf]
    %v101 = vld [vmem:[%s0 + $0x20] sm:$0xf]
    %v102 = vld [vmem:[%s0 + $0x24] sm:$0xf]
    %v103 = vld [vmem:[%s0 + $0x28] sm:$0xf]
    %v104 = vld [vmem:[%s0 + $0x2c] sm:$0xf]
    %v105 = vld [vmem:[%s0 + $0x30] sm:$0xf]
    %v106 = vld [vmem:[%s0 + $0x34] sm:$0xf]
    %v107 = vld [vmem:[%s0 + $0x38] sm:$0xf]
    %v108 = vld [vmem:[%s0 + $0x3c] sm:$0xf]
    %v109 = vld [vmem:[#allocation2] sm:$0xf]
    %v110 = vld [vmem:[#allocation2 + $0x4] sm:$0xf]
    %v111 = vld [vmem:[#allocation2 + $0x8] sm:$0xf]
    %v112 = vld [vmem:[#allocation2 + $0xc] sm:$0xf]
    %v113 = vld [vmem:[#allocation2 + $0x10] sm:$0xf]
    %v114 = vld [vmem:[#allocation2 + $0x14] sm:$0xf]
    %v115 = vld [vmem:[#allocation2 + $0x18] sm:$0xf]
    %v116 = vld [vmem:[#allocation2 + $0x1c] sm:$0xf]
    %v117 = vld [vmem:[#allocation2 + $0x20] sm:$0xf]
    %v118 = vld [vmem:[#allocation2 + $0x24] sm:$0xf]
    %v119 = vld [vmem:[#allocation2 + $0x28] sm:$0xf]
    %v120 = vld [vmem:[#allocation2 + $0x2c] sm:$0xf]
    %v121 = vld [vmem:[#allocation2 + $0x30] sm:$0xf]
    %v122 = vld [vmem:[#allocation2 + $0x34] sm:$0xf]
    %v123 = vld [vmem:[#allocation2 + $0x38] sm:$0xf]
    %v124 = vld [vmem:[#allocation2 + $0x3c] sm:$0xf]
    %v125 = vld [vmem:[%s3] sm:$0x1]
    %v127 = vlaneseq
    %v128 = vshrl.u32 %v127, 7
    %v129 = vsub.s32 0, %v128
    %v130 = vrot.slane %v125, %v129
    %v148 = vunpack.c.l.b16 %v93
    %v149 = vunpack.c.l.b16 %v94
    %v150 = vunpack.c.l.b16 %v95
    %v151 = vunpack.c.l.b16 %v96
    %v152 = vunpack.c.l.b16 %v97
    %v153 = vunpack.c.l.b16 %v98
    %v154 = vunpack.c.l.b16 %v99
    %v155 = vunpack.c.l.b16 %v100
    %v156 = vunpack.c.l.b16 %v101
    %v157 = vunpack.c.l.b16 %v102
    %v158 = vunpack.c.l.b16 %v103
    %v159 = vunpack.c.l.b16 %v104
    %v160 = vunpack.c.l.b16 %v105
    %v161 = vunpack.c.l.b16 %v106
    %v162 = vunpack.c.l.b16 %v107
    %v163 = vunpack.c.l.b16 %v108
    %v164 = vpack.c.b16 %v149, %v148
    %v165 = vpack.c.b16 %v151, %v150
    %v166 = vpack.c.b16 %v153, %v152
    %v167 = vpack.c.b16 %v155, %v154
    %v168 = vpack.c.b16 %v157, %v156
    %v169 = vpack.c.b16 %v159, %v158
    %v170 = vpack.c.b16 %v161, %v160
    %v171 = vpack.c.b16 %v163, %v162
    %v196 = vunpack.c.l.b16 %v109
    %v197 = vunpack.c.l.b16 %v110
    %v198 = vunpack.c.l.b16 %v111
    %v199 = vunpack.c.l.b16 %v112
    %v200 = vunpack.c.l.b16 %v113
    %v201 = vunpack.c.l.b16 %v114
    %v202 = vunpack.c.l.b16 %v115
    %v203 = vunpack.c.l.b16 %v116
    %v204 = vunpack.c.l.b16 %v117
    %v205 = vunpack.c.l.b16 %v118
    %v206 = vunpack.c.l.b16 %v119
    %v207 = vunpack.c.l.b16 %v120
    %v208 = vunpack.c.l.b16 %v121
    %v209 = vunpack.c.l.b16 %v122
    %v210 = vunpack.c.l.b16 %v123
    %v211 = vunpack.c.l.b16 %v124
    %v212 = vpack.c.b16 %v197, %v196
    %v213 = vpack.c.b16 %v199, %v198
    %v214 = vpack.c.b16 %v201, %v200
    %v215 = vpack.c.b16 %v203, %v202
    %v216 = vpack.c.b16 %v205, %v204
    %v217 = vpack.c.b16 %v207, %v206
    %v218 = vpack.c.b16 %v209, %v208
    %v219 = vpack.c.b16 %v211, %v210
    %228 = vmatprep.subr.bf16.mxu0 0
    %229 = vmatpush1.bf16.msra.mxu0 %v212
    %230 = vmatprep.subr.bf16.mxu0 0
    %231 = vmatpush1.bf16.msra.mxu0 %v213
    %232 = vmatprep.subr.bf16.mxu0 0
    %233 = vmatpush1.bf16.msra.mxu0 %v214
    %234 = vmatprep.subr.bf16.mxu0 0
    %235 = vmatpush1.bf16.msra.mxu0 %v215
    %236 = vmatprep.subr.bf16.mxu0 0
    %237 = vmatpush1.bf16.msra.mxu0 %v216
    %238 = vmatprep.subr.bf16.mxu0 0
    %239 = vmatpush1.bf16.msra.mxu0 %v217
    %240 = vmatprep.subr.bf16.mxu0 0
    %241 = vmatpush1.bf16.msra.mxu0 %v218
    %242 = vmatprep.subr.bf16.mxu0 0
    %243 = vmatpush1.bf16.msra.mxu0 %v219
    %244 = vmatprep.subr.bf16.mxu0 0
    %245 = vmatpush1.bf16.msra.mxu0 0
    %246 = vmatprep.subr.bf16.mxu0 0
    %247 = vmatpush1.bf16.msra.mxu0 0
    %248 = vmatprep.subr.bf16.mxu0 0
    %249 = vmatpush1.bf16.msra.mxu0 0
    %250 = vmatprep.subr.bf16.mxu0 0
    %251 = vmatpush1.bf16.msra.mxu0 0
    %252 = vmatprep.subr.bf16.mxu0 0
    %253 = vmatpush1.bf16.msra.mxu0 0
    %254 = vmatprep.subr.bf16.mxu0 0
    %255 = vmatpush1.bf16.msra.mxu0 0
    %256 = vmatprep.subr.bf16.mxu0 0
    %257 = vmatpush1.bf16.msra.mxu0 0
    %258 = vmatprep.subr.bf16.mxu0 0
    %259 = vmatpush1.bf16.msra.mxu0 0
    %260 = vmatprep.mubr.bf16.mxu0 0
    %261 = vmatmul.mubr.bf16.gmra.mrb[0].mxu0 %v164
    %v262 = vpop.f32.mrb[0].mxu0
    %v263 = vadd.f32 %v130, %v262
    %v264 = vpop.f32.mrb[0].mxu0
    %v265 = vpop.f32.mrb[0].mxu0
    %v266 = vadd.f32 %v130, %v265
    %v267 = vpop.f32.mrb[0].mxu0
    %268 = vmatprep.mubr.bf16.mxu0 0
    %269 = vmatmul.mubr.bf16.gmra.mrb[0].mxu0 %v165
    %v270 = vpop.f32.mrb[0].mxu0
    %v271 = vadd.f32 %v130, %v270
    %v272 = vpop.f32.mrb[0].mxu0
    %v273 = vpop.f32.mrb[0].mxu0
    %v274 = vadd.f32 %v130, %v273
    %v275 = vpop.f32.mrb[0].mxu0
    %276 = vmatprep.mubr.bf16.mxu0 0
    %277 = vmatmul.mubr.bf16.gmra.mrb[0].mxu0 %v166
    %v278 = vpop.f32.mrb[0].mxu0
    %v279 = vadd.f32 %v130, %v278
    %v280 = vpop.f32.mrb[0].mxu0
    %v281 = vpop.f32.mrb[0].mxu0
    %v282 = vadd.f32 %v130, %v281
    %v283 = vpop.f32.mrb[0].mxu0
    %284 = vmatprep.mubr.bf16.mxu0 0
    %285 = vmatmul.mubr.bf16.gmra.mrb[0].mxu0 %v167
    %v286 = vpop.f32.mrb[0].mxu0
    %v287 = vadd.f32 %v130, %v286
    %v288 = vpop.f32.mrb[0].mxu0
    %v289 = vpop.f32.mrb[0].mxu0
    %v290 = vadd.f32 %v130, %v289
    %v291 = vpop.f32.mrb[0].mxu0
    %292 = vmatprep.mubr.bf16.mxu0 0
    %293 = vmatmul.mubr.bf16.gmra.mrb[0].mxu0 %v168
    %v294 = vpop.f32.mrb[0].mxu0
    %v295 = vadd.f32 %v130, %v294
    %v296 = vpop.f32.mrb[0].mxu0
    %v297 = vpop.f32.mrb[0].mxu0
    %v298 = vadd.f32 %v130, %v297
    %v299 = vpop.f32.mrb[0].mxu0
    %300 = vmatprep.mubr.bf16.mxu0 0
    %301 = vmatmul.mubr.bf16.gmra.mrb[0].mxu0 %v169
    %v302 = vpop.f32.mrb[0].mxu0
    %v303 = vadd.f32 %v130, %v302
    %v304 = vpop.f32.mrb[0].mxu0
    %v305 = vpop.f32.mrb[0].mxu0
    %v306 = vadd.f32 %v130, %v305
    %v307 = vpop.f32.mrb[0].mxu0
    %308 = vmatprep.mubr.bf16.mxu0 0
    %309 = vmatmul.mubr.bf16.gmra.mrb[0].mxu0 %v170
    %v310 = vpop.f32.mrb[0].mxu0
    %v311 = vadd.f32 %v130, %v310
    %v312 = vpop.f32.mrb[0].mxu0
    %v313 = vpop.f32.mrb[0].mxu0
    %v314 = vadd.f32 %v130, %v313
    %v315 = vpop.f32.mrb[0].mxu0
    %316 = vmatprep.mubr.bf16.mxu0 0
    %317 = vmatmul.mubr.bf16.gmra.mrb[0].mxu0 %v171
    %v318 = vpop.f32.mrb[0].mxu0
    %v319 = vadd.f32 %v130, %v318
    %v320 = vpop.f32.mrb[0].mxu0
    %v321 = vpop.f32.mrb[0].mxu0
    %v322 = vadd.f32 %v130, %v321
    %v323 = vpop.f32.mrb[0].mxu0
    %324 = vdwg.mxu0
    %v325 = vlaneseq
    %v326 = vand.u32 %v325, 127
    %vm327 = vcmp.lt.s32.totalorder %v326, 32
    %v328 = vsel %vm327, 1, 0
    %v329 = vcvt.s32.f32 %v328
    %v330 = vpack.c.bf16 %v266, %v263
    %v331 = vpack.c.bf16 %v274, %v271
    %v332 = vpack.c.bf16 %v282, %v279
    %v333 = vpack.c.bf16 %v290, %v287
    %v334 = vpack.c.bf16 %v298, %v295
    %v335 = vpack.c.bf16 %v306, %v303
    %v336 = vpack.c.bf16 %v314, %v311
    %v337 = vpack.c.bf16 %v322, %v319
    %v338 = vld [vmem:[#allocation4] sm:$0xf]
    %v339 = vld [vmem:[#allocation4 + $0x4] sm:$0xf]
    %v340 = vld [vmem:[#allocation4 + $0x8] sm:$0xf]
    %v341 = vld [vmem:[#allocation4 + $0xc] sm:$0xf]
    %v342 = vld [vmem:[#allocation4 + $0x10] sm:$0xf]
    %v343 = vld [vmem:[#allocation4 + $0x14] sm:$0xf]
    %v344 = vld [vmem:[#allocation4 + $0x18] sm:$0xf]
    %v345 = vld [vmem:[#allocation4 + $0x1c] sm:$0xf]
    %v346 = vld [vmem:[#allocation4 + $0x20] sm:$0xf]
    %v347 = vld [vmem:[#allocation4 + $0x24] sm:$0xf]
    %v348 = vld [vmem:[#allocation4 + $0x28] sm:$0xf]
    %v349 = vld [vmem:[#allocation4 + $0x2c] sm:$0xf]
    %v350 = vld [vmem:[#allocation4 + $0x30] sm:$0xf]
    %v351 = vld [vmem:[#allocation4 + $0x34] sm:$0xf]
    %v352 = vld [vmem:[#allocation4 + $0x38] sm:$0xf]
    %v353 = vld [vmem:[#allocation4 + $0x3c] sm:$0xf]
    %v370 = vunpack.c.l.b16 %v77
    %v371 = vunpack.c.l.b16 %v78
    %v372 = vunpack.c.l.b16 %v79
    %v373 = vunpack.c.l.b16 %v80
    %v374 = vunpack.c.l.b16 %v81
    %v375 = vunpack.c.l.b16 %v82
    %v376 = vunpack.c.l.b16 %v83
    %v377 = vunpack.c.l.b16 %v84
    %v378 = vunpack.c.l.b16 %v85
    %v379 = vunpack.c.l.b16 %v86
    %v380 = vunpack.c.l.b16 %v87
    %v381 = vunpack.c.l.b16 %v88
    %v382 = vunpack.c.l.b16 %v89
    %v383 = vunpack.c.l.b16 %v90
    %v384 = vunpack.c.l.b16 %v91
    %v385 = vunpack.c.l.b16 %v92
    %v386 = vpack.c.b16 %v371, %v370
    %v387 = vpack.c.b16 %v373, %v372
    %v388 = vpack.c.b16 %v375, %v374
    %v389 = vpack.c.b16 %v377, %v376
    %v390 = vpack.c.b16 %v379, %v378
    %v391 = vpack.c.b16 %v381, %v380
    %v392 = vpack.c.b16 %v383, %v382
    %v393 = vpack.c.b16 %v385, %v384
    %402 = vmatprep.subr.bf16.mxu0 0
    %403 = vmatpush1.bf16.msra.mxu0 %v330
    %404 = vmatprep.subr.bf16.mxu0 0
    %405 = vmatpush1.bf16.msra.mxu0 %v331
    %406 = vmatprep.subr.bf16.mxu0 0
    %407 = vmatpush1.bf16.msra.mxu0 %v332
    %408 = vmatprep.subr.bf16.mxu0 0
    %409 = vmatpush1.bf16.msra.mxu0 %v333
    %410 = vmatprep.subr.bf16.mxu0 0
    %411 = vmatpush1.bf16.msra.mxu0 %v334
    %412 = vmatprep.subr.bf16.mxu0 0
    %413 = vmatpush1.bf16.msra.mxu0 %v335
    %414 = vmatprep.subr.bf16.mxu0 0
    %415 = vmatpush1.bf16.msra.mxu0 %v336
    %416 = vmatprep.subr.bf16.mxu0 0
    %417 = vmatpush1.bf16.msra.mxu0 %v337
    %418 = vmatprep.subr.bf16.mxu0 0
    %419 = vmatpush1.bf16.msra.mxu0 0
    %420 = vmatprep.subr.bf16.mxu0 0
    %421 = vmatpush1.bf16.msra.mxu0 0
    %422 = vmatprep.subr.bf16.mxu0 0
    %423 = vmatpush1.bf16.msra.mxu0 0
    %424 = vmatprep.subr.bf16.mxu0 0
    %425 = vmatpush1.bf16.msra.mxu0 0
    %426 = vmatprep.subr.bf16.mxu0 0
    %427 = vmatpush1.bf16.msra.mxu0 0
    %428 = vmatprep.subr.bf16.mxu0 0
    %429 = vmatpush1.bf16.msra.mxu0 0
    %430 = vmatprep.subr.bf16.mxu0 0
    %431 = vmatpush1.bf16.msra.mxu0 0
    %432 = vmatprep.subr.bf16.mxu0 0
    %433 = vmatpush1.bf16.msra.mxu0 0
    %434 = vmatprep.mubr.bf16.mxu0 0
    %435 = vmatmul.mubr.bf16.gmra.mrb[0].mxu0 %v386
    %v436 = vpop.f32.mrb[0].mxu0
    %v437 = vadd.f32 0.0, %v436
    %v438 = vpop.f32.mrb[0].mxu0
    %v439 = vpop.f32.mrb[0].mxu0
    %v440 = vadd.f32 0.0, %v439
    %v441 = vpop.f32.mrb[0].mxu0
    %442 = vmatprep.mubr.bf16.mxu0 0
    %443 = vmatmul.mubr.bf16.gmra.mrb[0].mxu0 %v387
    %v444 = vpop.f32.mrb[0].mxu0
    %v445 = vadd.f32 0.0, %v444
    %v446 = vpop.f32.mrb[0].mxu0
    %v447 = vpop.f32.mrb[0].mxu0
    %v448 = vadd.f32 0.0, %v447
    %v449 = vpop.f32.mrb[0].mxu0
    %450 = vmatprep.mubr.bf16.mxu0 0
    %451 = vmatmul.mubr.bf16.gmra.mrb[0].mxu0 %v388
    %v452 = vpop.f32.mrb[0].mxu0
    %v453 = vadd.f32 0.0, %v452
    %v454 = vpop.f32.mrb[0].mxu0
    %v455 = vpop.f32.mrb[0].mxu0
    %v456 = vadd.f32 0.0, %v455
    %v457 = vpop.f32.mrb[0].mxu0
    %458 = vmatprep.mubr.bf16.mxu0 0
    %459 = vmatmul.mubr.bf16.gmra.mrb[0].mxu0 %v389
    %v460 = vpop.f32.mrb[0].mxu0
    %v461 = vadd.f32 0.0, %v460
    %v462 = vpop.f32.mrb[0].mxu0
    %v463 = vpop.f32.mrb[0].mxu0
    %v464 = vadd.f32 0.0, %v463
    %v465 = vpop.f32.mrb[0].mxu0
    %466 = vmatprep.mubr.bf16.mxu0 0
    %467 = vmatmul.mubr.bf16.gmra.mrb[0].mxu0 %v390
    %v468 = vpop.f32.mrb[0].mxu0
    %v469 = vadd.f32 0.0, %v468
    %v470 = vpop.f32.mrb[0].mxu0
    %v471 = vpop.f32.mrb[0].mxu0
    %v472 = vadd.f32 0.0, %v471
    %v473 = vpop.f32.mrb[0].mxu0
    %474 = vmatprep.mubr.bf16.mxu0 0
    %475 = vmatmul.mubr.bf16.gmra.mrb[0].mxu0 %v391
    %v476 = vpop.f32.mrb[0].mxu0
    %v477 = vadd.f32 0.0, %v476
    %v478 = vpop.f32.mrb[0].mxu0
    %v479 = vpop.f32.mrb[0].mxu0
    %v480 = vadd.f32 0.0, %v479
    %v481 = vpop.f32.mrb[0].mxu0
    %482 = vmatprep.mubr.bf16.mxu0 0
    %483 = vmatmul.mubr.bf16.gmra.mrb[0].mxu0 %v392
    %v484 = vpop.f32.mrb[0].mxu0
    %v485 = vadd.f32 0.0, %v484
    %v486 = vpop.f32.mrb[0].mxu0
    %v487 = vpop.f32.mrb[0].mxu0
    %v488 = vadd.f32 0.0, %v487
    %v489 = vpop.f32.mrb[0].mxu0
    %490 = vmatprep.mubr.bf16.mxu0 0
    %491 = vmatmul.mubr.bf16.gmra.mrb[0].mxu0 %v393
    %v492 = vpop.f32.mrb[0].mxu0
    %v493 = vadd.f32 0.0, %v492
    %v494 = vpop.f32.mrb[0].mxu0
    %v495 = vpop.f32.mrb[0].mxu0
    %v496 = vadd.f32 0.0, %v495
    %v497 = vpop.f32.mrb[0].mxu0
    %498 = vdwg.mxu0
    %v499 = vpack.c.bf16 %v440, %v437
    %v500 = vpack.c.bf16 %v448, %v445
    %v501 = vpack.c.bf16 %v456, %v453
    %v502 = vpack.c.bf16 %v464, %v461
    %v503 = vpack.c.bf16 %v472, %v469
    %v504 = vpack.c.bf16 %v480, %v477
    %v505 = vpack.c.bf16 %v488, %v485
    %v506 = vpack.c.bf16 %v496, %v493
    %s507 = scalar_lea.vmem [#allocation4], 64
    %v508 = vld [vmem:[%s507] sm:$0xf]
    %v509 = vld [vmem:[%s507 + $0x4] sm:$0xf]
    %v510 = vld [vmem:[%s507 + $0x8] sm:$0xf]
    %v511 = vld [vmem:[%s507 + $0xc] sm:$0xf]
    %v512 = vld [vmem:[%s507 + $0x10] sm:$0xf]
    %v513 = vld [vmem:[%s507 + $0x14] sm:$0xf]
    %v514 = vld [vmem:[%s507 + $0x18] sm:$0xf]
    %v515 = vld [vmem:[%s507 + $0x1c] sm:$0xf]
    %v516 = vld [vmem:[%s507 + $0x20] sm:$0xf]
    %v517 = vld [vmem:[%s507 + $0x24] sm:$0xf]
    %v518 = vld [vmem:[%s507 + $0x28] sm:$0xf]
    %v519 = vld [vmem:[%s507 + $0x2c] sm:$0xf]
    %v520 = vld [vmem:[%s507 + $0x30] sm:$0xf]
    %v521 = vld [vmem:[%s507 + $0x34] sm:$0xf]
    %v522 = vld [vmem:[%s507 + $0x38] sm:$0xf]
    %v523 = vld [vmem:[%s507 + $0x3c] sm:$0xf]
    %v540 = vunpack.c.l.b16 %v508
    %v541 = vunpack.c.l.b16 %v509
    %v542 = vunpack.c.l.b16 %v510
    %v543 = vunpack.c.l.b16 %v511
    %v544 = vunpack.c.l.b16 %v512
    %v545 = vunpack.c.l.b16 %v513
    %v546 = vunpack.c.l.b16 %v514
    %v547 = vunpack.c.l.b16 %v515
    %v548 = vunpack.c.l.b16 %v516
    %v549 = vunpack.c.l.b16 %v517
    %v550 = vunpack.c.l.b16 %v518
    %v551 = vunpack.c.l.b16 %v519
    %v552 = vunpack.c.l.b16 %v520
    %v553 = vunpack.c.l.b16 %v521
    %v554 = vunpack.c.l.b16 %v522
    %v555 = vunpack.c.l.b16 %v523
    %v556 = vpack.c.b16 %v541, %v540
    %v557 = vpack.c.b16 %v543, %v542
    %v558 = vpack.c.b16 %v545, %v544
    %v559 = vpack.c.b16 %v547, %v546
    %v560 = vpack.c.b16 %v549, %v548
    %v561 = vpack.c.b16 %v551, %v550
    %v562 = vpack.c.b16 %v553, %v552
    %v563 = vpack.c.b16 %v555, %v554
    %572 = vmatprep.subr.bf16.mxu0 0
    %573 = vmatpush1.bf16.msra.mxu0 %v556
    %574 = vmatprep.subr.bf16.mxu0 0
    %575 = vmatpush1.bf16.msra.mxu0 %v557
    %576 = vmatprep.subr.bf16.mxu0 0
    %577 = vmatpush1.bf16.msra.mxu0 %v558
    %578 = vmatprep.subr.bf16.mxu0 0
    %579 = vmatpush1.bf16.msra.mxu0 %v559
    %580 = vmatprep.subr.bf16.mxu0 0
    %581 = vmatpush1.bf16.msra.mxu0 %v560
    %582 = vmatprep.subr.bf16.mxu0 0
    %583 = vmatpush1.bf16.msra.mxu0 %v561
    %584 = vmatprep.subr.bf16.mxu0 0
    %585 = vmatpush1.bf16.msra.mxu0 %v562
    %586 = vmatprep.subr.bf16.mxu0 0
    %587 = vmatpush1.bf16.msra.mxu0 %v563
    %588 = vmatprep.subr.bf16.mxu0 0
    %589 = vmatpush1.bf16.msra.mxu0 0
    %590 = vmatprep.subr.bf16.mxu0 0
    %591 = vmatpush1.bf16.msra.mxu0 0
    %592 = vmatprep.subr.bf16.mxu0 0
    %593 = vmatpush1.bf16.msra.mxu0 0
    %594 = vmatprep.subr.bf16.mxu0 0
    %595 = vmatpush1.bf16.msra.mxu0 0
    %596 = vmatprep.subr.bf16.mxu0 0
    %597 = vmatpush1.bf16.msra.mxu0 0
    %598 = vmatprep.subr.bf16.mxu0 0
    %599 = vmatpush1.bf16.msra.mxu0 0
    %600 = vmatprep.subr.bf16.mxu0 0
    %601 = vmatpush1.bf16.msra.mxu0 0
    %602 = vmatprep.subr.bf16.mxu0 0
    %603 = vmatpush1.bf16.msra.mxu0 0
    %604 = vmatprep.mubr.bf16.mxu0 0
    %605 = vmatmul.mubr.bf16.gmra.mrb[0].mxu0 %v499
    %v606 = vpop.f32.mrb[0].mxu0
    %v607 = vadd.f32 0.0, %v606
    %v608 = vpop.f32.mrb[0].mxu0
    %v609 = vpop.f32.mrb[0].mxu0
    %v610 = vadd.f32 0.0, %v609
    %v611 = vpop.f32.mrb[0].mxu0
    %612 = vmatprep.mubr.bf16.mxu0 0
    %613 = vmatmul.mubr.bf16.gmra.mrb[0].mxu0 %v500
    %v614 = vpop.f32.mrb[0].mxu0
    %v615 = vadd.f32 0.0, %v614
    %v616 = vpop.f32.mrb[0].mxu0
    %v617 = vpop.f32.mrb[0].mxu0
    %v618 = vadd.f32 0.0, %v617
    %v619 = vpop.f32.mrb[0].mxu0
    %620 = vmatprep.mubr.bf16.mxu0 0
    %621 = vmatmul.mubr.bf16.gmra.mrb[0].mxu0 %v501
    %v622 = vpop.f32.mrb[0].mxu0
    %v623 = vadd.f32 0.0, %v622
    %v624 = vpop.f32.mrb[0].mxu0
    %v625 = vpop.f32.mrb[0].mxu0
    %v626 = vadd.f32 0.0, %v625
    %v627 = vpop.f32.mrb[0].mxu0
    %628 = vmatprep.mubr.bf16.mxu0 0
    %629 = vmatmul.mubr.bf16.gmra.mrb[0].mxu0 %v502
    %v630 = vpop.f32.mrb[0].mxu0
    %v631 = vadd.f32 0.0, %v630
    %v632 = vpop.f32.mrb[0].mxu0
    %v633 = vpop.f32.mrb[0].mxu0
    %v634 = vadd.f32 0.0, %v633
    %v635 = vpop.f32.mrb[0].mxu0
    %636 = vmatprep.mubr.bf16.mxu0 0
    %637 = vmatmul.mubr.bf16.gmra.mrb[0].mxu0 %v503
    %v638 = vpop.f32.mrb[0].mxu0
    %v639 = vadd.f32 0.0, %v638
    %v640 = vpop.f32.mrb[0].mxu0
    %v641 = vpop.f32.mrb[0].mxu0
    %v642 = vadd.f32 0.0, %v641
    %v643 = vpop.f32.mrb[0].mxu0
    %644 = vmatprep.mubr.bf16.mxu0 0
    %645 = vmatmul.mubr.bf16.gmra.mrb[0].mxu0 %v504
    %v646 = vpop.f32.mrb[0].mxu0
    %v647 = vadd.f32 0.0, %v646
    %v648 = vpop.f32.mrb[0].mxu0
    %v649 = vpop.f32.mrb[0].mxu0
    %v650 = vadd.f32 0.0, %v649
    %v651 = vpop.f32.mrb[0].mxu0
    %652 = vmatprep.mubr.bf16.mxu0 0
    %653 = vmatmul.mubr.bf16.gmra.mrb[0].mxu0 %v505
    %v654 = vpop.f32.mrb[0].mxu0
    %v655 = vadd.f32 0.0, %v654
    %v656 = vpop.f32.mrb[0].mxu0
    %v657 = vpop.f32.mrb[0].mxu0
    %v658 = vadd.f32 0.0, %v657
    %v659 = vpop.f32.mrb[0].mxu0
    %660 = vmatprep.mubr.bf16.mxu0 0
    %661 = vmatmul.mubr.bf16.gmra.mrb[0].mxu0 %v506
    %v662 = vpop.f32.mrb[0].mxu0
    %v663 = vadd.f32 0.0, %v662
    %v664 = vpop.f32.mrb[0].mxu0
    %v665 = vpop.f32.mrb[0].mxu0
    %v666 = vadd.f32 0.0, %v665
    %v667 = vpop.f32.mrb[0].mxu0
    %668 = vdwg.mxu0
    %v685 = vunpack.c.l.b16 %v338
    %v686 = vunpack.c.l.b16 %v339
    %v687 = vunpack.c.l.b16 %v340
    %v688 = vunpack.c.l.b16 %v341
    %v689 = vunpack.c.l.b16 %v342
    %v690 = vunpack.c.l.b16 %v343
    %v691 = vunpack.c.l.b16 %v344
    %v692 = vunpack.c.l.b16 %v345
    %v693 = vunpack.c.l.b16 %v346
    %v694 = vunpack.c.l.b16 %v347
    %v695 = vunpack.c.l.b16 %v348
    %v696 = vunpack.c.l.b16 %v349
    %v697 = vunpack.c.l.b16 %v350
    %v698 = vunpack.c.l.b16 %v351
    %v699 = vunpack.c.l.b16 %v352
    %v700 = vunpack.c.l.b16 %v353
    %v701 = vpack.c.b16 %v686, %v685
    %v702 = vpack.c.b16 %v688, %v687
    %v703 = vpack.c.b16 %v690, %v689
    %v704 = vpack.c.b16 %v692, %v691
    %v705 = vpack.c.b16 %v694, %v693
    %v706 = vpack.c.b16 %v696, %v695
    %v707 = vpack.c.b16 %v698, %v697
    %v708 = vpack.c.b16 %v700, %v699
    %717 = vmatprep.subr.bf16.mxu0 0
    %718 = vmatpush1.bf16.msra.mxu0 %v701
    %719 = vmatprep.subr.bf16.mxu0 0
    %720 = vmatpush1.bf16.msra.mxu0 %v702
    %721 = vmatprep.subr.bf16.mxu0 0
    %722 = vmatpush1.bf16.msra.mxu0 %v703
    %723 = vmatprep.subr.bf16.mxu0 0
    %724 = vmatpush1.bf16.msra.mxu0 %v704
    %725 = vmatprep.subr.bf16.mxu0 0
    %726 = vmatpush1.bf16.msra.mxu0 %v705
    %727 = vmatprep.subr.bf16.mxu0 0
    %728 = vmatpush1.bf16.msra.mxu0 %v706
    %729 = vmatprep.subr.bf16.mxu0 0
    %730 = vmatpush1.bf16.msra.mxu0 %v707
    %731 = vmatprep.subr.bf16.mxu0 0
    %732 = vmatpush1.bf16.msra.mxu0 %v708
    %733 = vmatprep.subr.bf16.mxu0 0
    %734 = vmatpush1.bf16.msra.mxu0 0
    %735 = vmatprep.subr.bf16.mxu0 0
    %736 = vmatpush1.bf16.msra.mxu0 0
    %737 = vmatprep.subr.bf16.mxu0 0
    %738 = vmatpush1.bf16.msra.mxu0 0
    %739 = vmatprep.subr.bf16.mxu0 0
    %740 = vmatpush1.bf16.msra.mxu0 0
    %741 = vmatprep.subr.bf16.mxu0 0
    %742 = vmatpush1.bf16.msra.mxu0 0
    %743 = vmatprep.subr.bf16.mxu0 0
    %744 = vmatpush1.bf16.msra.mxu0 0
    %745 = vmatprep.subr.bf16.mxu0 0
    %746 = vmatpush1.bf16.msra.mxu0 0
    %747 = vmatprep.subr.bf16.mxu0 0
    %748 = vmatpush1.bf16.msra.mxu0 0
    %749 = vmatprep.mubr.bf16.mxu0 0
    %750 = vmatmul.mubr.bf16.gmra.mrb[0].mxu0 %v330
    %v751 = vpop.f32.mrb[0].mxu0
    %v752 = vadd.f32 %v607, %v751
    %v753 = vpop.f32.mrb[0].mxu0
    %v754 = vpop.f32.mrb[0].mxu0
    %v755 = vadd.f32 %v610, %v754
    %v756 = vpop.f32.mrb[0].mxu0
    %757 = vmatprep.mubr.bf16.mxu0 0
    %758 = vmatmul.mubr.bf16.gmra.mrb[0].mxu0 %v331
    %v759 = vpop.f32.mrb[0].mxu0
    %v760 = vadd.f32 %v615, %v759
    %v761 = vpop.f32.mrb[0].mxu0
    %v762 = vpop.f32.mrb[0].mxu0
    %v763 = vadd.f32 %v618, %v762
    %v764 = vpop.f32.mrb[0].mxu0
    %765 = vmatprep.mubr.bf16.mxu0 0
    %766 = vmatmul.mubr.bf16.gmra.mrb[0].mxu0 %v332
    %v767 = vpop.f32.mrb[0].mxu0
    %v768 = vadd.f32 %v623, %v767
    %v769 = vpop.f32.mrb[0].mxu0
    %v770 = vpop.f32.mrb[0].mxu0
    %v771 = vadd.f32 %v626, %v770
    %v772 = vpop.f32.mrb[0].mxu0
    %773 = vmatprep.mubr.bf16.mxu0 0
    %774 = vmatmul.mubr.bf16.gmra.mrb[0].mxu0 %v333
    %v775 = vpop.f32.mrb[0].mxu0
    %v776 = vadd.f32 %v631, %v775
    %v777 = vpop.f32.mrb[0].mxu0
    %v778 = vpop.f32.mrb[0].mxu0
    %v779 = vadd.f32 %v634, %v778
    %v780 = vpop.f32.mrb[0].mxu0
    %781 = vmatprep.mubr.bf16.mxu0 0
    %782 = vmatmul.mubr.bf16.gmra.mrb[0].mxu0 %v334
    %v783 = vpop.f32.mrb[0].mxu0
    %v784 = vadd.f32 %v639, %v783
    %v785 = vpop.f32.mrb[0].mxu0
    %v786 = vpop.f32.mrb[0].mxu0
    %v787 = vadd.f32 %v642, %v786
    %v788 = vpop.f32.mrb[0].mxu0
    %789 = vmatprep.mubr.bf16.mxu0 0
    %790 = vmatmul.mubr.bf16.gmra.mrb[0].mxu0 %v335
    %v791 = vpop.f32.mrb[0].mxu0
    %v792 = vadd.f32 %v647, %v791
    %v793 = vpop.f32.mrb[0].mxu0
    %v794 = vpop.f32.mrb[0].mxu0
    %v795 = vadd.f32 %v650, %v794
    %v796 = vpop.f32.mrb[0].mxu0
    %797 = vmatprep.mubr.bf16.mxu0 0
    %798 = vmatmul.mubr.bf16.gmra.mrb[0].mxu0 %v336
    %v799 = vpop.f32.mrb[0].mxu0
    %v800 = vadd.f32 %v655, %v799
    %v801 = vpop.f32.mrb[0].mxu0
    %v802 = vpop.f32.mrb[0].mxu0
    %v803 = vadd.f32 %v658, %v802
    %v804 = vpop.f32.mrb[0].mxu0
    %805 = vmatprep.mubr.bf16.mxu0 0
    %806 = vmatmul.mubr.bf16.gmra.mrb[0].mxu0 %v337
    %v807 = vpop.f32.mrb[0].mxu0
    %v808 = vadd.f32 %v663, %v807
    %v809 = vpop.f32.mrb[0].mxu0
    %v810 = vpop.f32.mrb[0].mxu0
    %v811 = vadd.f32 %v666, %v810
    %v812 = vpop.f32.mrb[0].mxu0
    %813 = vdwg.mxu0
    %814 = vmatprep.subr.bf16.mxu0 0
    %815 = vmatpush1.bf16.msra.mxu0 %v499
    %816 = vmatprep.subr.bf16.mxu0 0
    %817 = vmatpush1.bf16.msra.mxu0 %v500
    %818 = vmatprep.subr.bf16.mxu0 0
    %819 = vmatpush1.bf16.msra.mxu0 %v501
    %820 = vmatprep.subr.bf16.mxu0 0
    %821 = vmatpush1.bf16.msra.mxu0 %v502
    %822 = vmatprep.subr.bf16.mxu0 0
    %823 = vmatpush1.bf16.msra.mxu0 %v503
    %824 = vmatprep.subr.bf16.mxu0 0
    %825 = vmatpush1.bf16.msra.mxu0 %v504
    %826 = vmatprep.subr.bf16.mxu0 0
    %827 = vmatpush1.bf16.msra.mxu0 %v505
    %828 = vmatprep.subr.bf16.mxu0 0
    %829 = vmatpush1.bf16.msra.mxu0 %v506
    %830 = vmatprep.subr.bf16.mxu0 0
    %831 = vmatpush1.bf16.msra.mxu0 0
    %832 = vmatprep.subr.bf16.mxu0 0
    %833 = vmatpush1.bf16.msra.mxu0 0
    %834 = vmatprep.subr.bf16.mxu0 0
    %835 = vmatpush1.bf16.msra.mxu0 0
    %836 = vmatprep.subr.bf16.mxu0 0
    %837 = vmatpush1.bf16.msra.mxu0 0
    %838 = vmatprep.subr.bf16.mxu0 0
    %839 = vmatpush1.bf16.msra.mxu0 0
    %840 = vmatprep.subr.bf16.mxu0 0
    %841 = vmatpush1.bf16.msra.mxu0 0
    %842 = vmatprep.subr.bf16.mxu0 0
    %843 = vmatpush1.bf16.msra.mxu0 0
    %844 = vmatprep.subr.bf16.mxu0 0
    %845 = vmatpush1.bf16.msra.mxu0 0
    %846 = vmatprep.mubr.bf16.mxu0 0
    %847 = vmatmul.mubr.bf16.gmra.mrb[0].mxu0 %v386
    %v848 = vpop.f32.mrb[0].mxu0
    %v849 = vadd.f32 0.0, %v848
    %v850 = vpop.f32.mrb[0].mxu0
    %v851 = vpop.f32.mrb[0].mxu0
    %v852 = vadd.f32 0.0, %v851
    %v853 = vpop.f32.mrb[0].mxu0
    %854 = vmatprep.mubr.bf16.mxu0 0
    %855 = vmatmul.mubr.bf16.gmra.mrb[0].mxu0 %v387
    %v856 = vpop.f32.mrb[0].mxu0
    %v857 = vadd.f32 0.0, %v856
    %v858 = vpop.f32.mrb[0].mxu0
    %v859 = vpop.f32.mrb[0].mxu0
    %v860 = vadd.f32 0.0, %v859
    %v861 = vpop.f32.mrb[0].mxu0
    %862 = vmatprep.mubr.bf16.mxu0 0
    %863 = vmatmul.mubr.bf16.gmra.mrb[0].mxu0 %v388
    %v864 = vpop.f32.mrb[0].mxu0
    %v865 = vadd.f32 0.0, %v864
    %v866 = vpop.f32.mrb[0].mxu0
    %v867 = vpop.f32.mrb[0].mxu0
    %v868 = vadd.f32 0.0, %v867
    %v869 = vpop.f32.mrb[0].mxu0
    %870 = vmatprep.mubr.bf16.mxu0 0
    %871 = vmatmul.mubr.bf16.gmra.mrb[0].mxu0 %v389
    %v872 = vpop.f32.mrb[0].mxu0
    %v873 = vadd.f32 0.0, %v872
    %v874 = vpop.f32.mrb[0].mxu0
    %v875 = vpop.f32.mrb[0].mxu0
    %v876 = vadd.f32 0.0, %v875
    %v877 = vpop.f32.mrb[0].mxu0
    %878 = vmatprep.mubr.bf16.mxu0 0
    %879 = vmatmul.mubr.bf16.gmra.mrb[0].mxu0 %v390
    %v880 = vpop.f32.mrb[0].mxu0
    %v881 = vadd.f32 0.0, %v880
    %v882 = vpop.f32.mrb[0].mxu0
    %v883 = vpop.f32.mrb[0].mxu0
    %v884 = vadd.f32 0.0, %v883
    %v885 = vpop.f32.mrb[0].mxu0
    %886 = vmatprep.mubr.bf16.mxu0 0
    %887 = vmatmul.mubr.bf16.gmra.mrb[0].mxu0 %v391
    %v888 = vpop.f32.mrb[0].mxu0
    %v889 = vadd.f32 0.0, %v888
    %v890 = vpop.f32.mrb[0].mxu0
    %v891 = vpop.f32.mrb[0].mxu0
    %v892 = vadd.f32 0.0, %v891
    %v893 = vpop.f32.mrb[0].mxu0
    %894 = vmatprep.mubr.bf16.mxu0 0
    %895 = vmatmul.mubr.bf16.gmra.mrb[0].mxu0 %v392
    %v896 = vpop.f32.mrb[0].mxu0
    %v897 = vadd.f32 0.0, %v896
    %v898 = vpop.f32.mrb[0].mxu0
    %v899 = vpop.f32.mrb[0].mxu0
    %v900 = vadd.f32 0.0, %v899
    %v901 = vpop.f32.mrb[0].mxu0
    %902 = vmatprep.mubr.bf16.mxu0 0
    %903 = vmatmul.mubr.bf16.gmra.mrb[0].mxu0 %v393
    %v904 = vpop.f32.mrb[0].mxu0
    %v905 = vadd.f32 0.0, %v904
    %v906 = vpop.f32.mrb[0].mxu0
    %v907 = vpop.f32.mrb[0].mxu0
    %v908 = vadd.f32 0.0, %v907
    %v909 = vpop.f32.mrb[0].mxu0
    %910 = vdwg.mxu0
    %v911 = vmul.f32 %v849, 2.0
    %v912 = vmul.f32 %v852, 2.0
    %v913 = vmul.f32 %v857, 2.0
    %v914 = vmul.f32 %v860, 2.0
    %v915 = vmul.f32 %v865, 2.0
    %v916 = vmul.f32 %v868, 2.0
    %v917 = vmul.f32 %v873, 2.0
    %v918 = vmul.f32 %v876, 2.0
    %v919 = vmul.f32 %v881, 2.0
    %v920 = vmul.f32 %v884, 2.0
    %v921 = vmul.f32 %v889, 2.0
    %v922 = vmul.f32 %v892, 2.0
    %v923 = vmul.f32 %v897, 2.0
    %v924 = vmul.f32 %v900, 2.0
    %v925 = vmul.f32 %v905, 2.0
    %v926 = vmul.f32 %v908, 2.0
    %v927 = vsub.f32 %v911, %v263
    %v928 = vsub.f32 %v912, %v266
    %v929 = vsub.f32 %v913, %v271
    %v930 = vsub.f32 %v914, %v274
    %v931 = vsub.f32 %v915, %v279
    %v932 = vsub.f32 %v916, %v282
    %v933 = vsub.f32 %v917, %v287
    %v934 = vsub.f32 %v918, %v290
    %v935 = vsub.f32 %v919, %v295
    %v936 = vsub.f32 %v920, %v298
    %v937 = vsub.f32 %v921, %v303
    %v938 = vsub.f32 %v922, %v306
    %v939 = vsub.f32 %v923, %v311
    %v940 = vsub.f32 %v924, %v314
    %v941 = vsub.f32 %v925, %v319
    %v942 = vsub.f32 %v926, %v322
    %v943 = vpack.c.bf16 %v928, %v927
    %v944 = vpack.c.bf16 %v930, %v929
    %v945 = vpack.c.bf16 %v932, %v931
    %v946 = vpack.c.bf16 %v934, %v933
    %v947 = vpack.c.bf16 %v936, %v935
    %v948 = vpack.c.bf16 %v938, %v937
    %v949 = vpack.c.bf16 %v940, %v939
    %v950 = vpack.c.bf16 %v942, %v941
    %s951 = scalar_lea.vmem [#allocation4], 128
    %v952 = vld [vmem:[%s951] sm:$0xf]
    %v953 = vld [vmem:[%s951 + $0x4] sm:$0xf]
    %v954 = vld [vmem:[%s951 + $0x8] sm:$0xf]
    %v955 = vld [vmem:[%s951 + $0xc] sm:$0xf]
    %v956 = vld [vmem:[%s951 + $0x10] sm:$0xf]
    %v957 = vld [vmem:[%s951 + $0x14] sm:$0xf]
    %v958 = vld [vmem:[%s951 + $0x18] sm:$0xf]
    %v959 = vld [vmem:[%s951 + $0x1c] sm:$0xf]
    %v960 = vld [vmem:[%s951 + $0x20] sm:$0xf]
    %v961 = vld [vmem:[%s951 + $0x24] sm:$0xf]
    %v962 = vld [vmem:[%s951 + $0x28] sm:$0xf]
    %v963 = vld [vmem:[%s951 + $0x2c] sm:$0xf]
    %v964 = vld [vmem:[%s951 + $0x30] sm:$0xf]
    %v965 = vld [vmem:[%s951 + $0x34] sm:$0xf]
    %v966 = vld [vmem:[%s951 + $0x38] sm:$0xf]
    %v967 = vld [vmem:[%s951 + $0x3c] sm:$0xf]
    %v984 = vunpack.c.l.b16 %v952
    %v985 = vunpack.c.l.b16 %v953
    %v986 = vunpack.c.l.b16 %v954
    %v987 = vunpack.c.l.b16 %v955
    %v988 = vunpack.c.l.b16 %v956
    %v989 = vunpack.c.l.b16 %v957
    %v990 = vunpack.c.l.b16 %v958
    %v991 = vunpack.c.l.b16 %v959
    %v992 = vunpack.c.l.b16 %v960
    %v993 = vunpack.c.l.b16 %v961
    %v994 = vunpack.c.l.b16 %v962
    %v995 = vunpack.c.l.b16 %v963
    %v996 = vunpack.c.l.b16 %v964
    %v997 = vunpack.c.l.b16 %v965
    %v998 = vunpack.c.l.b16 %v966
    %v999 = vunpack.c.l.b16 %v967
    %v1000 = vpack.c.b16 %v985, %v984
    %v1001 = vpack.c.b16 %v987, %v986
    %v1002 = vpack.c.b16 %v989, %v988
    %v1003 = vpack.c.b16 %v991, %v990
    %v1004 = vpack.c.b16 %v993, %v992
    %v1005 = vpack.c.b16 %v995, %v994
    %v1006 = vpack.c.b16 %v997, %v996
    %v1007 = vpack.c.b16 %v999, %v998
    %1016 = vmatprep.subr.bf16.mxu0 0
    %1017 = vmatpush1.bf16.msra.mxu0 %v1000
    %1018 = vmatprep.subr.bf16.mxu0 0
    %1019 = vmatpush1.bf16.msra.mxu0 %v1001
    %1020 = vmatprep.subr.bf16.mxu0 0
    %1021 = vmatpush1.bf16.msra.mxu0 %v1002
    %1022 = vmatprep.subr.bf16.mxu0 0
    %1023 = vmatpush1.bf16.msra.mxu0 %v1003
    %1024 = vmatprep.subr.bf16.mxu0 0
    %1025 = vmatpush1.bf16.msra.mxu0 %v1004
    %1026 = vmatprep.subr.bf16.mxu0 0
    %1027 = vmatpush1.bf16.msra.mxu0 %v1005
    %1028 = vmatprep.subr.bf16.mxu0 0
    %1029 = vmatpush1.bf16.msra.mxu0 %v1006
    %1030 = vmatprep.subr.bf16.mxu0 0
    %1031 = vmatpush1.bf16.msra.mxu0 %v1007
    %1032 = vmatprep.subr.bf16.mxu0 0
    %1033 = vmatpush1.bf16.msra.mxu0 0
    %1034 = vmatprep.subr.bf16.mxu0 0
    %1035 = vmatpush1.bf16.msra.mxu0 0
    %1036 = vmatprep.subr.bf16.mxu0 0
    %1037 = vmatpush1.bf16.msra.mxu0 0
    %1038 = vmatprep.subr.bf16.mxu0 0
    %1039 = vmatpush1.bf16.msra.mxu0 0
    %1040 = vmatprep.subr.bf16.mxu0 0
    %1041 = vmatpush1.bf16.msra.mxu0 0
    %1042 = vmatprep.subr.bf16.mxu0 0
    %1043 = vmatpush1.bf16.msra.mxu0 0
    %1044 = vmatprep.subr.bf16.mxu0 0
    %1045 = vmatpush1.bf16.msra.mxu0 0
    %1046 = vmatprep.subr.bf16.mxu0 0
    %1047 = vmatpush1.bf16.msra.mxu0 0
    %1048 = vmatprep.mubr.bf16.mxu0 0
    %1049 = vmatmul.mubr.bf16.gmra.mrb[0].mxu0 %v943
    %v1050 = vpop.f32.mrb[0].mxu0
    %v1051 = vadd.f32 0.0, %v1050
    %v1052 = vpop.f32.mrb[0].mxu0
    %v1053 = vpop.f32.mrb[0].mxu0
    %v1054 = vadd.f32 0.0, %v1053
    %v1055 = vpop.f32.mrb[0].mxu0
    %1056 = vmatprep.mubr.bf16.mxu0 0
    %1057 = vmatmul.mubr.bf16.gmra.mrb[0].mxu0 %v944
    %v1058 = vpop.f32.mrb[0].mxu0
    %v1059 = vadd.f32 0.0, %v1058
    %v1060 = vpop.f32.mrb[0].mxu0
    %v1061 = vpop.f32.mrb[0].mxu0
    %v1062 = vadd.f32 0.0, %v1061
    %v1063 = vpop.f32.mrb[0].mxu0
    %1064 = vmatprep.mubr.bf16.mxu0 0
    %1065 = vmatmul.mubr.bf16.gmra.mrb[0].mxu0 %v945
    %v1066 = vpop.f32.mrb[0].mxu0
    %v1067 = vadd.f32 0.0, %v1066
    %v1068 = vpop.f32.mrb[0].mxu0
    %v1069 = vpop.f32.mrb[0].mxu0
    %v1070 = vadd.f32 0.0, %v1069
    %v1071 = vpop.f32.mrb[0].mxu0
    %1072 = vmatprep.mubr.bf16.mxu0 0
    %1073 = vmatmul.mubr.bf16.gmra.mrb[0].mxu0 %v946
    %v1074 = vpop.f32.mrb[0].mxu0
    %v1075 = vadd.f32 0.0, %v1074
    %v1076 = vpop.f32.mrb[0].mxu0
    %v1077 = vpop.f32.mrb[0].mxu0
    %v1078 = vadd.f32 0.0, %v1077
    %v1079 = vpop.f32.mrb[0].mxu0
    %1080 = vmatprep.mubr.bf16.mxu0 0
    %1081 = vmatmul.mubr.bf16.gmra.mrb[0].mxu0 %v947
    %v1082 = vpop.f32.mrb[0].mxu0
    %v1083 = vadd.f32 0.0, %v1082
    %v1084 = vpop.f32.mrb[0].mxu0
    %v1085 = vpop.f32.mrb[0].mxu0
    %v1086 = vadd.f32 0.0, %v1085
    %v1087 = vpop.f32.mrb[0].mxu0
    %1088 = vmatprep.mubr.bf16.mxu0 0
    %1089 = vmatmul.mubr.bf16.gmra.mrb[0].mxu0 %v948
    %v1090 = vpop.f32.mrb[0].mxu0
    %v1091 = vadd.f32 0.0, %v1090
    %v1092 = vpop.f32.mrb[0].mxu0
    %v1093 = vpop.f32.mrb[0].mxu0
    %v1094 = vadd.f32 0.0, %v1093
    %v1095 = vpop.f32.mrb[0].mxu0
    %1096 = vmatprep.mubr.bf16.mxu0 0
    %1097 = vmatmul.mubr.bf16.gmra.mrb[0].mxu0 %v949
    %v1098 = vpop.f32.mrb[0].mxu0
    %v1099 = vadd.f32 0.0, %v1098
    %v1100 = vpop.f32.mrb[0].mxu0
    %v1101 = vpop.f32.mrb[0].mxu0
    %v1102 = vadd.f32 0.0, %v1101
    %v1103 = vpop.f32.mrb[0].mxu0
    %1104 = vmatprep.mubr.bf16.mxu0 0
    %1105 = vmatmul.mubr.bf16.gmra.mrb[0].mxu0 %v950
    %v1106 = vpop.f32.mrb[0].mxu0
    %v1107 = vadd.f32 0.0, %v1106
    %v1108 = vpop.f32.mrb[0].mxu0
    %v1109 = vpop.f32.mrb[0].mxu0
    %v1110 = vadd.f32 0.0, %v1109
    %v1111 = vpop.f32.mrb[0].mxu0
    %1112 = vdwg.mxu0
    %v1113 = vadd.f32 %v752, %v1051
    %v1114 = vadd.f32 %v755, %v1054
    %v1115 = vadd.f32 %v760, %v1059
    %v1116 = vadd.f32 %v763, %v1062
    %v1117 = vadd.f32 %v768, %v1067
    %v1118 = vadd.f32 %v771, %v1070
    %v1119 = vadd.f32 %v776, %v1075
    %v1120 = vadd.f32 %v779, %v1078
    %v1121 = vadd.f32 %v784, %v1083
    %v1122 = vadd.f32 %v787, %v1086
    %v1123 = vadd.f32 %v792, %v1091
    %v1124 = vadd.f32 %v795, %v1094
    %v1125 = vadd.f32 %v800, %v1099
    %v1126 = vadd.f32 %v803, %v1102
    %v1127 = vadd.f32 %v808, %v1107
    %v1128 = vadd.f32 %v811, %v1110
    %v1129 = vld [vmem:[%s5] sm:$0x1]
    %v1131 = vlaneseq
    %v1132 = vshrl.u32 %v1131, 7
    %v1133 = vsub.s32 0, %v1132
    %v1134 = vrot.slane %v1129, %v1133
    %v1136 = vadd.f32 %v1113, %v1134
    %v1137 = vadd.f32 %v1114, %v1134
    %v1138 = vadd.f32 %v1115, %v1134
    %v1139 = vadd.f32 %v1116, %v1134
    %v1140 = vadd.f32 %v1117, %v1134
    %v1141 = vadd.f32 %v1118, %v1134
    %v1142 = vadd.f32 %v1119, %v1134
    %v1143 = vadd.f32 %v1120, %v1134
    %v1144 = vadd.f32 %v1121, %v1134
    %v1145 = vadd.f32 %v1122, %v1134
    %v1146 = vadd.f32 %v1123, %v1134
    %v1147 = vadd.f32 %v1124, %v1134
    %v1148 = vadd.f32 %v1125, %v1134
    %v1149 = vadd.f32 %v1126, %v1134
    %v1150 = vadd.f32 %v1127, %v1134
    %v1151 = vadd.f32 %v1128, %v1134
    %v1152 = vmax.f32 %v1136, 0.0
    %v1153 = vmax.f32 %v1137, 0.0
    %v1154 = vmax.f32 %v1138, 0.0
    %v1155 = vmax.f32 %v1139, 0.0
    %v1156 = vmax.f32 %v1140, 0.0
    %v1157 = vmax.f32 %v1141, 0.0
    %v1158 = vmax.f32 %v1142, 0.0
    %v1159 = vmax.f32 %v1143, 0.0
    %v1160 = vmax.f32 %v1144, 0.0
    %v1161 = vmax.f32 %v1145, 0.0
    %v1162 = vmax.f32 %v1146, 0.0
    %v1163 = vmax.f32 %v1147, 0.0
    %v1164 = vmax.f32 %v1148, 0.0
    %v1165 = vmax.f32 %v1149, 0.0
    %v1166 = vmax.f32 %v1150, 0.0
    %v1167 = vmax.f32 %v1151, 0.0
    %v1168 = vadd.f32 %v1152, %v263
    %v1169 = vadd.f32 %v1153, %v266
    %v1170 = vadd.f32 %v1154, %v271
    %v1171 = vadd.f32 %v1155, %v274
    %v1172 = vadd.f32 %v1156, %v279
    %v1173 = vadd.f32 %v1157, %v282
    %v1174 = vadd.f32 %v1158, %v287
    %v1175 = vadd.f32 %v1159, %v290
    %v1176 = vadd.f32 %v1160, %v295
    %v1177 = vadd.f32 %v1161, %v298
    %v1178 = vadd.f32 %v1162, %v303
    %v1179 = vadd.f32 %v1163, %v306
    %v1180 = vadd.f32 %v1164, %v311
    %v1181 = vadd.f32 %v1165, %v314
    %v1182 = vadd.f32 %v1166, %v319
    %v1183 = vadd.f32 %v1167, %v322
    %1184 = vadd.xlane.f32.xlu0 %v1168
    %v1185 = vpop.xlane.xlu0 %1184
    %1186 = vadd.xlane.f32.xlu0 %v1169
    %v1187 = vpop.xlane.xlu0 %1186
    %1188 = vadd.xlane.f32.xlu0 %v1170
    %v1189 = vpop.xlane.xlu0 %1188
    %1190 = vadd.xlane.f32.xlu0 %v1171
    %v1191 = vpop.xlane.xlu0 %1190
    %1192 = vadd.xlane.f32.xlu0 %v1172
    %v1193 = vpop.xlane.xlu0 %1192
    %1194 = vadd.xlane.f32.xlu0 %v1173
    %v1195 = vpop.xlane.xlu0 %1194
    %1196 = vadd.xlane.f32.xlu0 %v1174
    %v1197 = vpop.xlane.xlu0 %1196
    %1198 = vadd.xlane.f32.xlu0 %v1175
    %v1199 = vpop.xlane.xlu0 %1198
    %1200 = vadd.xlane.f32.xlu0 %v1176
    %v1201 = vpop.xlane.xlu0 %1200
    %1202 = vadd.xlane.f32.xlu0 %v1177
    %v1203 = vpop.xlane.xlu0 %1202
    %1204 = vadd.xlane.f32.xlu0 %v1178
    %v1205 = vpop.xlane.xlu0 %1204
    %1206 = vadd.xlane.f32.xlu0 %v1179
    %v1207 = vpop.xlane.xlu0 %1206
    %1208 = vadd.xlane.f32.xlu0 %v1180
    %v1209 = vpop.xlane.xlu0 %1208
    %1210 = vadd.xlane.f32.xlu0 %v1181
    %v1211 = vpop.xlane.xlu0 %1210
    %1212 = vadd.xlane.f32.xlu0 %v1182
    %v1213 = vpop.xlane.xlu0 %1212
    %1214 = vadd.xlane.f32.xlu0 %v1183
    %v1215 = vpop.xlane.xlu0 %1214
    %v1216 = vmul.f32 %v1185, 0.03125
    %v1217 = vmul.f32 %v1187, 0.03125
    %v1218 = vmul.f32 %v1189, 0.03125
    %v1219 = vmul.f32 %v1191, 0.03125
    %v1220 = vmul.f32 %v1193, 0.03125
    %v1221 = vmul.f32 %v1195, 0.03125
    %v1222 = vmul.f32 %v1197, 0.03125
    %v1223 = vmul.f32 %v1199, 0.03125
    %v1224 = vmul.f32 %v1201, 0.03125
    %v1225 = vmul.f32 %v1203, 0.03125
    %v1226 = vmul.f32 %v1205, 0.03125
    %v1227 = vmul.f32 %v1207, 0.03125
    %v1228 = vmul.f32 %v1209, 0.03125
    %v1229 = vmul.f32 %v1211, 0.03125
    %v1230 = vmul.f32 %v1213, 0.03125
    %v1231 = vmul.f32 %v1215, 0.03125
    %v1232 = vsub.f32 %v1168, %v1216
    %v1233 = vsub.f32 %v1169, %v1217
    %v1234 = vsub.f32 %v1170, %v1218
    %v1235 = vsub.f32 %v1171, %v1219
    %v1236 = vsub.f32 %v1172, %v1220
    %v1237 = vsub.f32 %v1173, %v1221
    %v1238 = vsub.f32 %v1174, %v1222
    %v1239 = vsub.f32 %v1175, %v1223
    %v1240 = vsub.f32 %v1176, %v1224
    %v1241 = vsub.f32 %v1177, %v1225
    %v1242 = vsub.f32 %v1178, %v1226
    %v1243 = vsub.f32 %v1179, %v1227
    %v1244 = vsub.f32 %v1180, %v1228
    %v1245 = vsub.f32 %v1181, %v1229
    %v1246 = vsub.f32 %v1182, %v1230
    %v1247 = vsub.f32 %v1183, %v1231
    %v1248 = vmul.f32 %v1232, %v329
    %v1249 = vmul.f32 %v1233, %v329
    %v1250 = vmul.f32 %v1234, %v329
    %v1251 = vmul.f32 %v1235, %v329
    %v1252 = vmul.f32 %v1236, %v329
    %v1253 = vmul.f32 %v1237, %v329
    %v1254 = vmul.f32 %v1238, %v329
    %v1255 = vmul.f32 %v1239, %v329
    %v1256 = vmul.f32 %v1240, %v329
    %v1257 = vmul.f32 %v1241, %v329
    %v1258 = vmul.f32 %v1242, %v329
    %v1259 = vmul.f32 %v1243, %v329
    %v1260 = vmul.f32 %v1244, %v329
    %v1261 = vmul.f32 %v1245, %v329
    %v1262 = vmul.f32 %v1246, %v329
    %v1263 = vmul.f32 %v1247, %v329
    %v1264 = vmul.f32 %v1248, %v1248
    %v1265 = vmul.f32 %v1249, %v1249
    %v1266 = vmul.f32 %v1250, %v1250
    %v1267 = vmul.f32 %v1251, %v1251
    %v1268 = vmul.f32 %v1252, %v1252
    %v1269 = vmul.f32 %v1253, %v1253
    %v1270 = vmul.f32 %v1254, %v1254
    %v1271 = vmul.f32 %v1255, %v1255
    %v1272 = vmul.f32 %v1256, %v1256
    %v1273 = vmul.f32 %v1257, %v1257
    %v1274 = vmul.f32 %v1258, %v1258
    %v1275 = vmul.f32 %v1259, %v1259
    %v1276 = vmul.f32 %v1260, %v1260
    %v1277 = vmul.f32 %v1261, %v1261
    %v1278 = vmul.f32 %v1262, %v1262
    %v1279 = vmul.f32 %v1263, %v1263
    %1280 = vadd.xlane.f32.xlu0 %v1264
    %v1281 = vpop.xlane.xlu0 %1280
    %1282 = vadd.xlane.f32.xlu0 %v1265
    %v1283 = vpop.xlane.xlu0 %1282
    %1284 = vadd.xlane.f32.xlu0 %v1266
    %v1285 = vpop.xlane.xlu0 %1284
    %1286 = vadd.xlane.f32.xlu0 %v1267
    %v1287 = vpop.xlane.xlu0 %1286
    %1288 = vadd.xlane.f32.xlu0 %v1268
    %v1289 = vpop.xlane.xlu0 %1288
    %1290 = vadd.xlane.f32.xlu0 %v1269
    %v1291 = vpop.xlane.xlu0 %1290
    %1292 = vadd.xlane.f32.xlu0 %v1270
    %v1293 = vpop.xlane.xlu0 %1292
    %1294 = vadd.xlane.f32.xlu0 %v1271
    %v1295 = vpop.xlane.xlu0 %1294
    %1296 = vadd.xlane.f32.xlu0 %v1272
    %v1297 = vpop.xlane.xlu0 %1296
    %1298 = vadd.xlane.f32.xlu0 %v1273
    %v1299 = vpop.xlane.xlu0 %1298
    %1300 = vadd.xlane.f32.xlu0 %v1274
    %v1301 = vpop.xlane.xlu0 %1300
    %1302 = vadd.xlane.f32.xlu0 %v1275
    %v1303 = vpop.xlane.xlu0 %1302
    %1304 = vadd.xlane.f32.xlu0 %v1276
    %v1305 = vpop.xlane.xlu0 %1304
    %1306 = vadd.xlane.f32.xlu0 %v1277
    %v1307 = vpop.xlane.xlu0 %1306
    %1308 = vadd.xlane.f32.xlu0 %v1278
    %v1309 = vpop.xlane.xlu0 %1308
    %1310 = vadd.xlane.f32.xlu0 %v1279
    %v1311 = vpop.xlane.xlu0 %1310
    %v1312 = vmul.f32 %v1281, 0.03125
    %v1313 = vmul.f32 %v1283, 0.03125
    %v1314 = vmul.f32 %v1285, 0.03125
    %v1315 = vmul.f32 %v1287, 0.03125
    %v1316 = vmul.f32 %v1289, 0.03125
    %v1317 = vmul.f32 %v1291, 0.03125
    %v1318 = vmul.f32 %v1293, 0.03125
    %v1319 = vmul.f32 %v1295, 0.03125
    %v1320 = vmul.f32 %v1297, 0.03125
    %v1321 = vmul.f32 %v1299, 0.03125
    %v1322 = vmul.f32 %v1301, 0.03125
    %v1323 = vmul.f32 %v1303, 0.03125
    %v1324 = vmul.f32 %v1305, 0.03125
    %v1325 = vmul.f32 %v1307, 0.03125
    %v1326 = vmul.f32 %v1309, 0.03125
    %v1327 = vmul.f32 %v1311, 0.03125
    %v1328 = vadd.f32 %v1312, 1e-05
    %v1329 = vadd.f32 %v1313, 1e-05
    %v1330 = vadd.f32 %v1314, 1e-05
    %v1331 = vadd.f32 %v1315, 1e-05
    %v1332 = vadd.f32 %v1316, 1e-05
    %v1333 = vadd.f32 %v1317, 1e-05
    %v1334 = vadd.f32 %v1318, 1e-05
    %v1335 = vadd.f32 %v1319, 1e-05
    %v1336 = vadd.f32 %v1320, 1e-05
    %v1337 = vadd.f32 %v1321, 1e-05
    %v1338 = vadd.f32 %v1322, 1e-05
    %v1339 = vadd.f32 %v1323, 1e-05
    %v1340 = vadd.f32 %v1324, 1e-05
    %v1341 = vadd.f32 %v1325, 1e-05
    %v1342 = vadd.f32 %v1326, 1e-05
    %v1343 = vadd.f32 %v1327, 1e-05
    %v1344 = vrsqrt.pop %v1328
    %v1345 = vrsqrt.pop %v1329
    %v1346 = vrsqrt.pop %v1330
    %v1347 = vrsqrt.pop %v1331
    %v1348 = vrsqrt.pop %v1332
    %v1349 = vrsqrt.pop %v1333
    %v1350 = vrsqrt.pop %v1334
    %v1351 = vrsqrt.pop %v1335
    %v1352 = vrsqrt.pop %v1336
    %v1353 = vrsqrt.pop %v1337
    %v1354 = vrsqrt.pop %v1338
    %v1355 = vrsqrt.pop %v1339
    %v1356 = vrsqrt.pop %v1340
    %v1357 = vrsqrt.pop %v1341
    %v1358 = vrsqrt.pop %v1342
    %v1359 = vrsqrt.pop %v1343
    %v1360 = vmul.f32 %v1248, %v1344
    %v1361 = vmul.f32 %v1249, %v1345
    %v1362 = vmul.f32 %v1250, %v1346
    %v1363 = vmul.f32 %v1251, %v1347
    %v1364 = vmul.f32 %v1252, %v1348
    %v1365 = vmul.f32 %v1253, %v1349
    %v1366 = vmul.f32 %v1254, %v1350
    %v1367 = vmul.f32 %v1255, %v1351
    %v1368 = vmul.f32 %v1256, %v1352
    %v1369 = vmul.f32 %v1257, %v1353
    %v1370 = vmul.f32 %v1258, %v1354
    %v1371 = vmul.f32 %v1259, %v1355
    %v1372 = vmul.f32 %v1260, %v1356
    %v1373 = vmul.f32 %v1261, %v1357
    %v1374 = vmul.f32 %v1262, %v1358
    %v1375 = vmul.f32 %v1263, %v1359
    %v1376 = vld [vmem:[%s6] sm:$0x1]
    %v1378 = vlaneseq
    %v1379 = vshrl.u32 %v1378, 7
    %v1380 = vsub.s32 0, %v1379
    %v1381 = vrot.slane %v1376, %v1380
    %v1383 = vmul.f32 %v1360, %v1381
    %v1384 = vmul.f32 %v1361, %v1381
    %v1385 = vmul.f32 %v1362, %v1381
    %v1386 = vmul.f32 %v1363, %v1381
    %v1387 = vmul.f32 %v1364, %v1381
    %v1388 = vmul.f32 %v1365, %v1381
    %v1389 = vmul.f32 %v1366, %v1381
    %v1390 = vmul.f32 %v1367, %v1381
    %v1391 = vmul.f32 %v1368, %v1381
    %v1392 = vmul.f32 %v1369, %v1381
    %v1393 = vmul.f32 %v1370, %v1381
    %v1394 = vmul.f32 %v1371, %v1381
    %v1395 = vmul.f32 %v1372, %v1381
    %v1396 = vmul.f32 %v1373, %v1381
    %v1397 = vmul.f32 %v1374, %v1381
    %v1398 = vmul.f32 %v1375, %v1381
    %v1399 = vld [vmem:[%s7] sm:$0x1]
    %v1401 = vlaneseq
    %v1402 = vshrl.u32 %v1401, 7
    %v1403 = vsub.s32 0, %v1402
    %v1404 = vrot.slane %v1399, %v1403
    %v1406 = vadd.f32 %v1383, %v1404
    %v1407 = vadd.f32 %v1384, %v1404
    %v1408 = vadd.f32 %v1385, %v1404
    %v1409 = vadd.f32 %v1386, %v1404
    %v1410 = vadd.f32 %v1387, %v1404
    %v1411 = vadd.f32 %v1388, %v1404
    %v1412 = vadd.f32 %v1389, %v1404
    %v1413 = vadd.f32 %v1390, %v1404
    %v1414 = vadd.f32 %v1391, %v1404
    %v1415 = vadd.f32 %v1392, %v1404
    %v1416 = vadd.f32 %v1393, %v1404
    %v1417 = vadd.f32 %v1394, %v1404
    %v1418 = vadd.f32 %v1395, %v1404
    %v1419 = vadd.f32 %v1396, %v1404
    %v1420 = vadd.f32 %v1397, %v1404
    %v1421 = vadd.f32 %v1398, %v1404
    %v1422 = vpack.c.bf16 %v1407, %v1406
    %v1423 = vpack.c.bf16 %v1409, %v1408
    %v1424 = vpack.c.bf16 %v1411, %v1410
    %v1425 = vpack.c.bf16 %v1413, %v1412
    %v1426 = vpack.c.bf16 %v1415, %v1414
    %v1427 = vpack.c.bf16 %v1417, %v1416
    %v1428 = vpack.c.bf16 %v1419, %v1418
    %v1429 = vpack.c.bf16 %v1421, %v1420
    %s1430 = scalar_lea.vmem [#allocation4], 192
    %v1431 = vld [vmem:[%s1430] sm:$0xf]
    %v1432 = vld [vmem:[%s1430 + $0x4] sm:$0xf]
    %v1433 = vld [vmem:[%s1430 + $0x8] sm:$0xf]
    %v1434 = vld [vmem:[%s1430 + $0xc] sm:$0xf]
    %v1435 = vld [vmem:[%s1430 + $0x10] sm:$0xf]
    %v1436 = vld [vmem:[%s1430 + $0x14] sm:$0xf]
    %v1437 = vld [vmem:[%s1430 + $0x18] sm:$0xf]
    %v1438 = vld [vmem:[%s1430 + $0x1c] sm:$0xf]
    %v1439 = vld [vmem:[%s1430 + $0x20] sm:$0xf]
    %v1440 = vld [vmem:[%s1430 + $0x24] sm:$0xf]
    %v1441 = vld [vmem:[%s1430 + $0x28] sm:$0xf]
    %v1442 = vld [vmem:[%s1430 + $0x2c] sm:$0xf]
    %v1443 = vld [vmem:[%s1430 + $0x30] sm:$0xf]
    %v1444 = vld [vmem:[%s1430 + $0x34] sm:$0xf]
    %v1445 = vld [vmem:[%s1430 + $0x38] sm:$0xf]
    %v1446 = vld [vmem:[%s1430 + $0x3c] sm:$0xf]
    %1447 = vmatprep.subr.bf16.mxu0 0
    %1448 = vmatpush1.bf16.msra.mxu0 %v1422
    %1449 = vmatprep.subr.bf16.mxu0 0
    %1450 = vmatpush1.bf16.msra.mxu0 %v1423
    %1451 = vmatprep.subr.bf16.mxu0 0
    %1452 = vmatpush1.bf16.msra.mxu0 %v1424
    %1453 = vmatprep.subr.bf16.mxu0 0
    %1454 = vmatpush1.bf16.msra.mxu0 %v1425
    %1455 = vmatprep.subr.bf16.mxu0 0
    %1456 = vmatpush1.bf16.msra.mxu0 %v1426
    %1457 = vmatprep.subr.bf16.mxu0 0
    %1458 = vmatpush1.bf16.msra.mxu0 %v1427
    %1459 = vmatprep.subr.bf16.mxu0 0
    %1460 = vmatpush1.bf16.msra.mxu0 %v1428
    %1461 = vmatprep.subr.bf16.mxu0 0
    %1462 = vmatpush1.bf16.msra.mxu0 %v1429
    %1463 = vmatprep.subr.bf16.mxu0 0
    %1464 = vmatpush1.bf16.msra.mxu0 0
    %1465 = vmatprep.subr.bf16.mxu0 0
    %1466 = vmatpush1.bf16.msra.mxu0 0
    %1467 = vmatprep.subr.bf16.mxu0 0
    %1468 = vmatpush1.bf16.msra.mxu0 0
    %1469 = vmatprep.subr.bf16.mxu0 0
    %1470 = vmatpush1.bf16.msra.mxu0 0
    %1471 = vmatprep.subr.bf16.mxu0 0
    %1472 = vmatpush1.bf16.msra.mxu0 0
    %1473 = vmatprep.subr.bf16.mxu0 0
    %1474 = vmatpush1.bf16.msra.mxu0 0
    %1475 = vmatprep.subr.bf16.mxu0 0
    %1476 = vmatpush1.bf16.msra.mxu0 0
    %1477 = vmatprep.subr.bf16.mxu0 0
    %1478 = vmatpush1.bf16.msra.mxu0 0
    %1479 = vmatprep.mubr.bf16.mxu0 0
    %1480 = vmatmul.mubr.bf16.gmra.mrb[0].mxu0 %v386
    %v1481 = vpop.f32.mrb[0].mxu0
    %v1482 = vadd.f32 0.0, %v1481
    %v1483 = vpop.f32.mrb[0].mxu0
    %v1484 = vpop.f32.mrb[0].mxu0
    %v1485 = vadd.f32 0.0, %v1484
    %v1486 = vpop.f32.mrb[0].mxu0
    %1487 = vmatprep.mubr.bf16.mxu0 0
    %1488 = vmatmul.mubr.bf16.gmra.mrb[0].mxu0 %v387
    %v1489 = vpop.f32.mrb[0].mxu0
    %v1490 = vadd.f32 0.0, %v1489
    %v1491 = vpop.f32.mrb[0].mxu0
    %v1492 = vpop.f32.mrb[0].mxu0
    %v1493 = vadd.f32 0.0, %v1492
    %v1494 = vpop.f32.mrb[0].mxu0
    %1495 = vmatprep.mubr.bf16.mxu0 0
    %1496 = vmatmul.mubr.bf16.gmra.mrb[0].mxu0 %v388
    %v1497 = vpop.f32.mrb[0].mxu0
    %v1498 = vadd.f32 0.0, %v1497
    %v1499 = vpop.f32.mrb[0].mxu0
    %v1500 = vpop.f32.mrb[0].mxu0
    %v1501 = vadd.f32 0.0, %v1500
    %v1502 = vpop.f32.mrb[0].mxu0
    %1503 = vmatprep.mubr.bf16.mxu0 0
    %1504 = vmatmul.mubr.bf16.gmra.mrb[0].mxu0 %v389
    %v1505 = vpop.f32.mrb[0].mxu0
    %v1506 = vadd.f32 0.0, %v1505
    %v1507 = vpop.f32.mrb[0].mxu0
    %v1508 = vpop.f32.mrb[0].mxu0
    %v1509 = vadd.f32 0.0, %v1508
    %v1510 = vpop.f32.mrb[0].mxu0
    %1511 = vmatprep.mubr.bf16.mxu0 0
    %1512 = vmatmul.mubr.bf16.gmra.mrb[0].mxu0 %v390
    %v1513 = vpop.f32.mrb[0].mxu0
    %v1514 = vadd.f32 0.0, %v1513
    %v1515 = vpop.f32.mrb[0].mxu0
    %v1516 = vpop.f32.mrb[0].mxu0
    %v1517 = vadd.f32 0.0, %v1516
    %v1518 = vpop.f32.mrb[0].mxu0
    %1519 = vmatprep.mubr.bf16.mxu0 0
    %1520 = vmatmul.mubr.bf16.gmra.mrb[0].mxu0 %v391
    %v1521 = vpop.f32.mrb[0].mxu0
    %v1522 = vadd.f32 0.0, %v1521
    %v1523 = vpop.f32.mrb[0].mxu0
    %v1524 = vpop.f32.mrb[0].mxu0
    %v1525 = vadd.f32 0.0, %v1524
    %v1526 = vpop.f32.mrb[0].mxu0
    %1527 = vmatprep.mubr.bf16.mxu0 0
    %1528 = vmatmul.mubr.bf16.gmra.mrb[0].mxu0 %v392
    %v1529 = vpop.f32.mrb[0].mxu0
    %v1530 = vadd.f32 0.0, %v1529
    %v1531 = vpop.f32.mrb[0].mxu0
    %v1532 = vpop.f32.mrb[0].mxu0
    %v1533 = vadd.f32 0.0, %v1532
    %v1534 = vpop.f32.mrb[0].mxu0
    %1535 = vmatprep.mubr.bf16.mxu0 0
    %1536 = vmatmul.mubr.bf16.gmra.mrb[0].mxu0 %v393
    %v1537 = vpop.f32.mrb[0].mxu0
    %v1538 = vadd.f32 0.0, %v1537
    %v1539 = vpop.f32.mrb[0].mxu0
    %v1540 = vpop.f32.mrb[0].mxu0
    %v1541 = vadd.f32 0.0, %v1540
    %v1542 = vpop.f32.mrb[0].mxu0
    %1543 = vdwg.mxu0
    %v1544 = vpack.c.bf16 %v1485, %v1482
    %v1545 = vpack.c.bf16 %v1493, %v1490
    %v1546 = vpack.c.bf16 %v1501, %v1498
    %v1547 = vpack.c.bf16 %v1509, %v1506
    %v1548 = vpack.c.bf16 %v1517, %v1514
    %v1549 = vpack.c.bf16 %v1525, %v1522
    %v1550 = vpack.c.bf16 %v1533, %v1530
    %v1551 = vpack.c.bf16 %v1541, %v1538
    %s1552 = scalar_lea.vmem [#allocation4], 256
    %v1553 = vld [vmem:[%s1552] sm:$0xf]
    %v1554 = vld [vmem:[%s1552 + $0x4] sm:$0xf]
    %v1555 = vld [vmem:[%s1552 + $0x8] sm:$0xf]
    %v1556 = vld [vmem:[%s1552 + $0xc] sm:$0xf]
    %v1557 = vld [vmem:[%s1552 + $0x10] sm:$0xf]
    %v1558 = vld [vmem:[%s1552 + $0x14] sm:$0xf]
    %v1559 = vld [vmem:[%s1552 + $0x18] sm:$0xf]
    %v1560 = vld [vmem:[%s1552 + $0x1c] sm:$0xf]
    %v1561 = vld [vmem:[%s1552 + $0x20] sm:$0xf]
    %v1562 = vld [vmem:[%s1552 + $0x24] sm:$0xf]
    %v1563 = vld [vmem:[%s1552 + $0x28] sm:$0xf]
    %v1564 = vld [vmem:[%s1552 + $0x2c] sm:$0xf]
    %v1565 = vld [vmem:[%s1552 + $0x30] sm:$0xf]
    %v1566 = vld [vmem:[%s1552 + $0x34] sm:$0xf]
    %v1567 = vld [vmem:[%s1552 + $0x38] sm:$0xf]
    %v1568 = vld [vmem:[%s1552 + $0x3c] sm:$0xf]
    %v1585 = vunpack.c.l.b16 %v1553
    %v1586 = vunpack.c.l.b16 %v1554
    %v1587 = vunpack.c.l.b16 %v1555
    %v1588 = vunpack.c.l.b16 %v1556
    %v1589 = vunpack.c.l.b16 %v1557
    %v1590 = vunpack.c.l.b16 %v1558
    %v1591 = vunpack.c.l.b16 %v1559
    %v1592 = vunpack.c.l.b16 %v1560
    %v1593 = vunpack.c.l.b16 %v1561
    %v1594 = vunpack.c.l.b16 %v1562
    %v1595 = vunpack.c.l.b16 %v1563
    %v1596 = vunpack.c.l.b16 %v1564
    %v1597 = vunpack.c.l.b16 %v1565
    %v1598 = vunpack.c.l.b16 %v1566
    %v1599 = vunpack.c.l.b16 %v1567
    %v1600 = vunpack.c.l.b16 %v1568
    %v1601 = vpack.c.b16 %v1586, %v1585
    %v1602 = vpack.c.b16 %v1588, %v1587
    %v1603 = vpack.c.b16 %v1590, %v1589
    %v1604 = vpack.c.b16 %v1592, %v1591
    %v1605 = vpack.c.b16 %v1594, %v1593
    %v1606 = vpack.c.b16 %v1596, %v1595
    %v1607 = vpack.c.b16 %v1598, %v1597
    %v1608 = vpack.c.b16 %v1600, %v1599
    %1617 = vmatprep.subr.bf16.mxu0 0
    %1618 = vmatpush1.bf16.msra.mxu0 %v1601
    %1619 = vmatprep.subr.bf16.mxu0 0
    %1620 = vmatpush1.bf16.msra.mxu0 %v1602
    %1621 = vmatprep.subr.bf16.mxu0 0
    %1622 = vmatpush1.bf16.msra.mxu0 %v1603
    %1623 = vmatprep.subr.bf16.mxu0 0
    %1624 = vmatpush1.bf16.msra.mxu0 %v1604
    %1625 = vmatprep.subr.bf16.mxu0 0
    %1626 = vmatpush1.bf16.msra.mxu0 %v1605
    %1627 = vmatprep.subr.bf16.mxu0 0
    %1628 = vmatpush1.bf16.msra.mxu0 %v1606
    %1629 = vmatprep.subr.bf16.mxu0 0
    %1630 = vmatpush1.bf16.msra.mxu0 %v1607
    %1631 = vmatprep.subr.bf16.mxu0 0
    %1632 = vmatpush1.bf16.msra.mxu0 %v1608
    %1633 = vmatprep.subr.bf16.mxu0 0
    %1634 = vmatpush1.bf16.msra.mxu0 0
    %1635 = vmatprep.subr.bf16.mxu0 0
    %1636 = vmatpush1.bf16.msra.mxu0 0
    %1637 = vmatprep.subr.bf16.mxu0 0
    %1638 = vmatpush1.bf16.msra.mxu0 0
    %1639 = vmatprep.subr.bf16.mxu0 0
    %1640 = vmatpush1.bf16.msra.mxu0 0
    %1641 = vmatprep.subr.bf16.mxu0 0
    %1642 = vmatpush1.bf16.msra.mxu0 0
    %1643 = vmatprep.subr.bf16.mxu0 0
    %1644 = vmatpush1.bf16.msra.mxu0 0
    %1645 = vmatprep.subr.bf16.mxu0 0
    %1646 = vmatpush1.bf16.msra.mxu0 0
    %1647 = vmatprep.subr.bf16.mxu0 0
    %1648 = vmatpush1.bf16.msra.mxu0 0
    %1649 = vmatprep.mubr.bf16.mxu0 0
    %1650 = vmatmul.mubr.bf16.gmra.mrb[0].mxu0 %v1544
    %v1651 = vpop.f32.mrb[0].mxu0
    %v1652 = vadd.f32 0.0, %v1651
    %v1653 = vpop.f32.mrb[0].mxu0
    %v1654 = vpop.f32.mrb[0].mxu0
    %v1655 = vadd.f32 0.0, %v1654
    %v1656 = vpop.f32.mrb[0].mxu0
    %1657 = vmatprep.mubr.bf16.mxu0 0
    %1658 = vmatmul.mubr.bf16.gmra.mrb[0].mxu0 %v1545
    %v1659 = vpop.f32.mrb[0].mxu0
    %v1660 = vadd.f32 0.0, %v1659
    %v1661 = vpop.f32.mrb[0].mxu0
    %v1662 = vpop.f32.mrb[0].mxu0
    %v1663 = vadd.f32 0.0, %v1662
    %v1664 = vpop.f32.mrb[0].mxu0
    %1665 = vmatprep.mubr.bf16.mxu0 0
    %1666 = vmatmul.mubr.bf16.gmra.mrb[0].mxu0 %v1546
    %v1667 = vpop.f32.mrb[0].mxu0
    %v1668 = vadd.f32 0.0, %v1667
    %v1669 = vpop.f32.mrb[0].mxu0
    %v1670 = vpop.f32.mrb[0].mxu0
    %v1671 = vadd.f32 0.0, %v1670
    %v1672 = vpop.f32.mrb[0].mxu0
    %1673 = vmatprep.mubr.bf16.mxu0 0
    %1674 = vmatmul.mubr.bf16.gmra.mrb[0].mxu0 %v1547
    %v1675 = vpop.f32.mrb[0].mxu0
    %v1676 = vadd.f32 0.0, %v1675
    %v1677 = vpop.f32.mrb[0].mxu0
    %v1678 = vpop.f32.mrb[0].mxu0
    %v1679 = vadd.f32 0.0, %v1678
    %v1680 = vpop.f32.mrb[0].mxu0
    %1681 = vmatprep.mubr.bf16.mxu0 0
    %1682 = vmatmul.mubr.bf16.gmra.mrb[0].mxu0 %v1548
    %v1683 = vpop.f32.mrb[0].mxu0
    %v1684 = vadd.f32 0.0, %v1683
    %v1685 = vpop.f32.mrb[0].mxu0
    %v1686 = vpop.f32.mrb[0].mxu0
    %v1687 = vadd.f32 0.0, %v1686
    %v1688 = vpop.f32.mrb[0].mxu0
    %1689 = vmatprep.mubr.bf16.mxu0 0
    %1690 = vmatmul.mubr.bf16.gmra.mrb[0].mxu0 %v1549
    %v1691 = vpop.f32.mrb[0].mxu0
    %v1692 = vadd.f32 0.0, %v1691
    %v1693 = vpop.f32.mrb[0].mxu0
    %v1694 = vpop.f32.mrb[0].mxu0
    %v1695 = vadd.f32 0.0, %v1694
    %v1696 = vpop.f32.mrb[0].mxu0
    %1697 = vmatprep.mubr.bf16.mxu0 0
    %1698 = vmatmul.mubr.bf16.gmra.mrb[0].mxu0 %v1550
    %v1699 = vpop.f32.mrb[0].mxu0
    %v1700 = vadd.f32 0.0, %v1699
    %v1701 = vpop.f32.mrb[0].mxu0
    %v1702 = vpop.f32.mrb[0].mxu0
    %v1703 = vadd.f32 0.0, %v1702
    %v1704 = vpop.f32.mrb[0].mxu0
    %1705 = vmatprep.mubr.bf16.mxu0 0
    %1706 = vmatmul.mubr.bf16.gmra.mrb[0].mxu0 %v1551
    %v1707 = vpop.f32.mrb[0].mxu0
    %v1708 = vadd.f32 0.0, %v1707
    %v1709 = vpop.f32.mrb[0].mxu0
    %v1710 = vpop.f32.mrb[0].mxu0
    %v1711 = vadd.f32 0.0, %v1710
    %v1712 = vpop.f32.mrb[0].mxu0
    %1713 = vdwg.mxu0
    %v1730 = vunpack.c.l.b16 %v1431
    %v1731 = vunpack.c.l.b16 %v1432
    %v1732 = vunpack.c.l.b16 %v1433
    %v1733 = vunpack.c.l.b16 %v1434
    %v1734 = vunpack.c.l.b16 %v1435
    %v1735 = vunpack.c.l.b16 %v1436
    %v1736 = vunpack.c.l.b16 %v1437
    %v1737 = vunpack.c.l.b16 %v1438
    %v1738 = vunpack.c.l.b16 %v1439
    %v1739 = vunpack.c.l.b16 %v1440
    %v1740 = vunpack.c.l.b16 %v1441
    %v1741 = vunpack.c.l.b16 %v1442
    %v1742 = vunpack.c.l.b16 %v1443
    %v1743 = vunpack.c.l.b16 %v1444
    %v1744 = vunpack.c.l.b16 %v1445
    %v1745 = vunpack.c.l.b16 %v1446
    %v1746 = vpack.c.b16 %v1731, %v1730
    %v1747 = vpack.c.b16 %v1733, %v1732
    %v1748 = vpack.c.b16 %v1735, %v1734
    %v1749 = vpack.c.b16 %v1737, %v1736
    %v1750 = vpack.c.b16 %v1739, %v1738
    %v1751 = vpack.c.b16 %v1741, %v1740
    %v1752 = vpack.c.b16 %v1743, %v1742
    %v1753 = vpack.c.b16 %v1745, %v1744
    %1762 = vmatprep.subr.bf16.mxu0 0
    %1763 = vmatpush1.bf16.msra.mxu0 %v1746
    %1764 = vmatprep.subr.bf16.mxu0 0
    %1765 = vmatpush1.bf16.msra.mxu0 %v1747
    %1766 = vmatprep.subr.bf16.mxu0 0
    %1767 = vmatpush1.bf16.msra.mxu0 %v1748
    %1768 = vmatprep.subr.bf16.mxu0 0
    %1769 = vmatpush1.bf16.msra.mxu0 %v1749
    %1770 = vmatprep.subr.bf16.mxu0 0
    %1771 = vmatpush1.bf16.msra.mxu0 %v1750
    %1772 = vmatprep.subr.bf16.mxu0 0
    %1773 = vmatpush1.bf16.msra.mxu0 %v1751
    %1774 = vmatprep.subr.bf16.mxu0 0
    %1775 = vmatpush1.bf16.msra.mxu0 %v1752
    %1776 = vmatprep.subr.bf16.mxu0 0
    %1777 = vmatpush1.bf16.msra.mxu0 %v1753
    %1778 = vmatprep.subr.bf16.mxu0 0
    %1779 = vmatpush1.bf16.msra.mxu0 0
    %1780 = vmatprep.subr.bf16.mxu0 0
    %1781 = vmatpush1.bf16.msra.mxu0 0
    %1782 = vmatprep.subr.bf16.mxu0 0
    %1783 = vmatpush1.bf16.msra.mxu0 0
    %1784 = vmatprep.subr.bf16.mxu0 0
    %1785 = vmatpush1.bf16.msra.mxu0 0
    %1786 = vmatprep.subr.bf16.mxu0 0
    %1787 = vmatpush1.bf16.msra.mxu0 0
    %1788 = vmatprep.subr.bf16.mxu0 0
    %1789 = vmatpush1.bf16.msra.mxu0 0
    %1790 = vmatprep.subr.bf16.mxu0 0
    %1791 = vmatpush1.bf16.msra.mxu0 0
    %1792 = vmatprep.subr.bf16.mxu0 0
    %1793 = vmatpush1.bf16.msra.mxu0 0
    %1794 = vmatprep.mubr.bf16.mxu0 0
    %1795 = vmatmul.mubr.bf16.gmra.mrb[0].mxu0 %v1422
    %v1796 = vpop.f32.mrb[0].mxu0
    %v1797 = vadd.f32 %v1652, %v1796
    %v1798 = vpop.f32.mrb[0].mxu0
    %v1799 = vpop.f32.mrb[0].mxu0
    %v1800 = vadd.f32 %v1655, %v1799
    %v1801 = vpop.f32.mrb[0].mxu0
    %1802 = vmatprep.mubr.bf16.mxu0 0
    %1803 = vmatmul.mubr.bf16.gmra.mrb[0].mxu0 %v1423
    %v1804 = vpop.f32.mrb[0].mxu0
    %v1805 = vadd.f32 %v1660, %v1804
    %v1806 = vpop.f32.mrb[0].mxu0
    %v1807 = vpop.f32.mrb[0].mxu0
    %v1808 = vadd.f32 %v1663, %v1807
    %v1809 = vpop.f32.mrb[0].mxu0
    %1810 = vmatprep.mubr.bf16.mxu0 0
    %1811 = vmatmul.mubr.bf16.gmra.mrb[0].mxu0 %v1424
    %v1812 = vpop.f32.mrb[0].mxu0
    %v1813 = vadd.f32 %v1668, %v1812
    %v1814 = vpop.f32.mrb[0].mxu0
    %v1815 = vpop.f32.mrb[0].mxu0
    %v1816 = vadd.f32 %v1671, %v1815
    %v1817 = vpop.f32.mrb[0].mxu0
    %1818 = vmatprep.mubr.bf16.mxu0 0
    %1819 = vmatmul.mubr.bf16.gmra.mrb[0].mxu0 %v1425
    %v1820 = vpop.f32.mrb[0].mxu0
    %v1821 = vadd.f32 %v1676, %v1820
    %v1822 = vpop.f32.mrb[0].mxu0
    %v1823 = vpop.f32.mrb[0].mxu0
    %v1824 = vadd.f32 %v1679, %v1823
    %v1825 = vpop.f32.mrb[0].mxu0
    %1826 = vmatprep.mubr.bf16.mxu0 0
    %1827 = vmatmul.mubr.bf16.gmra.mrb[0].mxu0 %v1426
    %v1828 = vpop.f32.mrb[0].mxu0
    %v1829 = vadd.f32 %v1684, %v1828
    %v1830 = vpop.f32.mrb[0].mxu0
    %v1831 = vpop.f32.mrb[0].mxu0
    %v1832 = vadd.f32 %v1687, %v1831
    %v1833 = vpop.f32.mrb[0].mxu0
    %1834 = vmatprep.mubr.bf16.mxu0 0
    %1835 = vmatmul.mubr.bf16.gmra.mrb[0].mxu0 %v1427
    %v1836 = vpop.f32.mrb[0].mxu0
    %v1837 = vadd.f32 %v1692, %v1836
    %v1838 = vpop.f32.mrb[0].mxu0
    %v1839 = vpop.f32.mrb[0].mxu0
    %v1840 = vadd.f32 %v1695, %v1839
    %v1841 = vpop.f32.mrb[0].mxu0
    %1842 = vmatprep.mubr.bf16.mxu0 0
    %1843 = vmatmul.mubr.bf16.gmra.mrb[0].mxu0 %v1428
    %v1844 = vpop.f32.mrb[0].mxu0
    %v1845 = vadd.f32 %v1700, %v1844
    %v1846 = vpop.f32.mrb[0].mxu0
    %v1847 = vpop.f32.mrb[0].mxu0
    %v1848 = vadd.f32 %v1703, %v1847
    %v1849 = vpop.f32.mrb[0].mxu0
    %1850 = vmatprep.mubr.bf16.mxu0 0
    %1851 = vmatmul.mubr.bf16.gmra.mrb[0].mxu0 %v1429
    %v1852 = vpop.f32.mrb[0].mxu0
    %v1853 = vadd.f32 %v1708, %v1852
    %v1854 = vpop.f32.mrb[0].mxu0
    %v1855 = vpop.f32.mrb[0].mxu0
    %v1856 = vadd.f32 %v1711, %v1855
    %v1857 = vpop.f32.mrb[0].mxu0
    %1858 = vdwg.mxu0
    %1859 = vmatprep.subr.bf16.mxu0 0
    %1860 = vmatpush1.bf16.msra.mxu0 %v1544
    %1861 = vmatprep.subr.bf16.mxu0 0
    %1862 = vmatpush1.bf16.msra.mxu0 %v1545
    %1863 = vmatprep.subr.bf16.mxu0 0
    %1864 = vmatpush1.bf16.msra.mxu0 %v1546
    %1865 = vmatprep.subr.bf16.mxu0 0
    %1866 = vmatpush1.bf16.msra.mxu0 %v1547
    %1867 = vmatprep.subr.bf16.mxu0 0
    %1868 = vmatpush1.bf16.msra.mxu0 %v1548
    %1869 = vmatprep.subr.bf16.mxu0 0
    %1870 = vmatpush1.bf16.msra.mxu0 %v1549
    %1871 = vmatprep.subr.bf16.mxu0 0
    %1872 = vmatpush1.bf16.msra.mxu0 %v1550
    %1873 = vmatprep.subr.bf16.mxu0 0
    %1874 = vmatpush1.bf16.msra.mxu0 %v1551
    %1875 = vmatprep.subr.bf16.mxu0 0
    %1876 = vmatpush1.bf16.msra.mxu0 0
    %1877 = vmatprep.subr.bf16.mxu0 0
    %1878 = vmatpush1.bf16.msra.mxu0 0
    %1879 = vmatprep.subr.bf16.mxu0 0
    %1880 = vmatpush1.bf16.msra.mxu0 0
    %1881 = vmatprep.subr.bf16.mxu0 0
    %1882 = vmatpush1.bf16.msra.mxu0 0
    %1883 = vmatprep.subr.bf16.mxu0 0
    %1884 = vmatpush1.bf16.msra.mxu0 0
    %1885 = vmatprep.subr.bf16.mxu0 0
    %1886 = vmatpush1.bf16.msra.mxu0 0
    %1887 = vmatprep.subr.bf16.mxu0 0
    %1888 = vmatpush1.bf16.msra.mxu0 0
    %1889 = vmatprep.subr.bf16.mxu0 0
    %1890 = vmatpush1.bf16.msra.mxu0 0
    %1891 = vmatprep.mubr.bf16.mxu0 0
    %1892 = vmatmul.mubr.bf16.gmra.mrb[0].mxu0 %v386
    %v1893 = vpop.f32.mrb[0].mxu0
    %v1894 = vadd.f32 0.0, %v1893
    %v1895 = vpop.f32.mrb[0].mxu0
    %v1896 = vpop.f32.mrb[0].mxu0
    %v1897 = vadd.f32 0.0, %v1896
    %v1898 = vpop.f32.mrb[0].mxu0
    %1899 = vmatprep.mubr.bf16.mxu0 0
    %1900 = vmatmul.mubr.bf16.gmra.mrb[0].mxu0 %v387
    %v1901 = vpop.f32.mrb[0].mxu0
    %v1902 = vadd.f32 0.0, %v1901
    %v1903 = vpop.f32.mrb[0].mxu0
    %v1904 = vpop.f32.mrb[0].mxu0
    %v1905 = vadd.f32 0.0, %v1904
    %v1906 = vpop.f32.mrb[0].mxu0
    %1907 = vmatprep.mubr.bf16.mxu0 0
    %1908 = vmatmul.mubr.bf16.gmra.mrb[0].mxu0 %v388
    %v1909 = vpop.f32.mrb[0].mxu0
    %v1910 = vadd.f32 0.0, %v1909
    %v1911 = vpop.f32.mrb[0].mxu0
    %v1912 = vpop.f32.mrb[0].mxu0
    %v1913 = vadd.f32 0.0, %v1912
    %v1914 = vpop.f32.mrb[0].mxu0
    %1915 = vmatprep.mubr.bf16.mxu0 0
    %1916 = vmatmul.mubr.bf16.gmra.mrb[0].mxu0 %v389
    %v1917 = vpop.f32.mrb[0].mxu0
    %v1918 = vadd.f32 0.0, %v1917
    %v1919 = vpop.f32.mrb[0].mxu0
    %v1920 = vpop.f32.mrb[0].mxu0
    %v1921 = vadd.f32 0.0, %v1920
    %v1922 = vpop.f32.mrb[0].mxu0
    %1923 = vmatprep.mubr.bf16.mxu0 0
    %1924 = vmatmul.mubr.bf16.gmra.mrb[0].mxu0 %v390
    %v1925 = vpop.f32.mrb[0].mxu0
    %v1926 = vadd.f32 0.0, %v1925
    %v1927 = vpop.f32.mrb[0].mxu0
    %v1928 = vpop.f32.mrb[0].mxu0
    %v1929 = vadd.f32 0.0, %v1928
    %v1930 = vpop.f32.mrb[0].mxu0
    %1931 = vmatprep.mubr.bf16.mxu0 0
    %1932 = vmatmul.mubr.bf16.gmra.mrb[0].mxu0 %v391
    %v1933 = vpop.f32.mrb[0].mxu0
    %v1934 = vadd.f32 0.0, %v1933
    %v1935 = vpop.f32.mrb[0].mxu0
    %v1936 = vpop.f32.mrb[0].mxu0
    %v1937 = vadd.f32 0.0, %v1936
    %v1938 = vpop.f32.mrb[0].mxu0
    %1939 = vmatprep.mubr.bf16.mxu0 0
    %1940 = vmatmul.mubr.bf16.gmra.mrb[0].mxu0 %v392
    %v1941 = vpop.f32.mrb[0].mxu0
    %v1942 = vadd.f32 0.0, %v1941
    %v1943 = vpop.f32.mrb[0].mxu0
    %v1944 = vpop.f32.mrb[0].mxu0
    %v1945 = vadd.f32 0.0, %v1944
    %v1946 = vpop.f32.mrb[0].mxu0
    %1947 = vmatprep.mubr.bf16.mxu0 0
    %1948 = vmatmul.mubr.bf16.gmra.mrb[0].mxu0 %v393
    %v1949 = vpop.f32.mrb[0].mxu0
    %v1950 = vadd.f32 0.0, %v1949
    %v1951 = vpop.f32.mrb[0].mxu0
    %v1952 = vpop.f32.mrb[0].mxu0
    %v1953 = vadd.f32 0.0, %v1952
    %v1954 = vpop.f32.mrb[0].mxu0
    %1955 = vdwg.mxu0
    %v1956 = vmul.f32 %v1894, 2.0
    %v1957 = vmul.f32 %v1897, 2.0
    %v1958 = vmul.f32 %v1902, 2.0
    %v1959 = vmul.f32 %v1905, 2.0
    %v1960 = vmul.f32 %v1910, 2.0
    %v1961 = vmul.f32 %v1913, 2.0
    %v1962 = vmul.f32 %v1918, 2.0
    %v1963 = vmul.f32 %v1921, 2.0
    %v1964 = vmul.f32 %v1926, 2.0
    %v1965 = vmul.f32 %v1929, 2.0
    %v1966 = vmul.f32 %v1934, 2.0
    %v1967 = vmul.f32 %v1937, 2.0
    %v1968 = vmul.f32 %v1942, 2.0
    %v1969 = vmul.f32 %v1945, 2.0
    %v1970 = vmul.f32 %v1950, 2.0
    %v1971 = vmul.f32 %v1953, 2.0
    %v1972 = vsub.f32 %v1956, %v1406
    %v1973 = vsub.f32 %v1957, %v1407
    %v1974 = vsub.f32 %v1958, %v1408
    %v1975 = vsub.f32 %v1959, %v1409
    %v1976 = vsub.f32 %v1960, %v1410
    %v1977 = vsub.f32 %v1961, %v1411
    %v1978 = vsub.f32 %v1962, %v1412
    %v1979 = vsub.f32 %v1963, %v1413
    %v1980 = vsub.f32 %v1964, %v1414
    %v1981 = vsub.f32 %v1965, %v1415
    %v1982 = vsub.f32 %v1966, %v1416
    %v1983 = vsub.f32 %v1967, %v1417
    %v1984 = vsub.f32 %v1968, %v1418
    %v1985 = vsub.f32 %v1969, %v1419
    %v1986 = vsub.f32 %v1970, %v1420
    %v1987 = vsub.f32 %v1971, %v1421
    %v1988 = vpack.c.bf16 %v1973, %v1972
    %v1989 = vpack.c.bf16 %v1975, %v1974
    %v1990 = vpack.c.bf16 %v1977, %v1976
    %v1991 = vpack.c.bf16 %v1979, %v1978
    %v1992 = vpack.c.bf16 %v1981, %v1980
    %v1993 = vpack.c.bf16 %v1983, %v1982
    %v1994 = vpack.c.bf16 %v1985, %v1984
    %v1995 = vpack.c.bf16 %v1987, %v1986
    %s1996 = scalar_lea.vmem [#allocation4], 320
    %v1997 = vld [vmem:[%s1996] sm:$0xf]
    %v1998 = vld [vmem:[%s1996 + $0x4] sm:$0xf]
    %v1999 = vld [vmem:[%s1996 + $0x8] sm:$0xf]
    %v2000 = vld [vmem:[%s1996 + $0xc] sm:$0xf]
    %v2001 = vld [vmem:[%s1996 + $0x10] sm:$0xf]
    %v2002 = vld [vmem:[%s1996 + $0x14] sm:$0xf]
    %v2003 = vld [vmem:[%s1996 + $0x18] sm:$0xf]
    %v2004 = vld [vmem:[%s1996 + $0x1c] sm:$0xf]
    %v2005 = vld [vmem:[%s1996 + $0x20] sm:$0xf]
    %v2006 = vld [vmem:[%s1996 + $0x24] sm:$0xf]
    %v2007 = vld [vmem:[%s1996 + $0x28] sm:$0xf]
    %v2008 = vld [vmem:[%s1996 + $0x2c] sm:$0xf]
    %v2009 = vld [vmem:[%s1996 + $0x30] sm:$0xf]
    %v2010 = vld [vmem:[%s1996 + $0x34] sm:$0xf]
    %v2011 = vld [vmem:[%s1996 + $0x38] sm:$0xf]
    %v2012 = vld [vmem:[%s1996 + $0x3c] sm:$0xf]
    %v2029 = vunpack.c.l.b16 %v1997
    %v2030 = vunpack.c.l.b16 %v1998
    %v2031 = vunpack.c.l.b16 %v1999
    %v2032 = vunpack.c.l.b16 %v2000
    %v2033 = vunpack.c.l.b16 %v2001
    %v2034 = vunpack.c.l.b16 %v2002
    %v2035 = vunpack.c.l.b16 %v2003
    %v2036 = vunpack.c.l.b16 %v2004
    %v2037 = vunpack.c.l.b16 %v2005
    %v2038 = vunpack.c.l.b16 %v2006
    %v2039 = vunpack.c.l.b16 %v2007
    %v2040 = vunpack.c.l.b16 %v2008
    %v2041 = vunpack.c.l.b16 %v2009
    %v2042 = vunpack.c.l.b16 %v2010
    %v2043 = vunpack.c.l.b16 %v2011
    %v2044 = vunpack.c.l.b16 %v2012
    %v2045 = vpack.c.b16 %v2030, %v2029
    %v2046 = vpack.c.b16 %v2032, %v2031
    %v2047 = vpack.c.b16 %v2034, %v2033
    %v2048 = vpack.c.b16 %v2036, %v2035
    %v2049 = vpack.c.b16 %v2038, %v2037
    %v2050 = vpack.c.b16 %v2040, %v2039
    %v2051 = vpack.c.b16 %v2042, %v2041
    %v2052 = vpack.c.b16 %v2044, %v2043
    %2061 = vmatprep.subr.bf16.mxu0 0
    %2062 = vmatpush1.bf16.msra.mxu0 %v2045
    %2063 = vmatprep.subr.bf16.mxu0 0
    %2064 = vmatpush1.bf16.msra.mxu0 %v2046
    %2065 = vmatprep.subr.bf16.mxu0 0
    %2066 = vmatpush1.bf16.msra.mxu0 %v2047
    %2067 = vmatprep.subr.bf16.mxu0 0
    %2068 = vmatpush1.bf16.msra.mxu0 %v2048
    %2069 = vmatprep.subr.bf16.mxu0 0
    %2070 = vmatpush1.bf16.msra.mxu0 %v2049
    %2071 = vmatprep.subr.bf16.mxu0 0
    %2072 = vmatpush1.bf16.msra.mxu0 %v2050
    %2073 = vmatprep.subr.bf16.mxu0 0
    %2074 = vmatpush1.bf16.msra.mxu0 %v2051
    %2075 = vmatprep.subr.bf16.mxu0 0
    %2076 = vmatpush1.bf16.msra.mxu0 %v2052
    %2077 = vmatprep.subr.bf16.mxu0 0
    %2078 = vmatpush1.bf16.msra.mxu0 0
    %2079 = vmatprep.subr.bf16.mxu0 0
    %2080 = vmatpush1.bf16.msra.mxu0 0
    %2081 = vmatprep.subr.bf16.mxu0 0
    %2082 = vmatpush1.bf16.msra.mxu0 0
    %2083 = vmatprep.subr.bf16.mxu0 0
    %2084 = vmatpush1.bf16.msra.mxu0 0
    %2085 = vmatprep.subr.bf16.mxu0 0
    %2086 = vmatpush1.bf16.msra.mxu0 0
    %2087 = vmatprep.subr.bf16.mxu0 0
    %2088 = vmatpush1.bf16.msra.mxu0 0
    %2089 = vmatprep.subr.bf16.mxu0 0
    %2090 = vmatpush1.bf16.msra.mxu0 0
    %2091 = vmatprep.subr.bf16.mxu0 0
    %2092 = vmatpush1.bf16.msra.mxu0 0
    %2093 = vmatprep.mubr.bf16.mxu0 0
    %2094 = vmatmul.mubr.bf16.gmra.mrb[0].mxu0 %v1988
    %v2095 = vpop.f32.mrb[0].mxu0
    %v2096 = vadd.f32 0.0, %v2095
    %v2097 = vpop.f32.mrb[0].mxu0
    %v2098 = vpop.f32.mrb[0].mxu0
    %v2099 = vadd.f32 0.0, %v2098
    %v2100 = vpop.f32.mrb[0].mxu0
    %2101 = vmatprep.mubr.bf16.mxu0 0
    %2102 = vmatmul.mubr.bf16.gmra.mrb[0].mxu0 %v1989
    %v2103 = vpop.f32.mrb[0].mxu0
    %v2104 = vadd.f32 0.0, %v2103
    %v2105 = vpop.f32.mrb[0].mxu0
    %v2106 = vpop.f32.mrb[0].mxu0
    %v2107 = vadd.f32 0.0, %v2106
    %v2108 = vpop.f32.mrb[0].mxu0
    %2109 = vmatprep.mubr.bf16.mxu0 0
    %2110 = vmatmul.mubr.bf16.gmra.mrb[0].mxu0 %v1990
    %v2111 = vpop.f32.mrb[0].mxu0
    %v2112 = vadd.f32 0.0, %v2111
    %v2113 = vpop.f32.mrb[0].mxu0
    %v2114 = vpop.f32.mrb[0].mxu0
    %v2115 = vadd.f32 0.0, %v2114
    %v2116 = vpop.f32.mrb[0].mxu0
    %2117 = vmatprep.mubr.bf16.mxu0 0
    %2118 = vmatmul.mubr.bf16.gmra.mrb[0].mxu0 %v1991
    %v2119 = vpop.f32.mrb[0].mxu0
    %v2120 = vadd.f32 0.0, %v2119
    %v2121 = vpop.f32.mrb[0].mxu0
    %v2122 = vpop.f32.mrb[0].mxu0
    %v2123 = vadd.f32 0.0, %v2122
    %v2124 = vpop.f32.mrb[0].mxu0
    %2125 = vmatprep.mubr.bf16.mxu0 0
    %2126 = vmatmul.mubr.bf16.gmra.mrb[0].mxu0 %v1992
    %v2127 = vpop.f32.mrb[0].mxu0
    %v2128 = vadd.f32 0.0, %v2127
    %v2129 = vpop.f32.mrb[0].mxu0
    %v2130 = vpop.f32.mrb[0].mxu0
    %v2131 = vadd.f32 0.0, %v2130
    %v2132 = vpop.f32.mrb[0].mxu0
    %2133 = vmatprep.mubr.bf16.mxu0 0
    %2134 = vmatmul.mubr.bf16.gmra.mrb[0].mxu0 %v1993
    %v2135 = vpop.f32.mrb[0].mxu0
    %v2136 = vadd.f32 0.0, %v2135
    %v2137 = vpop.f32.mrb[0].mxu0
    %v2138 = vpop.f32.mrb[0].mxu0
    %v2139 = vadd.f32 0.0, %v2138
    %v2140 = vpop.f32.mrb[0].mxu0
    %2141 = vmatprep.mubr.bf16.mxu0 0
    %2142 = vmatmul.mubr.bf16.gmra.mrb[0].mxu0 %v1994
    %v2143 = vpop.f32.mrb[0].mxu0
    %v2144 = vadd.f32 0.0, %v2143
    %v2145 = vpop.f32.mrb[0].mxu0
    %v2146 = vpop.f32.mrb[0].mxu0
    %v2147 = vadd.f32 0.0, %v2146
    %v2148 = vpop.f32.mrb[0].mxu0
    %2149 = vmatprep.mubr.bf16.mxu0 0
    %2150 = vmatmul.mubr.bf16.gmra.mrb[0].mxu0 %v1995
    %v2151 = vpop.f32.mrb[0].mxu0
    %v2152 = vadd.f32 0.0, %v2151
    %v2153 = vpop.f32.mrb[0].mxu0
    %v2154 = vpop.f32.mrb[0].mxu0
    %v2155 = vadd.f32 0.0, %v2154
    %v2156 = vpop.f32.mrb[0].mxu0
    %2157 = vdwg.mxu0
    %v2158 = vadd.f32 %v1797, %v2096
    %v2159 = vadd.f32 %v1800, %v2099
    %v2160 = vadd.f32 %v1805, %v2104
    %v2161 = vadd.f32 %v1808, %v2107
    %v2162 = vadd.f32 %v1813, %v2112
    %v2163 = vadd.f32 %v1816, %v2115
    %v2164 = vadd.f32 %v1821, %v2120
    %v2165 = vadd.f32 %v1824, %v2123
    %v2166 = vadd.f32 %v1829, %v2128
    %v2167 = vadd.f32 %v1832, %v2131
    %v2168 = vadd.f32 %v1837, %v2136
    %v2169 = vadd.f32 %v1840, %v2139
    %v2170 = vadd.f32 %v1845, %v2144
    %v2171 = vadd.f32 %v1848, %v2147
    %v2172 = vadd.f32 %v1853, %v2152
    %v2173 = vadd.f32 %v1856, %v2155
    %s2174 = scalar_lea.vmem %s5, 1
    %v2175 = vld [vmem:[%s2174] sm:$0x1]
    %v2177 = vlaneseq
    %v2178 = vshrl.u32 %v2177, 7
    %v2179 = vsub.s32 0, %v2178
    %v2180 = vrot.slane %v2175, %v2179
    %v2182 = vadd.f32 %v2158, %v2180
    %v2183 = vadd.f32 %v2159, %v2180
    %v2184 = vadd.f32 %v2160, %v2180
    %v2185 = vadd.f32 %v2161, %v2180
    %v2186 = vadd.f32 %v2162, %v2180
    %v2187 = vadd.f32 %v2163, %v2180
    %v2188 = vadd.f32 %v2164, %v2180
    %v2189 = vadd.f32 %v2165, %v2180
    %v2190 = vadd.f32 %v2166, %v2180
    %v2191 = vadd.f32 %v2167, %v2180
    %v2192 = vadd.f32 %v2168, %v2180
    %v2193 = vadd.f32 %v2169, %v2180
    %v2194 = vadd.f32 %v2170, %v2180
    %v2195 = vadd.f32 %v2171, %v2180
    %v2196 = vadd.f32 %v2172, %v2180
    %v2197 = vadd.f32 %v2173, %v2180
    %v2198 = vmax.f32 %v2182, 0.0
    %v2199 = vmax.f32 %v2183, 0.0
    %v2200 = vmax.f32 %v2184, 0.0
    %v2201 = vmax.f32 %v2185, 0.0
    %v2202 = vmax.f32 %v2186, 0.0
    %v2203 = vmax.f32 %v2187, 0.0
    %v2204 = vmax.f32 %v2188, 0.0
    %v2205 = vmax.f32 %v2189, 0.0
    %v2206 = vmax.f32 %v2190, 0.0
    %v2207 = vmax.f32 %v2191, 0.0
    %v2208 = vmax.f32 %v2192, 0.0
    %v2209 = vmax.f32 %v2193, 0.0
    %v2210 = vmax.f32 %v2194, 0.0
    %v2211 = vmax.f32 %v2195, 0.0
    %v2212 = vmax.f32 %v2196, 0.0
    %v2213 = vmax.f32 %v2197, 0.0
    %v2214 = vadd.f32 %v2198, %v1406
    %v2215 = vadd.f32 %v2199, %v1407
    %v2216 = vadd.f32 %v2200, %v1408
    %v2217 = vadd.f32 %v2201, %v1409
    %v2218 = vadd.f32 %v2202, %v1410
    %v2219 = vadd.f32 %v2203, %v1411
    %v2220 = vadd.f32 %v2204, %v1412
    %v2221 = vadd.f32 %v2205, %v1413
    %v2222 = vadd.f32 %v2206, %v1414
    %v2223 = vadd.f32 %v2207, %v1415
    %v2224 = vadd.f32 %v2208, %v1416
    %v2225 = vadd.f32 %v2209, %v1417
    %v2226 = vadd.f32 %v2210, %v1418
    %v2227 = vadd.f32 %v2211, %v1419
    %v2228 = vadd.f32 %v2212, %v1420
    %v2229 = vadd.f32 %v2213, %v1421
    %2230 = vadd.xlane.f32.xlu0 %v2214
    %v2231 = vpop.xlane.xlu0 %2230
    %2232 = vadd.xlane.f32.xlu0 %v2215
    %v2233 = vpop.xlane.xlu0 %2232
    %2234 = vadd.xlane.f32.xlu0 %v2216
    %v2235 = vpop.xlane.xlu0 %2234
    %2236 = vadd.xlane.f32.xlu0 %v2217
    %v2237 = vpop.xlane.xlu0 %2236
    %2238 = vadd.xlane.f32.xlu0 %v2218
    %v2239 = vpop.xlane.xlu0 %2238
    %2240 = vadd.xlane.f32.xlu0 %v2219
    %v2241 = vpop.xlane.xlu0 %2240
    %2242 = vadd.xlane.f32.xlu0 %v2220
    %v2243 = vpop.xlane.xlu0 %2242
    %2244 = vadd.xlane.f32.xlu0 %v2221
    %v2245 = vpop.xlane.xlu0 %2244
    %2246 = vadd.xlane.f32.xlu0 %v2222
    %v2247 = vpop.xlane.xlu0 %2246
    %2248 = vadd.xlane.f32.xlu0 %v2223
    %v2249 = vpop.xlane.xlu0 %2248
    %2250 = vadd.xlane.f32.xlu0 %v2224
    %v2251 = vpop.xlane.xlu0 %2250
    %2252 = vadd.xlane.f32.xlu0 %v2225
    %v2253 = vpop.xlane.xlu0 %2252
    %2254 = vadd.xlane.f32.xlu0 %v2226
    %v2255 = vpop.xlane.xlu0 %2254
    %2256 = vadd.xlane.f32.xlu0 %v2227
    %v2257 = vpop.xlane.xlu0 %2256
    %2258 = vadd.xlane.f32.xlu0 %v2228
    %v2259 = vpop.xlane.xlu0 %2258
    %2260 = vadd.xlane.f32.xlu0 %v2229
    %v2261 = vpop.xlane.xlu0 %2260
    %v2262 = vmul.f32 %v2231, 0.03125
    %v2263 = vmul.f32 %v2233, 0.03125
    %v2264 = vmul.f32 %v2235, 0.03125
    %v2265 = vmul.f32 %v2237, 0.03125
    %v2266 = vmul.f32 %v2239, 0.03125
    %v2267 = vmul.f32 %v2241, 0.03125
    %v2268 = vmul.f32 %v2243, 0.03125
    %v2269 = vmul.f32 %v2245, 0.03125
    %v2270 = vmul.f32 %v2247, 0.03125
    %v2271 = vmul.f32 %v2249, 0.03125
    %v2272 = vmul.f32 %v2251, 0.03125
    %v2273 = vmul.f32 %v2253, 0.03125
    %v2274 = vmul.f32 %v2255, 0.03125
    %v2275 = vmul.f32 %v2257, 0.03125
    %v2276 = vmul.f32 %v2259, 0.03125
    %v2277 = vmul.f32 %v2261, 0.03125
    %v2278 = vsub.f32 %v2214, %v2262
    %v2279 = vsub.f32 %v2215, %v2263
    %v2280 = vsub.f32 %v2216, %v2264
    %v2281 = vsub.f32 %v2217, %v2265
    %v2282 = vsub.f32 %v2218, %v2266
    %v2283 = vsub.f32 %v2219, %v2267
    %v2284 = vsub.f32 %v2220, %v2268
    %v2285 = vsub.f32 %v2221, %v2269
    %v2286 = vsub.f32 %v2222, %v2270
    %v2287 = vsub.f32 %v2223, %v2271
    %v2288 = vsub.f32 %v2224, %v2272
    %v2289 = vsub.f32 %v2225, %v2273
    %v2290 = vsub.f32 %v2226, %v2274
    %v2291 = vsub.f32 %v2227, %v2275
    %v2292 = vsub.f32 %v2228, %v2276
    %v2293 = vsub.f32 %v2229, %v2277
    %v2294 = vmul.f32 %v2278, %v329
    %v2295 = vmul.f32 %v2279, %v329
    %v2296 = vmul.f32 %v2280, %v329
    %v2297 = vmul.f32 %v2281, %v329
    %v2298 = vmul.f32 %v2282, %v329
    %v2299 = vmul.f32 %v2283, %v329
    %v2300 = vmul.f32 %v2284, %v329
    %v2301 = vmul.f32 %v2285, %v329
    %v2302 = vmul.f32 %v2286, %v329
    %v2303 = vmul.f32 %v2287, %v329
    %v2304 = vmul.f32 %v2288, %v329
    %v2305 = vmul.f32 %v2289, %v329
    %v2306 = vmul.f32 %v2290, %v329
    %v2307 = vmul.f32 %v2291, %v329
    %v2308 = vmul.f32 %v2292, %v329
    %v2309 = vmul.f32 %v2293, %v329
    %v2310 = vmul.f32 %v2294, %v2294
    %v2311 = vmul.f32 %v2295, %v2295
    %v2312 = vmul.f32 %v2296, %v2296
    %v2313 = vmul.f32 %v2297, %v2297
    %v2314 = vmul.f32 %v2298, %v2298
    %v2315 = vmul.f32 %v2299, %v2299
    %v2316 = vmul.f32 %v2300, %v2300
    %v2317 = vmul.f32 %v2301, %v2301
    %v2318 = vmul.f32 %v2302, %v2302
    %v2319 = vmul.f32 %v2303, %v2303
    %v2320 = vmul.f32 %v2304, %v2304
    %v2321 = vmul.f32 %v2305, %v2305
    %v2322 = vmul.f32 %v2306, %v2306
    %v2323 = vmul.f32 %v2307, %v2307
    %v2324 = vmul.f32 %v2308, %v2308
    %v2325 = vmul.f32 %v2309, %v2309
    %2326 = vadd.xlane.f32.xlu0 %v2310
    %v2327 = vpop.xlane.xlu0 %2326
    %2328 = vadd.xlane.f32.xlu0 %v2311
    %v2329 = vpop.xlane.xlu0 %2328
    %2330 = vadd.xlane.f32.xlu0 %v2312
    %v2331 = vpop.xlane.xlu0 %2330
    %2332 = vadd.xlane.f32.xlu0 %v2313
    %v2333 = vpop.xlane.xlu0 %2332
    %2334 = vadd.xlane.f32.xlu0 %v2314
    %v2335 = vpop.xlane.xlu0 %2334
    %2336 = vadd.xlane.f32.xlu0 %v2315
    %v2337 = vpop.xlane.xlu0 %2336
    %2338 = vadd.xlane.f32.xlu0 %v2316
    %v2339 = vpop.xlane.xlu0 %2338
    %2340 = vadd.xlane.f32.xlu0 %v2317
    %v2341 = vpop.xlane.xlu0 %2340
    %2342 = vadd.xlane.f32.xlu0 %v2318
    %v2343 = vpop.xlane.xlu0 %2342
    %2344 = vadd.xlane.f32.xlu0 %v2319
    %v2345 = vpop.xlane.xlu0 %2344
    %2346 = vadd.xlane.f32.xlu0 %v2320
    %v2347 = vpop.xlane.xlu0 %2346
    %2348 = vadd.xlane.f32.xlu0 %v2321
    %v2349 = vpop.xlane.xlu0 %2348
    %2350 = vadd.xlane.f32.xlu0 %v2322
    %v2351 = vpop.xlane.xlu0 %2350
    %2352 = vadd.xlane.f32.xlu0 %v2323
    %v2353 = vpop.xlane.xlu0 %2352
    %2354 = vadd.xlane.f32.xlu0 %v2324
    %v2355 = vpop.xlane.xlu0 %2354
    %2356 = vadd.xlane.f32.xlu0 %v2325
    %v2357 = vpop.xlane.xlu0 %2356
    %v2358 = vmul.f32 %v2327, 0.03125
    %v2359 = vmul.f32 %v2329, 0.03125
    %v2360 = vmul.f32 %v2331, 0.03125
    %v2361 = vmul.f32 %v2333, 0.03125
    %v2362 = vmul.f32 %v2335, 0.03125
    %v2363 = vmul.f32 %v2337, 0.03125
    %v2364 = vmul.f32 %v2339, 0.03125
    %v2365 = vmul.f32 %v2341, 0.03125
    %v2366 = vmul.f32 %v2343, 0.03125
    %v2367 = vmul.f32 %v2345, 0.03125
    %v2368 = vmul.f32 %v2347, 0.03125
    %v2369 = vmul.f32 %v2349, 0.03125
    %v2370 = vmul.f32 %v2351, 0.03125
    %v2371 = vmul.f32 %v2353, 0.03125
    %v2372 = vmul.f32 %v2355, 0.03125
    %v2373 = vmul.f32 %v2357, 0.03125
    %v2374 = vadd.f32 %v2358, 1e-05
    %v2375 = vadd.f32 %v2359, 1e-05
    %v2376 = vadd.f32 %v2360, 1e-05
    %v2377 = vadd.f32 %v2361, 1e-05
    %v2378 = vadd.f32 %v2362, 1e-05
    %v2379 = vadd.f32 %v2363, 1e-05
    %v2380 = vadd.f32 %v2364, 1e-05
    %v2381 = vadd.f32 %v2365, 1e-05
    %v2382 = vadd.f32 %v2366, 1e-05
    %v2383 = vadd.f32 %v2367, 1e-05
    %v2384 = vadd.f32 %v2368, 1e-05
    %v2385 = vadd.f32 %v2369, 1e-05
    %v2386 = vadd.f32 %v2370, 1e-05
    %v2387 = vadd.f32 %v2371, 1e-05
    %v2388 = vadd.f32 %v2372, 1e-05
    %v2389 = vadd.f32 %v2373, 1e-05
    %v2390 = vrsqrt.pop %v2374
    %v2391 = vrsqrt.pop %v2375
    %v2392 = vrsqrt.pop %v2376
    %v2393 = vrsqrt.pop %v2377
    %v2394 = vrsqrt.pop %v2378
    %v2395 = vrsqrt.pop %v2379
    %v2396 = vrsqrt.pop %v2380
    %v2397 = vrsqrt.pop %v2381
    %v2398 = vrsqrt.pop %v2382
    %v2399 = vrsqrt.pop %v2383
    %v2400 = vrsqrt.pop %v2384
    %v2401 = vrsqrt.pop %v2385
    %v2402 = vrsqrt.pop %v2386
    %v2403 = vrsqrt.pop %v2387
    %v2404 = vrsqrt.pop %v2388
    %v2405 = vrsqrt.pop %v2389
    %v2406 = vmul.f32 %v2294, %v2390
    %v2407 = vmul.f32 %v2295, %v2391
    %v2408 = vmul.f32 %v2296, %v2392
    %v2409 = vmul.f32 %v2297, %v2393
    %v2410 = vmul.f32 %v2298, %v2394
    %v2411 = vmul.f32 %v2299, %v2395
    %v2412 = vmul.f32 %v2300, %v2396
    %v2413 = vmul.f32 %v2301, %v2397
    %v2414 = vmul.f32 %v2302, %v2398
    %v2415 = vmul.f32 %v2303, %v2399
    %v2416 = vmul.f32 %v2304, %v2400
    %v2417 = vmul.f32 %v2305, %v2401
    %v2418 = vmul.f32 %v2306, %v2402
    %v2419 = vmul.f32 %v2307, %v2403
    %v2420 = vmul.f32 %v2308, %v2404
    %v2421 = vmul.f32 %v2309, %v2405
    %s2422 = scalar_lea.vmem %s6, 1
    %v2423 = vld [vmem:[%s2422] sm:$0x1]
    %v2425 = vlaneseq
    %v2426 = vshrl.u32 %v2425, 7
    %v2427 = vsub.s32 0, %v2426
    %v2428 = vrot.slane %v2423, %v2427
    %v2430 = vmul.f32 %v2406, %v2428
    %v2431 = vmul.f32 %v2407, %v2428
    %v2432 = vmul.f32 %v2408, %v2428
    %v2433 = vmul.f32 %v2409, %v2428
    %v2434 = vmul.f32 %v2410, %v2428
    %v2435 = vmul.f32 %v2411, %v2428
    %v2436 = vmul.f32 %v2412, %v2428
    %v2437 = vmul.f32 %v2413, %v2428
    %v2438 = vmul.f32 %v2414, %v2428
    %v2439 = vmul.f32 %v2415, %v2428
    %v2440 = vmul.f32 %v2416, %v2428
    %v2441 = vmul.f32 %v2417, %v2428
    %v2442 = vmul.f32 %v2418, %v2428
    %v2443 = vmul.f32 %v2419, %v2428
    %v2444 = vmul.f32 %v2420, %v2428
    %v2445 = vmul.f32 %v2421, %v2428
    %s2446 = scalar_lea.vmem %s7, 1
    %v2447 = vld [vmem:[%s2446] sm:$0x1]
    %v2449 = vlaneseq
    %v2450 = vshrl.u32 %v2449, 7
    %v2451 = vsub.s32 0, %v2450
    %v2452 = vrot.slane %v2447, %v2451
    %v2454 = vadd.f32 %v2430, %v2452
    %v2455 = vadd.f32 %v2431, %v2452
    %v2456 = vadd.f32 %v2432, %v2452
    %v2457 = vadd.f32 %v2433, %v2452
    %v2458 = vadd.f32 %v2434, %v2452
    %v2459 = vadd.f32 %v2435, %v2452
    %v2460 = vadd.f32 %v2436, %v2452
    %v2461 = vadd.f32 %v2437, %v2452
    %v2462 = vadd.f32 %v2438, %v2452
    %v2463 = vadd.f32 %v2439, %v2452
    %v2464 = vadd.f32 %v2440, %v2452
    %v2465 = vadd.f32 %v2441, %v2452
    %v2466 = vadd.f32 %v2442, %v2452
    %v2467 = vadd.f32 %v2443, %v2452
    %v2468 = vadd.f32 %v2444, %v2452
    %v2469 = vadd.f32 %v2445, %v2452
    %v2470 = vpack.c.bf16 %v2455, %v2454
    %v2471 = vpack.c.bf16 %v2457, %v2456
    %v2472 = vpack.c.bf16 %v2459, %v2458
    %v2473 = vpack.c.bf16 %v2461, %v2460
    %v2474 = vpack.c.bf16 %v2463, %v2462
    %v2475 = vpack.c.bf16 %v2465, %v2464
    %v2476 = vpack.c.bf16 %v2467, %v2466
    %v2477 = vpack.c.bf16 %v2469, %v2468
    %s2478 = scalar_lea.vmem [#allocation4], 384
    %v2479 = vld [vmem:[%s2478] sm:$0xf]
    %v2480 = vld [vmem:[%s2478 + $0x4] sm:$0xf]
    %v2481 = vld [vmem:[%s2478 + $0x8] sm:$0xf]
    %v2482 = vld [vmem:[%s2478 + $0xc] sm:$0xf]
    %v2483 = vld [vmem:[%s2478 + $0x10] sm:$0xf]
    %v2484 = vld [vmem:[%s2478 + $0x14] sm:$0xf]
    %v2485 = vld [vmem:[%s2478 + $0x18] sm:$0xf]
    %v2486 = vld [vmem:[%s2478 + $0x1c] sm:$0xf]
    %v2487 = vld [vmem:[%s2478 + $0x20] sm:$0xf]
    %v2488 = vld [vmem:[%s2478 + $0x24] sm:$0xf]
    %v2489 = vld [vmem:[%s2478 + $0x28] sm:$0xf]
    %v2490 = vld [vmem:[%s2478 + $0x2c] sm:$0xf]
    %v2491 = vld [vmem:[%s2478 + $0x30] sm:$0xf]
    %v2492 = vld [vmem:[%s2478 + $0x34] sm:$0xf]
    %v2493 = vld [vmem:[%s2478 + $0x38] sm:$0xf]
    %v2494 = vld [vmem:[%s2478 + $0x3c] sm:$0xf]
    %2495 = vmatprep.subr.bf16.mxu0 0
    %2496 = vmatpush1.bf16.msra.mxu0 %v2470
    %2497 = vmatprep.subr.bf16.mxu0 0
    %2498 = vmatpush1.bf16.msra.mxu0 %v2471
    %2499 = vmatprep.subr.bf16.mxu0 0
    %2500 = vmatpush1.bf16.msra.mxu0 %v2472
    %2501 = vmatprep.subr.bf16.mxu0 0
    %2502 = vmatpush1.bf16.msra.mxu0 %v2473
    %2503 = vmatprep.subr.bf16.mxu0 0
    %2504 = vmatpush1.bf16.msra.mxu0 %v2474
    %2505 = vmatprep.subr.bf16.mxu0 0
    %2506 = vmatpush1.bf16.msra.mxu0 %v2475
    %2507 = vmatprep.subr.bf16.mxu0 0
    %2508 = vmatpush1.bf16.msra.mxu0 %v2476
    %2509 = vmatprep.subr.bf16.mxu0 0
    %2510 = vmatpush1.bf16.msra.mxu0 %v2477
    %2511 = vmatprep.subr.bf16.mxu0 0
    %2512 = vmatpush1.bf16.msra.mxu0 0
    %2513 = vmatprep.subr.bf16.mxu0 0
    %2514 = vmatpush1.bf16.msra.mxu0 0
    %2515 = vmatprep.subr.bf16.mxu0 0
    %2516 = vmatpush1.bf16.msra.mxu0 0
    %2517 = vmatprep.subr.bf16.mxu0 0
    %2518 = vmatpush1.bf16.msra.mxu0 0
    %2519 = vmatprep.subr.bf16.mxu0 0
    %2520 = vmatpush1.bf16.msra.mxu0 0
    %2521 = vmatprep.subr.bf16.mxu0 0
    %2522 = vmatpush1.bf16.msra.mxu0 0
    %2523 = vmatprep.subr.bf16.mxu0 0
    %2524 = vmatpush1.bf16.msra.mxu0 0
    %2525 = vmatprep.subr.bf16.mxu0 0
    %2526 = vmatpush1.bf16.msra.mxu0 0
    %2527 = vmatprep.mubr.bf16.mxu0 0
    %2528 = vmatmul.mubr.bf16.gmra.mrb[0].mxu0 %v386
    %v2529 = vpop.f32.mrb[0].mxu0
    %v2530 = vadd.f32 0.0, %v2529
    %v2531 = vpop.f32.mrb[0].mxu0
    %v2532 = vpop.f32.mrb[0].mxu0
    %v2533 = vadd.f32 0.0, %v2532
    %v2534 = vpop.f32.mrb[0].mxu0
    %2535 = vmatprep.mubr.bf16.mxu0 0
    %2536 = vmatmul.mubr.bf16.gmra.mrb[0].mxu0 %v387
    %v2537 = vpop.f32.mrb[0].mxu0
    %v2538 = vadd.f32 0.0, %v2537
    %v2539 = vpop.f32.mrb[0].mxu0
    %v2540 = vpop.f32.mrb[0].mxu0
    %v2541 = vadd.f32 0.0, %v2540
    %v2542 = vpop.f32.mrb[0].mxu0
    %2543 = vmatprep.mubr.bf16.mxu0 0
    %2544 = vmatmul.mubr.bf16.gmra.mrb[0].mxu0 %v388
    %v2545 = vpop.f32.mrb[0].mxu0
    %v2546 = vadd.f32 0.0, %v2545
    %v2547 = vpop.f32.mrb[0].mxu0
    %v2548 = vpop.f32.mrb[0].mxu0
    %v2549 = vadd.f32 0.0, %v2548
    %v2550 = vpop.f32.mrb[0].mxu0
    %2551 = vmatprep.mubr.bf16.mxu0 0
    %2552 = vmatmul.mubr.bf16.gmra.mrb[0].mxu0 %v389
    %v2553 = vpop.f32.mrb[0].mxu0
    %v2554 = vadd.f32 0.0, %v2553
    %v2555 = vpop.f32.mrb[0].mxu0
    %v2556 = vpop.f32.mrb[0].mxu0
    %v2557 = vadd.f32 0.0, %v2556
    %v2558 = vpop.f32.mrb[0].mxu0
    %2559 = vmatprep.mubr.bf16.mxu0 0
    %2560 = vmatmul.mubr.bf16.gmra.mrb[0].mxu0 %v390
    %v2561 = vpop.f32.mrb[0].mxu0
    %v2562 = vadd.f32 0.0, %v2561
    %v2563 = vpop.f32.mrb[0].mxu0
    %v2564 = vpop.f32.mrb[0].mxu0
    %v2565 = vadd.f32 0.0, %v2564
    %v2566 = vpop.f32.mrb[0].mxu0
    %2567 = vmatprep.mubr.bf16.mxu0 0
    %2568 = vmatmul.mubr.bf16.gmra.mrb[0].mxu0 %v391
    %v2569 = vpop.f32.mrb[0].mxu0
    %v2570 = vadd.f32 0.0, %v2569
    %v2571 = vpop.f32.mrb[0].mxu0
    %v2572 = vpop.f32.mrb[0].mxu0
    %v2573 = vadd.f32 0.0, %v2572
    %v2574 = vpop.f32.mrb[0].mxu0
    %2575 = vmatprep.mubr.bf16.mxu0 0
    %2576 = vmatmul.mubr.bf16.gmra.mrb[0].mxu0 %v392
    %v2577 = vpop.f32.mrb[0].mxu0
    %v2578 = vadd.f32 0.0, %v2577
    %v2579 = vpop.f32.mrb[0].mxu0
    %v2580 = vpop.f32.mrb[0].mxu0
    %v2581 = vadd.f32 0.0, %v2580
    %v2582 = vpop.f32.mrb[0].mxu0
    %2583 = vmatprep.mubr.bf16.mxu0 0
    %2584 = vmatmul.mubr.bf16.gmra.mrb[0].mxu0 %v393
    %v2585 = vpop.f32.mrb[0].mxu0
    %v2586 = vadd.f32 0.0, %v2585
    %v2587 = vpop.f32.mrb[0].mxu0
    %v2588 = vpop.f32.mrb[0].mxu0
    %v2589 = vadd.f32 0.0, %v2588
    %v2590 = vpop.f32.mrb[0].mxu0
    %2591 = vdwg.mxu0
    %v2592 = vpack.c.bf16 %v2533, %v2530
    %v2593 = vpack.c.bf16 %v2541, %v2538
    %v2594 = vpack.c.bf16 %v2549, %v2546
    %v2595 = vpack.c.bf16 %v2557, %v2554
    %v2596 = vpack.c.bf16 %v2565, %v2562
    %v2597 = vpack.c.bf16 %v2573, %v2570
    %v2598 = vpack.c.bf16 %v2581, %v2578
    %v2599 = vpack.c.bf16 %v2589, %v2586
    %s2600 = scalar_lea.vmem [#allocation4], 448
    %v2601 = vld [vmem:[%s2600] sm:$0xf]
    %v2602 = vld [vmem:[%s2600 + $0x4] sm:$0xf]
    %v2603 = vld [vmem:[%s2600 + $0x8] sm:$0xf]
    %v2604 = vld [vmem:[%s2600 + $0xc] sm:$0xf]
    %v2605 = vld [vmem:[%s2600 + $0x10] sm:$0xf]
    %v2606 = vld [vmem:[%s2600 + $0x14] sm:$0xf]
    %v2607 = vld [vmem:[%s2600 + $0x18] sm:$0xf]
    %v2608 = vld [vmem:[%s2600 + $0x1c] sm:$0xf]
    %v2609 = vld [vmem:[%s2600 + $0x20] sm:$0xf]
    %v2610 = vld [vmem:[%s2600 + $0x24] sm:$0xf]
    %v2611 = vld [vmem:[%s2600 + $0x28] sm:$0xf]
    %v2612 = vld [vmem:[%s2600 + $0x2c] sm:$0xf]
    %v2613 = vld [vmem:[%s2600 + $0x30] sm:$0xf]
    %v2614 = vld [vmem:[%s2600 + $0x34] sm:$0xf]
    %v2615 = vld [vmem:[%s2600 + $0x38] sm:$0xf]
    %v2616 = vld [vmem:[%s2600 + $0x3c] sm:$0xf]
    %v2633 = vunpack.c.l.b16 %v2601
    %v2634 = vunpack.c.l.b16 %v2602
    %v2635 = vunpack.c.l.b16 %v2603
    %v2636 = vunpack.c.l.b16 %v2604
    %v2637 = vunpack.c.l.b16 %v2605
    %v2638 = vunpack.c.l.b16 %v2606
    %v2639 = vunpack.c.l.b16 %v2607
    %v2640 = vunpack.c.l.b16 %v2608
    %v2641 = vunpack.c.l.b16 %v2609
    %v2642 = vunpack.c.l.b16 %v2610
    %v2643 = vunpack.c.l.b16 %v2611
    %v2644 = vunpack.c.l.b16 %v2612
    %v2645 = vunpack.c.l.b16 %v2613
    %v2646 = vunpack.c.l.b16 %v2614
    %v2647 = vunpack.c.l.b16 %v2615
    %v2648 = vunpack.c.l.b16 %v2616
    %v2649 = vpack.c.b16 %v2634, %v2633
    %v2650 = vpack.c.b16 %v2636, %v2635
    %v2651 = vpack.c.b16 %v2638, %v2637
    %v2652 = vpack.c.b16 %v2640, %v2639
    %v2653 = vpack.c.b16 %v2642, %v2641
    %v2654 = vpack.c.b16 %v2644, %v2643
    %v2655 = vpack.c.b16 %v2646, %v2645
    %v2656 = vpack.c.b16 %v2648, %v2647
    %2665 = vmatprep.subr.bf16.mxu0 0
    %2666 = vmatpush1.bf16.msra.mxu0 %v2649
    %2667 = vmatprep.subr.bf16.mxu0 0
    %2668 = vmatpush1.bf16.msra.mxu0 %v2650
    %2669 = vmatprep.subr.bf16.mxu0 0
    %2670 = vmatpush1.bf16.msra.mxu0 %v2651
    %2671 = vmatprep.subr.bf16.mxu0 0
    %2672 = vmatpush1.bf16.msra.mxu0 %v2652
    %2673 = vmatprep.subr.bf16.mxu0 0
    %2674 = vmatpush1.bf16.msra.mxu0 %v2653
    %2675 = vmatprep.subr.bf16.mxu0 0
    %2676 = vmatpush1.bf16.msra.mxu0 %v2654
    %2677 = vmatprep.subr.bf16.mxu0 0
    %2678 = vmatpush1.bf16.msra.mxu0 %v2655
    %2679 = vmatprep.subr.bf16.mxu0 0
    %2680 = vmatpush1.bf16.msra.mxu0 %v2656
    %2681 = vmatprep.subr.bf16.mxu0 0
    %2682 = vmatpush1.bf16.msra.mxu0 0
    %2683 = vmatprep.subr.bf16.mxu0 0
    %2684 = vmatpush1.bf16.msra.mxu0 0
    %2685 = vmatprep.subr.bf16.mxu0 0
    %2686 = vmatpush1.bf16.msra.mxu0 0
    %2687 = vmatprep.subr.bf16.mxu0 0
    %2688 = vmatpush1.bf16.msra.mxu0 0
    %2689 = vmatprep.subr.bf16.mxu0 0
    %2690 = vmatpush1.bf16.msra.mxu0 0
    %2691 = vmatprep.subr.bf16.mxu0 0
    %2692 = vmatpush1.bf16.msra.mxu0 0
    %2693 = vmatprep.subr.bf16.mxu0 0
    %2694 = vmatpush1.bf16.msra.mxu0 0
    %2695 = vmatprep.subr.bf16.mxu0 0
    %2696 = vmatpush1.bf16.msra.mxu0 0
    %2697 = vmatprep.mubr.bf16.mxu0 0
    %2698 = vmatmul.mubr.bf16.gmra.mrb[0].mxu0 %v2592
    %v2699 = vpop.f32.mrb[0].mxu0
    %v2700 = vadd.f32 0.0, %v2699
    %v2701 = vpop.f32.mrb[0].mxu0
    %v2702 = vpop.f32.mrb[0].mxu0
    %v2703 = vadd.f32 0.0, %v2702
    %v2704 = vpop.f32.mrb[0].mxu0
    %2705 = vmatprep.mubr.bf16.mxu0 0
    %2706 = vmatmul.mubr.bf16.gmra.mrb[0].mxu0 %v2593
    %v2707 = vpop.f32.mrb[0].mxu0
    %v2708 = vadd.f32 0.0, %v2707
    %v2709 = vpop.f32.mrb[0].mxu0
    %v2710 = vpop.f32.mrb[0].mxu0
    %v2711 = vadd.f32 0.0, %v2710
    %v2712 = vpop.f32.mrb[0].mxu0
    %2713 = vmatprep.mubr.bf16.mxu0 0
    %2714 = vmatmul.mubr.bf16.gmra.mrb[0].mxu0 %v2594
    %v2715 = vpop.f32.mrb[0].mxu0
    %v2716 = vadd.f32 0.0, %v2715
    %v2717 = vpop.f32.mrb[0].mxu0
    %v2718 = vpop.f32.mrb[0].mxu0
    %v2719 = vadd.f32 0.0, %v2718
    %v2720 = vpop.f32.mrb[0].mxu0
    %2721 = vmatprep.mubr.bf16.mxu0 0
    %2722 = vmatmul.mubr.bf16.gmra.mrb[0].mxu0 %v2595
    %v2723 = vpop.f32.mrb[0].mxu0
    %v2724 = vadd.f32 0.0, %v2723
    %v2725 = vpop.f32.mrb[0].mxu0
    %v2726 = vpop.f32.mrb[0].mxu0
    %v2727 = vadd.f32 0.0, %v2726
    %v2728 = vpop.f32.mrb[0].mxu0
    %2729 = vmatprep.mubr.bf16.mxu0 0
    %2730 = vmatmul.mubr.bf16.gmra.mrb[0].mxu0 %v2596
    %v2731 = vpop.f32.mrb[0].mxu0
    %v2732 = vadd.f32 0.0, %v2731
    %v2733 = vpop.f32.mrb[0].mxu0
    %v2734 = vpop.f32.mrb[0].mxu0
    %v2735 = vadd.f32 0.0, %v2734
    %v2736 = vpop.f32.mrb[0].mxu0
    %2737 = vmatprep.mubr.bf16.mxu0 0
    %2738 = vmatmul.mubr.bf16.gmra.mrb[0].mxu0 %v2597
    %v2739 = vpop.f32.mrb[0].mxu0
    %v2740 = vadd.f32 0.0, %v2739
    %v2741 = vpop.f32.mrb[0].mxu0
    %v2742 = vpop.f32.mrb[0].mxu0
    %v2743 = vadd.f32 0.0, %v2742
    %v2744 = vpop.f32.mrb[0].mxu0
    %2745 = vmatprep.mubr.bf16.mxu0 0
    %2746 = vmatmul.mubr.bf16.gmra.mrb[0].mxu0 %v2598
    %v2747 = vpop.f32.mrb[0].mxu0
    %v2748 = vadd.f32 0.0, %v2747
    %v2749 = vpop.f32.mrb[0].mxu0
    %v2750 = vpop.f32.mrb[0].mxu0
    %v2751 = vadd.f32 0.0, %v2750
    %v2752 = vpop.f32.mrb[0].mxu0
    %2753 = vmatprep.mubr.bf16.mxu0 0
    %2754 = vmatmul.mubr.bf16.gmra.mrb[0].mxu0 %v2599
    %v2755 = vpop.f32.mrb[0].mxu0
    %v2756 = vadd.f32 0.0, %v2755
    %v2757 = vpop.f32.mrb[0].mxu0
    %v2758 = vpop.f32.mrb[0].mxu0
    %v2759 = vadd.f32 0.0, %v2758
    %v2760 = vpop.f32.mrb[0].mxu0
    %2761 = vdwg.mxu0
    %v2778 = vunpack.c.l.b16 %v2479
    %v2779 = vunpack.c.l.b16 %v2480
    %v2780 = vunpack.c.l.b16 %v2481
    %v2781 = vunpack.c.l.b16 %v2482
    %v2782 = vunpack.c.l.b16 %v2483
    %v2783 = vunpack.c.l.b16 %v2484
    %v2784 = vunpack.c.l.b16 %v2485
    %v2785 = vunpack.c.l.b16 %v2486
    %v2786 = vunpack.c.l.b16 %v2487
    %v2787 = vunpack.c.l.b16 %v2488
    %v2788 = vunpack.c.l.b16 %v2489
    %v2789 = vunpack.c.l.b16 %v2490
    %v2790 = vunpack.c.l.b16 %v2491
    %v2791 = vunpack.c.l.b16 %v2492
    %v2792 = vunpack.c.l.b16 %v2493
    %v2793 = vunpack.c.l.b16 %v2494
    %v2794 = vpack.c.b16 %v2779, %v2778
    %v2795 = vpack.c.b16 %v2781, %v2780
    %v2796 = vpack.c.b16 %v2783, %v2782
    %v2797 = vpack.c.b16 %v2785, %v2784
    %v2798 = vpack.c.b16 %v2787, %v2786
    %v2799 = vpack.c.b16 %v2789, %v2788
    %v2800 = vpack.c.b16 %v2791, %v2790
    %v2801 = vpack.c.b16 %v2793, %v2792
    %2810 = vmatprep.subr.bf16.mxu0 0
    %2811 = vmatpush1.bf16.msra.mxu0 %v2794
    %2812 = vmatprep.subr.bf16.mxu0 0
    %2813 = vmatpush1.bf16.msra.mxu0 %v2795
    %2814 = vmatprep.subr.bf16.mxu0 0
    %2815 = vmatpush1.bf16.msra.mxu0 %v2796
    %2816 = vmatprep.subr.bf16.mxu0 0
    %2817 = vmatpush1.bf16.msra.mxu0 %v2797
    %2818 = vmatprep.subr.bf16.mxu0 0
    %2819 = vmatpush1.bf16.msra.mxu0 %v2798
    %2820 = vmatprep.subr.bf16.mxu0 0
    %2821 = vmatpush1.bf16.msra.mxu0 %v2799
    %2822 = vmatprep.subr.bf16.mxu0 0
    %2823 = vmatpush1.bf16.msra.mxu0 %v2800
    %2824 = vmatprep.subr.bf16.mxu0 0
    %2825 = vmatpush1.bf16.msra.mxu0 %v2801
    %2826 = vmatprep.subr.bf16.mxu0 0
    %2827 = vmatpush1.bf16.msra.mxu0 0
    %2828 = vmatprep.subr.bf16.mxu0 0
    %2829 = vmatpush1.bf16.msra.mxu0 0
    %2830 = vmatprep.subr.bf16.mxu0 0
    %2831 = vmatpush1.bf16.msra.mxu0 0
    %2832 = vmatprep.subr.bf16.mxu0 0
    %2833 = vmatpush1.bf16.msra.mxu0 0
    %2834 = vmatprep.subr.bf16.mxu0 0
    %2835 = vmatpush1.bf16.msra.mxu0 0
    %2836 = vmatprep.subr.bf16.mxu0 0
    %2837 = vmatpush1.bf16.msra.mxu0 0
    %2838 = vmatprep.subr.bf16.mxu0 0
    %2839 = vmatpush1.bf16.msra.mxu0 0
    %2840 = vmatprep.subr.bf16.mxu0 0
    %2841 = vmatpush1.bf16.msra.mxu0 0
    %2842 = vmatprep.mubr.bf16.mxu0 0
    %2843 = vmatmul.mubr.bf16.gmra.mrb[0].mxu0 %v2470
    %v2844 = vpop.f32.mrb[0].mxu0
    %v2845 = vadd.f32 %v2700, %v2844
    %v2846 = vpop.f32.mrb[0].mxu0
    %v2847 = vpop.f32.mrb[0].mxu0
    %v2848 = vadd.f32 %v2703, %v2847
    %v2849 = vpop.f32.mrb[0].mxu0
    %2850 = vmatprep.mubr.bf16.mxu0 0
    %2851 = vmatmul.mubr.bf16.gmra.mrb[0].mxu0 %v2471
    %v2852 = vpop.f32.mrb[0].mxu0
    %v2853 = vadd.f32 %v2708, %v2852
    %v2854 = vpop.f32.mrb[0].mxu0
    %v2855 = vpop.f32.mrb[0].mxu0
    %v2856 = vadd.f32 %v2711, %v2855
    %v2857 = vpop.f32.mrb[0].mxu0
    %2858 = vmatprep.mubr.bf16.mxu0 0
    %2859 = vmatmul.mubr.bf16.gmra.mrb[0].mxu0 %v2472
    %v2860 = vpop.f32.mrb[0].mxu0
    %v2861 = vadd.f32 %v2716, %v2860
    %v2862 = vpop.f32.mrb[0].mxu0
    %v2863 = vpop.f32.mrb[0].mxu0
    %v2864 = vadd.f32 %v2719, %v2863
    %v2865 = vpop.f32.mrb[0].mxu0
    %2866 = vmatprep.mubr.bf16.mxu0 0
    %2867 = vmatmul.mubr.bf16.gmra.mrb[0].mxu0 %v2473
    %v2868 = vpop.f32.mrb[0].mxu0
    %v2869 = vadd.f32 %v2724, %v2868
    %v2870 = vpop.f32.mrb[0].mxu0
    %v2871 = vpop.f32.mrb[0].mxu0
    %v2872 = vadd.f32 %v2727, %v2871
    %v2873 = vpop.f32.mrb[0].mxu0
    %2874 = vmatprep.mubr.bf16.mxu0 0
    %2875 = vmatmul.mubr.bf16.gmra.mrb[0].mxu0 %v2474
    %v2876 = vpop.f32.mrb[0].mxu0
    %v2877 = vadd.f32 %v2732, %v2876
    %v2878 = vpop.f32.mrb[0].mxu0
    %v2879 = vpop.f32.mrb[0].mxu0
    %v2880 = vadd.f32 %v2735, %v2879
    %v2881 = vpop.f32.mrb[0].mxu0
    %2882 = vmatprep.mubr.bf16.mxu0 0
    %2883 = vmatmul.mubr.bf16.gmra.mrb[0].mxu0 %v2475
    %v2884 = vpop.f32.mrb[0].mxu0
    %v2885 = vadd.f32 %v2740, %v2884
    %v2886 = vpop.f32.mrb[0].mxu0
    %v2887 = vpop.f32.mrb[0].mxu0
    %v2888 = vadd.f32 %v2743, %v2887
    %v2889 = vpop.f32.mrb[0].mxu0
    %2890 = vmatprep.mubr.bf16.mxu0 0
    %2891 = vmatmul.mubr.bf16.gmra.mrb[0].mxu0 %v2476
    %v2892 = vpop.f32.mrb[0].mxu0
    %v2893 = vadd.f32 %v2748, %v2892
    %v2894 = vpop.f32.mrb[0].mxu0
    %v2895 = vpop.f32.mrb[0].mxu0
    %v2896 = vadd.f32 %v2751, %v2895
    %v2897 = vpop.f32.mrb[0].mxu0
    %2898 = vmatprep.mubr.bf16.mxu0 0
    %2899 = vmatmul.mubr.bf16.gmra.mrb[0].mxu0 %v2477
    %v2900 = vpop.f32.mrb[0].mxu0
    %v2901 = vadd.f32 %v2756, %v2900
    %v2902 = vpop.f32.mrb[0].mxu0
    %v2903 = vpop.f32.mrb[0].mxu0
    %v2904 = vadd.f32 %v2759, %v2903
    %v2905 = vpop.f32.mrb[0].mxu0
    %2906 = vdwg.mxu0
    %2907 = vmatprep.subr.bf16.mxu0 0
    %2908 = vmatpush1.bf16.msra.mxu0 %v2592
    %2909 = vmatprep.subr.bf16.mxu0 0
    %2910 = vmatpush1.bf16.msra.mxu0 %v2593
    %2911 = vmatprep.subr.bf16.mxu0 0
    %2912 = vmatpush1.bf16.msra.mxu0 %v2594
    %2913 = vmatprep.subr.bf16.mxu0 0
    %2914 = vmatpush1.bf16.msra.mxu0 %v2595
    %2915 = vmatprep.subr.bf16.mxu0 0
    %2916 = vmatpush1.bf16.msra.mxu0 %v2596
    %2917 = vmatprep.subr.bf16.mxu0 0
    %2918 = vmatpush1.bf16.msra.mxu0 %v2597
    %2919 = vmatprep.subr.bf16.mxu0 0
    %2920 = vmatpush1.bf16.msra.mxu0 %v2598
    %2921 = vmatprep.subr.bf16.mxu0 0
    %2922 = vmatpush1.bf16.msra.mxu0 %v2599
    %2923 = vmatprep.subr.bf16.mxu0 0
    %2924 = vmatpush1.bf16.msra.mxu0 0
    %2925 = vmatprep.subr.bf16.mxu0 0
    %2926 = vmatpush1.bf16.msra.mxu0 0
    %2927 = vmatprep.subr.bf16.mxu0 0
    %2928 = vmatpush1.bf16.msra.mxu0 0
    %2929 = vmatprep.subr.bf16.mxu0 0
    %2930 = vmatpush1.bf16.msra.mxu0 0
    %2931 = vmatprep.subr.bf16.mxu0 0
    %2932 = vmatpush1.bf16.msra.mxu0 0
    %2933 = vmatprep.subr.bf16.mxu0 0
    %2934 = vmatpush1.bf16.msra.mxu0 0
    %2935 = vmatprep.subr.bf16.mxu0 0
    %2936 = vmatpush1.bf16.msra.mxu0 0
    %2937 = vmatprep.subr.bf16.mxu0 0
    %2938 = vmatpush1.bf16.msra.mxu0 0
    %2939 = vmatprep.mubr.bf16.mxu0 0
    %2940 = vmatmul.mubr.bf16.gmra.mrb[0].mxu0 %v386
    %v2941 = vpop.f32.mrb[0].mxu0
    %v2942 = vadd.f32 0.0, %v2941
    %v2943 = vpop.f32.mrb[0].mxu0
    %v2944 = vpop.f32.mrb[0].mxu0
    %v2945 = vadd.f32 0.0, %v2944
    %v2946 = vpop.f32.mrb[0].mxu0
    %2947 = vmatprep.mubr.bf16.mxu0 0
    %2948 = vmatmul.mubr.bf16.gmra.mrb[0].mxu0 %v387
    %v2949 = vpop.f32.mrb[0].mxu0
    %v2950 = vadd.f32 0.0, %v2949
    %v2951 = vpop.f32.mrb[0].mxu0
    %v2952 = vpop.f32.mrb[0].mxu0
    %v2953 = vadd.f32 0.0, %v2952
    %v2954 = vpop.f32.mrb[0].mxu0
    %2955 = vmatprep.mubr.bf16.mxu0 0
    %2956 = vmatmul.mubr.bf16.gmra.mrb[0].mxu0 %v388
    %v2957 = vpop.f32.mrb[0].mxu0
    %v2958 = vadd.f32 0.0, %v2957
    %v2959 = vpop.f32.mrb[0].mxu0
    %v2960 = vpop.f32.mrb[0].mxu0
    %v2961 = vadd.f32 0.0, %v2960
    %v2962 = vpop.f32.mrb[0].mxu0
    %2963 = vmatprep.mubr.bf16.mxu0 0
    %2964 = vmatmul.mubr.bf16.gmra.mrb[0].mxu0 %v389
    %v2965 = vpop.f32.mrb[0].mxu0
    %v2966 = vadd.f32 0.0, %v2965
    %v2967 = vpop.f32.mrb[0].mxu0
    %v2968 = vpop.f32.mrb[0].mxu0
    %v2969 = vadd.f32 0.0, %v2968
    %v2970 = vpop.f32.mrb[0].mxu0
    %2971 = vmatprep.mubr.bf16.mxu0 0
    %2972 = vmatmul.mubr.bf16.gmra.mrb[0].mxu0 %v390
    %v2973 = vpop.f32.mrb[0].mxu0
    %v2974 = vadd.f32 0.0, %v2973
    %v2975 = vpop.f32.mrb[0].mxu0
    %v2976 = vpop.f32.mrb[0].mxu0
    %v2977 = vadd.f32 0.0, %v2976
    %v2978 = vpop.f32.mrb[0].mxu0
    %2979 = vmatprep.mubr.bf16.mxu0 0
    %2980 = vmatmul.mubr.bf16.gmra.mrb[0].mxu0 %v391
    %v2981 = vpop.f32.mrb[0].mxu0
    %v2982 = vadd.f32 0.0, %v2981
    %v2983 = vpop.f32.mrb[0].mxu0
    %v2984 = vpop.f32.mrb[0].mxu0
    %v2985 = vadd.f32 0.0, %v2984
    %v2986 = vpop.f32.mrb[0].mxu0
    %2987 = vmatprep.mubr.bf16.mxu0 0
    %2988 = vmatmul.mubr.bf16.gmra.mrb[0].mxu0 %v392
    %v2989 = vpop.f32.mrb[0].mxu0
    %v2990 = vadd.f32 0.0, %v2989
    %v2991 = vpop.f32.mrb[0].mxu0
    %v2992 = vpop.f32.mrb[0].mxu0
    %v2993 = vadd.f32 0.0, %v2992
    %v2994 = vpop.f32.mrb[0].mxu0
    %2995 = vmatprep.mubr.bf16.mxu0 0
    %2996 = vmatmul.mubr.bf16.gmra.mrb[0].mxu0 %v393
    %v2997 = vpop.f32.mrb[0].mxu0
    %v2998 = vadd.f32 0.0, %v2997
    %v2999 = vpop.f32.mrb[0].mxu0
    %v3000 = vpop.f32.mrb[0].mxu0
    %v3001 = vadd.f32 0.0, %v3000
    %v3002 = vpop.f32.mrb[0].mxu0
    %3003 = vdwg.mxu0
    %v3004 = vmul.f32 %v2942, 2.0
    %v3005 = vmul.f32 %v2945, 2.0
    %v3006 = vmul.f32 %v2950, 2.0
    %v3007 = vmul.f32 %v2953, 2.0
    %v3008 = vmul.f32 %v2958, 2.0
    %v3009 = vmul.f32 %v2961, 2.0
    %v3010 = vmul.f32 %v2966, 2.0
    %v3011 = vmul.f32 %v2969, 2.0
    %v3012 = vmul.f32 %v2974, 2.0
    %v3013 = vmul.f32 %v2977, 2.0
    %v3014 = vmul.f32 %v2982, 2.0
    %v3015 = vmul.f32 %v2985, 2.0
    %v3016 = vmul.f32 %v2990, 2.0
    %v3017 = vmul.f32 %v2993, 2.0
    %v3018 = vmul.f32 %v2998, 2.0
    %v3019 = vmul.f32 %v3001, 2.0
    %v3020 = vsub.f32 %v3004, %v2454
    %v3021 = vsub.f32 %v3005, %v2455
    %v3022 = vsub.f32 %v3006, %v2456
    %v3023 = vsub.f32 %v3007, %v2457
    %v3024 = vsub.f32 %v3008, %v2458
    %v3025 = vsub.f32 %v3009, %v2459
    %v3026 = vsub.f32 %v3010, %v2460
    %v3027 = vsub.f32 %v3011, %v2461
    %v3028 = vsub.f32 %v3012, %v2462
    %v3029 = vsub.f32 %v3013, %v2463
    %v3030 = vsub.f32 %v3014, %v2464
    %v3031 = vsub.f32 %v3015, %v2465
    %v3032 = vsub.f32 %v3016, %v2466
    %v3033 = vsub.f32 %v3017, %v2467
    %v3034 = vsub.f32 %v3018, %v2468
    %v3035 = vsub.f32 %v3019, %v2469
    %v3036 = vpack.c.bf16 %v3021, %v3020
    %v3037 = vpack.c.bf16 %v3023, %v3022
    %v3038 = vpack.c.bf16 %v3025, %v3024
    %v3039 = vpack.c.bf16 %v3027, %v3026
    %v3040 = vpack.c.bf16 %v3029, %v3028
    %v3041 = vpack.c.bf16 %v3031, %v3030
    %v3042 = vpack.c.bf16 %v3033, %v3032
    %v3043 = vpack.c.bf16 %v3035, %v3034
    %s3044 = scalar_lea.vmem [#allocation4], 512
    %v3045 = vld [vmem:[%s3044] sm:$0xf]
    %v3046 = vld [vmem:[%s3044 + $0x4] sm:$0xf]
    %v3047 = vld [vmem:[%s3044 + $0x8] sm:$0xf]
    %v3048 = vld [vmem:[%s3044 + $0xc] sm:$0xf]
    %v3049 = vld [vmem:[%s3044 + $0x10] sm:$0xf]
    %v3050 = vld [vmem:[%s3044 + $0x14] sm:$0xf]
    %v3051 = vld [vmem:[%s3044 + $0x18] sm:$0xf]
    %v3052 = vld [vmem:[%s3044 + $0x1c] sm:$0xf]
    %v3053 = vld [vmem:[%s3044 + $0x20] sm:$0xf]
    %v3054 = vld [vmem:[%s3044 + $0x24] sm:$0xf]
    %v3055 = vld [vmem:[%s3044 + $0x28] sm:$0xf]
    %v3056 = vld [vmem:[%s3044 + $0x2c] sm:$0xf]
    %v3057 = vld [vmem:[%s3044 + $0x30] sm:$0xf]
    %v3058 = vld [vmem:[%s3044 + $0x34] sm:$0xf]
    %v3059 = vld [vmem:[%s3044 + $0x38] sm:$0xf]
    %v3060 = vld [vmem:[%s3044 + $0x3c] sm:$0xf]
    %v3077 = vunpack.c.l.b16 %v3045
    %v3078 = vunpack.c.l.b16 %v3046
    %v3079 = vunpack.c.l.b16 %v3047
    %v3080 = vunpack.c.l.b16 %v3048
    %v3081 = vunpack.c.l.b16 %v3049
    %v3082 = vunpack.c.l.b16 %v3050
    %v3083 = vunpack.c.l.b16 %v3051
    %v3084 = vunpack.c.l.b16 %v3052
    %v3085 = vunpack.c.l.b16 %v3053
    %v3086 = vunpack.c.l.b16 %v3054
    %v3087 = vunpack.c.l.b16 %v3055
    %v3088 = vunpack.c.l.b16 %v3056
    %v3089 = vunpack.c.l.b16 %v3057
    %v3090 = vunpack.c.l.b16 %v3058
    %v3091 = vunpack.c.l.b16 %v3059
    %v3092 = vunpack.c.l.b16 %v3060
    %v3093 = vpack.c.b16 %v3078, %v3077
    %v3094 = vpack.c.b16 %v3080, %v3079
    %v3095 = vpack.c.b16 %v3082, %v3081
    %v3096 = vpack.c.b16 %v3084, %v3083
    %v3097 = vpack.c.b16 %v3086, %v3085
    %v3098 = vpack.c.b16 %v3088, %v3087
    %v3099 = vpack.c.b16 %v3090, %v3089
    %v3100 = vpack.c.b16 %v3092, %v3091
    %3109 = vmatprep.subr.bf16.mxu0 0
    %3110 = vmatpush1.bf16.msra.mxu0 %v3093
    %3111 = vmatprep.subr.bf16.mxu0 0
    %3112 = vmatpush1.bf16.msra.mxu0 %v3094
    %3113 = vmatprep.subr.bf16.mxu0 0
    %3114 = vmatpush1.bf16.msra.mxu0 %v3095
    %3115 = vmatprep.subr.bf16.mxu0 0
    %3116 = vmatpush1.bf16.msra.mxu0 %v3096
    %3117 = vmatprep.subr.bf16.mxu0 0
    %3118 = vmatpush1.bf16.msra.mxu0 %v3097
    %3119 = vmatprep.subr.bf16.mxu0 0
    %3120 = vmatpush1.bf16.msra.mxu0 %v3098
    %3121 = vmatprep.subr.bf16.mxu0 0
    %3122 = vmatpush1.bf16.msra.mxu0 %v3099
    %3123 = vmatprep.subr.bf16.mxu0 0
    %3124 = vmatpush1.bf16.msra.mxu0 %v3100
    %3125 = vmatprep.subr.bf16.mxu0 0
    %3126 = vmatpush1.bf16.msra.mxu0 0
    %3127 = vmatprep.subr.bf16.mxu0 0
    %3128 = vmatpush1.bf16.msra.mxu0 0
    %3129 = vmatprep.subr.bf16.mxu0 0
    %3130 = vmatpush1.bf16.msra.mxu0 0
    %3131 = vmatprep.subr.bf16.mxu0 0
    %3132 = vmatpush1.bf16.msra.mxu0 0
    %3133 = vmatprep.subr.bf16.mxu0 0
    %3134 = vmatpush1.bf16.msra.mxu0 0
    %3135 = vmatprep.subr.bf16.mxu0 0
    %3136 = vmatpush1.bf16.msra.mxu0 0
    %3137 = vmatprep.subr.bf16.mxu0 0
    %3138 = vmatpush1.bf16.msra.mxu0 0
    %3139 = vmatprep.subr.bf16.mxu0 0
    %3140 = vmatpush1.bf16.msra.mxu0 0
    %3141 = vmatprep.mubr.bf16.mxu0 0
    %3142 = vmatmul.mubr.bf16.gmra.mrb[0].mxu0 %v3036
    %v3143 = vpop.f32.mrb[0].mxu0
    %v3144 = vadd.f32 0.0, %v3143
    %v3145 = vpop.f32.mrb[0].mxu0
    %v3146 = vpop.f32.mrb[0].mxu0
    %v3147 = vadd.f32 0.0, %v3146
    %v3148 = vpop.f32.mrb[0].mxu0
    %3149 = vmatprep.mubr.bf16.mxu0 0
    %3150 = vmatmul.mubr.bf16.gmra.mrb[0].mxu0 %v3037
    %v3151 = vpop.f32.mrb[0].mxu0
    %v3152 = vadd.f32 0.0, %v3151
    %v3153 = vpop.f32.mrb[0].mxu0
    %v3154 = vpop.f32.mrb[0].mxu0
    %v3155 = vadd.f32 0.0, %v3154
    %v3156 = vpop.f32.mrb[0].mxu0
    %3157 = vmatprep.mubr.bf16.mxu0 0
    %3158 = vmatmul.mubr.bf16.gmra.mrb[0].mxu0 %v3038
    %v3159 = vpop.f32.mrb[0].mxu0
    %v3160 = vadd.f32 0.0, %v3159
    %v3161 = vpop.f32.mrb[0].mxu0
    %v3162 = vpop.f32.mrb[0].mxu0
    %v3163 = vadd.f32 0.0, %v3162
    %v3164 = vpop.f32.mrb[0].mxu0
    %3165 = vmatprep.mubr.bf16.mxu0 0
    %3166 = vmatmul.mubr.bf16.gmra.mrb[0].mxu0 %v3039
    %v3167 = vpop.f32.mrb[0].mxu0
    %v3168 = vadd.f32 0.0, %v3167
    %v3169 = vpop.f32.mrb[0].mxu0
    %v3170 = vpop.f32.mrb[0].mxu0
    %v3171 = vadd.f32 0.0, %v3170
    %v3172 = vpop.f32.mrb[0].mxu0
    %3173 = vmatprep.mubr.bf16.mxu0 0
    %3174 = vmatmul.mubr.bf16.gmra.mrb[0].mxu0 %v3040
    %v3175 = vpop.f32.mrb[0].mxu0
    %v3176 = vadd.f32 0.0, %v3175
    %v3177 = vpop.f32.mrb[0].mxu0
    %v3178 = vpop.f32.mrb[0].mxu0
    %v3179 = vadd.f32 0.0, %v3178
    %v3180 = vpop.f32.mrb[0].mxu0
    %3181 = vmatprep.mubr.bf16.mxu0 0
    %3182 = vmatmul.mubr.bf16.gmra.mrb[0].mxu0 %v3041
    %v3183 = vpop.f32.mrb[0].mxu0
    %v3184 = vadd.f32 0.0, %v3183
    %v3185 = vpop.f32.mrb[0].mxu0
    %v3186 = vpop.f32.mrb[0].mxu0
    %v3187 = vadd.f32 0.0, %v3186
    %v3188 = vpop.f32.mrb[0].mxu0
    %3189 = vmatprep.mubr.bf16.mxu0 0
    %3190 = vmatmul.mubr.bf16.gmra.mrb[0].mxu0 %v3042
    %v3191 = vpop.f32.mrb[0].mxu0
    %v3192 = vadd.f32 0.0, %v3191
    %v3193 = vpop.f32.mrb[0].mxu0
    %v3194 = vpop.f32.mrb[0].mxu0
    %v3195 = vadd.f32 0.0, %v3194
    %v3196 = vpop.f32.mrb[0].mxu0
    %3197 = vmatprep.mubr.bf16.mxu0 0
    %3198 = vmatmul.mubr.bf16.gmra.mrb[0].mxu0 %v3043
    %v3199 = vpop.f32.mrb[0].mxu0
    %v3200 = vadd.f32 0.0, %v3199
    %v3201 = vpop.f32.mrb[0].mxu0
    %v3202 = vpop.f32.mrb[0].mxu0
    %v3203 = vadd.f32 0.0, %v3202
    %v3204 = vpop.f32.mrb[0].mxu0
    %3205 = vdwg.mxu0
    %v3206 = vadd.f32 %v2845, %v3144
    %v3207 = vadd.f32 %v2848, %v3147
    %v3208 = vadd.f32 %v2853, %v3152
    %v3209 = vadd.f32 %v2856, %v3155
    %v3210 = vadd.f32 %v2861, %v3160
    %v3211 = vadd.f32 %v2864, %v3163
    %v3212 = vadd.f32 %v2869, %v3168
    %v3213 = vadd.f32 %v2872, %v3171
    %v3214 = vadd.f32 %v2877, %v3176
    %v3215 = vadd.f32 %v2880, %v3179
    %v3216 = vadd.f32 %v2885, %v3184
    %v3217 = vadd.f32 %v2888, %v3187
    %v3218 = vadd.f32 %v2893, %v3192
    %v3219 = vadd.f32 %v2896, %v3195
    %v3220 = vadd.f32 %v2901, %v3200
    %v3221 = vadd.f32 %v2904, %v3203
    %s3222 = scalar_lea.vmem %s5, 2
    %v3223 = vld [vmem:[%s3222] sm:$0x1]
    %v3225 = vlaneseq
    %v3226 = vshrl.u32 %v3225, 7
    %v3227 = vsub.s32 0, %v3226
    %v3228 = vrot.slane %v3223, %v3227
    %v3230 = vadd.f32 %v3206, %v3228
    %v3231 = vadd.f32 %v3207, %v3228
    %v3232 = vadd.f32 %v3208, %v3228
    %v3233 = vadd.f32 %v3209, %v3228
    %v3234 = vadd.f32 %v3210, %v3228
    %v3235 = vadd.f32 %v3211, %v3228
    %v3236 = vadd.f32 %v3212, %v3228
    %v3237 = vadd.f32 %v3213, %v3228
    %v3238 = vadd.f32 %v3214, %v3228
    %v3239 = vadd.f32 %v3215, %v3228
    %v3240 = vadd.f32 %v3216, %v3228
    %v3241 = vadd.f32 %v3217, %v3228
    %v3242 = vadd.f32 %v3218, %v3228
    %v3243 = vadd.f32 %v3219, %v3228
    %v3244 = vadd.f32 %v3220, %v3228
    %v3245 = vadd.f32 %v3221, %v3228
    %v3246 = vmax.f32 %v3230, 0.0
    %v3247 = vmax.f32 %v3231, 0.0
    %v3248 = vmax.f32 %v3232, 0.0
    %v3249 = vmax.f32 %v3233, 0.0
    %v3250 = vmax.f32 %v3234, 0.0
    %v3251 = vmax.f32 %v3235, 0.0
    %v3252 = vmax.f32 %v3236, 0.0
    %v3253 = vmax.f32 %v3237, 0.0
    %v3254 = vmax.f32 %v3238, 0.0
    %v3255 = vmax.f32 %v3239, 0.0
    %v3256 = vmax.f32 %v3240, 0.0
    %v3257 = vmax.f32 %v3241, 0.0
    %v3258 = vmax.f32 %v3242, 0.0
    %v3259 = vmax.f32 %v3243, 0.0
    %v3260 = vmax.f32 %v3244, 0.0
    %v3261 = vmax.f32 %v3245, 0.0
    %v3262 = vadd.f32 %v3246, %v2454
    %v3263 = vadd.f32 %v3247, %v2455
    %v3264 = vadd.f32 %v3248, %v2456
    %v3265 = vadd.f32 %v3249, %v2457
    %v3266 = vadd.f32 %v3250, %v2458
    %v3267 = vadd.f32 %v3251, %v2459
    %v3268 = vadd.f32 %v3252, %v2460
    %v3269 = vadd.f32 %v3253, %v2461
    %v3270 = vadd.f32 %v3254, %v2462
    %v3271 = vadd.f32 %v3255, %v2463
    %v3272 = vadd.f32 %v3256, %v2464
    %v3273 = vadd.f32 %v3257, %v2465
    %v3274 = vadd.f32 %v3258, %v2466
    %v3275 = vadd.f32 %v3259, %v2467
    %v3276 = vadd.f32 %v3260, %v2468
    %v3277 = vadd.f32 %v3261, %v2469
    %3278 = vadd.xlane.f32.xlu0 %v3262
    %v3279 = vpop.xlane.xlu0 %3278
    %3280 = vadd.xlane.f32.xlu0 %v3263
    %v3281 = vpop.xlane.xlu0 %3280
    %3282 = vadd.xlane.f32.xlu0 %v3264
    %v3283 = vpop.xlane.xlu0 %3282
    %3284 = vadd.xlane.f32.xlu0 %v3265
    %v3285 = vpop.xlane.xlu0 %3284
    %3286 = vadd.xlane.f32.xlu0 %v3266
    %v3287 = vpop.xlane.xlu0 %3286
    %3288 = vadd.xlane.f32.xlu0 %v3267
    %v3289 = vpop.xlane.xlu0 %3288
    %3290 = vadd.xlane.f32.xlu0 %v3268
    %v3291 = vpop.xlane.xlu0 %3290
    %3292 = vadd.xlane.f32.xlu0 %v3269
    %v3293 = vpop.xlane.xlu0 %3292
    %3294 = vadd.xlane.f32.xlu0 %v3270
    %v3295 = vpop.xlane.xlu0 %3294
    %3296 = vadd.xlane.f32.xlu0 %v3271
    %v3297 = vpop.xlane.xlu0 %3296
    %3298 = vadd.xlane.f32.xlu0 %v3272
    %v3299 = vpop.xlane.xlu0 %3298
    %3300 = vadd.xlane.f32.xlu0 %v3273
    %v3301 = vpop.xlane.xlu0 %3300
    %3302 = vadd.xlane.f32.xlu0 %v3274
    %v3303 = vpop.xlane.xlu0 %3302
    %3304 = vadd.xlane.f32.xlu0 %v3275
    %v3305 = vpop.xlane.xlu0 %3304
    %3306 = vadd.xlane.f32.xlu0 %v3276
    %v3307 = vpop.xlane.xlu0 %3306
    %3308 = vadd.xlane.f32.xlu0 %v3277
    %v3309 = vpop.xlane.xlu0 %3308
    %v3310 = vmul.f32 %v3279, 0.03125
    %v3311 = vmul.f32 %v3281, 0.03125
    %v3312 = vmul.f32 %v3283, 0.03125
    %v3313 = vmul.f32 %v3285, 0.03125
    %v3314 = vmul.f32 %v3287, 0.03125
    %v3315 = vmul.f32 %v3289, 0.03125
    %v3316 = vmul.f32 %v3291, 0.03125
    %v3317 = vmul.f32 %v3293, 0.03125
    %v3318 = vmul.f32 %v3295, 0.03125
    %v3319 = vmul.f32 %v3297, 0.03125
    %v3320 = vmul.f32 %v3299, 0.03125
    %v3321 = vmul.f32 %v3301, 0.03125
    %v3322 = vmul.f32 %v3303, 0.03125
    %v3323 = vmul.f32 %v3305, 0.03125
    %v3324 = vmul.f32 %v3307, 0.03125
    %v3325 = vmul.f32 %v3309, 0.03125
    %v3326 = vsub.f32 %v3262, %v3310
    %v3327 = vsub.f32 %v3263, %v3311
    %v3328 = vsub.f32 %v3264, %v3312
    %v3329 = vsub.f32 %v3265, %v3313
    %v3330 = vsub.f32 %v3266, %v3314
    %v3331 = vsub.f32 %v3267, %v3315
    %v3332 = vsub.f32 %v3268, %v3316
    %v3333 = vsub.f32 %v3269, %v3317
    %v3334 = vsub.f32 %v3270, %v3318
    %v3335 = vsub.f32 %v3271, %v3319
    %v3336 = vsub.f32 %v3272, %v3320
    %v3337 = vsub.f32 %v3273, %v3321
    %v3338 = vsub.f32 %v3274, %v3322
    %v3339 = vsub.f32 %v3275, %v3323
    %v3340 = vsub.f32 %v3276, %v3324
    %v3341 = vsub.f32 %v3277, %v3325
    %v3342 = vmul.f32 %v3326, %v329
    %v3343 = vmul.f32 %v3327, %v329
    %v3344 = vmul.f32 %v3328, %v329
    %v3345 = vmul.f32 %v3329, %v329
    %v3346 = vmul.f32 %v3330, %v329
    %v3347 = vmul.f32 %v3331, %v329
    %v3348 = vmul.f32 %v3332, %v329
    %v3349 = vmul.f32 %v3333, %v329
    %v3350 = vmul.f32 %v3334, %v329
    %v3351 = vmul.f32 %v3335, %v329
    %v3352 = vmul.f32 %v3336, %v329
    %v3353 = vmul.f32 %v3337, %v329
    %v3354 = vmul.f32 %v3338, %v329
    %v3355 = vmul.f32 %v3339, %v329
    %v3356 = vmul.f32 %v3340, %v329
    %v3357 = vmul.f32 %v3341, %v329
    %v3358 = vmul.f32 %v3342, %v3342
    %v3359 = vmul.f32 %v3343, %v3343
    %v3360 = vmul.f32 %v3344, %v3344
    %v3361 = vmul.f32 %v3345, %v3345
    %v3362 = vmul.f32 %v3346, %v3346
    %v3363 = vmul.f32 %v3347, %v3347
    %v3364 = vmul.f32 %v3348, %v3348
    %v3365 = vmul.f32 %v3349, %v3349
    %v3366 = vmul.f32 %v3350, %v3350
    %v3367 = vmul.f32 %v3351, %v3351
    %v3368 = vmul.f32 %v3352, %v3352
    %v3369 = vmul.f32 %v3353, %v3353
    %v3370 = vmul.f32 %v3354, %v3354
    %v3371 = vmul.f32 %v3355, %v3355
    %v3372 = vmul.f32 %v3356, %v3356
    %v3373 = vmul.f32 %v3357, %v3357
    %3374 = vadd.xlane.f32.xlu0 %v3358
    %v3375 = vpop.xlane.xlu0 %3374
    %3376 = vadd.xlane.f32.xlu0 %v3359
    %v3377 = vpop.xlane.xlu0 %3376
    %3378 = vadd.xlane.f32.xlu0 %v3360
    %v3379 = vpop.xlane.xlu0 %3378
    %3380 = vadd.xlane.f32.xlu0 %v3361
    %v3381 = vpop.xlane.xlu0 %3380
    %3382 = vadd.xlane.f32.xlu0 %v3362
    %v3383 = vpop.xlane.xlu0 %3382
    %3384 = vadd.xlane.f32.xlu0 %v3363
    %v3385 = vpop.xlane.xlu0 %3384
    %3386 = vadd.xlane.f32.xlu0 %v3364
    %v3387 = vpop.xlane.xlu0 %3386
    %3388 = vadd.xlane.f32.xlu0 %v3365
    %v3389 = vpop.xlane.xlu0 %3388
    %3390 = vadd.xlane.f32.xlu0 %v3366
    %v3391 = vpop.xlane.xlu0 %3390
    %3392 = vadd.xlane.f32.xlu0 %v3367
    %v3393 = vpop.xlane.xlu0 %3392
    %3394 = vadd.xlane.f32.xlu0 %v3368
    %v3395 = vpop.xlane.xlu0 %3394
    %3396 = vadd.xlane.f32.xlu0 %v3369
    %v3397 = vpop.xlane.xlu0 %3396
    %3398 = vadd.xlane.f32.xlu0 %v3370
    %v3399 = vpop.xlane.xlu0 %3398
    %3400 = vadd.xlane.f32.xlu0 %v3371
    %v3401 = vpop.xlane.xlu0 %3400
    %3402 = vadd.xlane.f32.xlu0 %v3372
    %v3403 = vpop.xlane.xlu0 %3402
    %3404 = vadd.xlane.f32.xlu0 %v3373
    %v3405 = vpop.xlane.xlu0 %3404
    %v3406 = vmul.f32 %v3375, 0.03125
    %v3407 = vmul.f32 %v3377, 0.03125
    %v3408 = vmul.f32 %v3379, 0.03125
    %v3409 = vmul.f32 %v3381, 0.03125
    %v3410 = vmul.f32 %v3383, 0.03125
    %v3411 = vmul.f32 %v3385, 0.03125
    %v3412 = vmul.f32 %v3387, 0.03125
    %v3413 = vmul.f32 %v3389, 0.03125
    %v3414 = vmul.f32 %v3391, 0.03125
    %v3415 = vmul.f32 %v3393, 0.03125
    %v3416 = vmul.f32 %v3395, 0.03125
    %v3417 = vmul.f32 %v3397, 0.03125
    %v3418 = vmul.f32 %v3399, 0.03125
    %v3419 = vmul.f32 %v3401, 0.03125
    %v3420 = vmul.f32 %v3403, 0.03125
    %v3421 = vmul.f32 %v3405, 0.03125
    %v3422 = vadd.f32 %v3406, 1e-05
    %v3423 = vadd.f32 %v3407, 1e-05
    %v3424 = vadd.f32 %v3408, 1e-05
    %v3425 = vadd.f32 %v3409, 1e-05
    %v3426 = vadd.f32 %v3410, 1e-05
    %v3427 = vadd.f32 %v3411, 1e-05
    %v3428 = vadd.f32 %v3412, 1e-05
    %v3429 = vadd.f32 %v3413, 1e-05
    %v3430 = vadd.f32 %v3414, 1e-05
    %v3431 = vadd.f32 %v3415, 1e-05
    %v3432 = vadd.f32 %v3416, 1e-05
    %v3433 = vadd.f32 %v3417, 1e-05
    %v3434 = vadd.f32 %v3418, 1e-05
    %v3435 = vadd.f32 %v3419, 1e-05
    %v3436 = vadd.f32 %v3420, 1e-05
    %v3437 = vadd.f32 %v3421, 1e-05
    %v3438 = vrsqrt.pop %v3422
    %v3439 = vrsqrt.pop %v3423
    %v3440 = vrsqrt.pop %v3424
    %v3441 = vrsqrt.pop %v3425
    %v3442 = vrsqrt.pop %v3426
    %v3443 = vrsqrt.pop %v3427
    %v3444 = vrsqrt.pop %v3428
    %v3445 = vrsqrt.pop %v3429
    %v3446 = vrsqrt.pop %v3430
    %v3447 = vrsqrt.pop %v3431
    %v3448 = vrsqrt.pop %v3432
    %v3449 = vrsqrt.pop %v3433
    %v3450 = vrsqrt.pop %v3434
    %v3451 = vrsqrt.pop %v3435
    %v3452 = vrsqrt.pop %v3436
    %v3453 = vrsqrt.pop %v3437
    %v3454 = vmul.f32 %v3342, %v3438
    %v3455 = vmul.f32 %v3343, %v3439
    %v3456 = vmul.f32 %v3344, %v3440
    %v3457 = vmul.f32 %v3345, %v3441
    %v3458 = vmul.f32 %v3346, %v3442
    %v3459 = vmul.f32 %v3347, %v3443
    %v3460 = vmul.f32 %v3348, %v3444
    %v3461 = vmul.f32 %v3349, %v3445
    %v3462 = vmul.f32 %v3350, %v3446
    %v3463 = vmul.f32 %v3351, %v3447
    %v3464 = vmul.f32 %v3352, %v3448
    %v3465 = vmul.f32 %v3353, %v3449
    %v3466 = vmul.f32 %v3354, %v3450
    %v3467 = vmul.f32 %v3355, %v3451
    %v3468 = vmul.f32 %v3356, %v3452
    %v3469 = vmul.f32 %v3357, %v3453
    %s3470 = scalar_lea.vmem %s6, 2
    %v3471 = vld [vmem:[%s3470] sm:$0x1]
    %v3473 = vlaneseq
    %v3474 = vshrl.u32 %v3473, 7
    %v3475 = vsub.s32 0, %v3474
    %v3476 = vrot.slane %v3471, %v3475
    %v3478 = vmul.f32 %v3454, %v3476
    %v3479 = vmul.f32 %v3455, %v3476
    %v3480 = vmul.f32 %v3456, %v3476
    %v3481 = vmul.f32 %v3457, %v3476
    %v3482 = vmul.f32 %v3458, %v3476
    %v3483 = vmul.f32 %v3459, %v3476
    %v3484 = vmul.f32 %v3460, %v3476
    %v3485 = vmul.f32 %v3461, %v3476
    %v3486 = vmul.f32 %v3462, %v3476
    %v3487 = vmul.f32 %v3463, %v3476
    %v3488 = vmul.f32 %v3464, %v3476
    %v3489 = vmul.f32 %v3465, %v3476
    %v3490 = vmul.f32 %v3466, %v3476
    %v3491 = vmul.f32 %v3467, %v3476
    %v3492 = vmul.f32 %v3468, %v3476
    %v3493 = vmul.f32 %v3469, %v3476
    %s3494 = scalar_lea.vmem %s7, 2
    %v3495 = vld [vmem:[%s3494] sm:$0x1]
    %v3497 = vlaneseq
    %v3498 = vshrl.u32 %v3497, 7
    %v3499 = vsub.s32 0, %v3498
    %v3500 = vrot.slane %v3495, %v3499
    %v3502 = vadd.f32 %v3478, %v3500
    %v3503 = vadd.f32 %v3479, %v3500
    %v3504 = vadd.f32 %v3480, %v3500
    %v3505 = vadd.f32 %v3481, %v3500
    %v3506 = vadd.f32 %v3482, %v3500
    %v3507 = vadd.f32 %v3483, %v3500
    %v3508 = vadd.f32 %v3484, %v3500
    %v3509 = vadd.f32 %v3485, %v3500
    %v3510 = vadd.f32 %v3486, %v3500
    %v3511 = vadd.f32 %v3487, %v3500
    %v3512 = vadd.f32 %v3488, %v3500
    %v3513 = vadd.f32 %v3489, %v3500
    %v3514 = vadd.f32 %v3490, %v3500
    %v3515 = vadd.f32 %v3491, %v3500
    %v3516 = vadd.f32 %v3492, %v3500
    %v3517 = vadd.f32 %v3493, %v3500
    %v3518 = vpack.c.bf16 %v3503, %v3502
    %v3519 = vpack.c.bf16 %v3505, %v3504
    %v3520 = vpack.c.bf16 %v3507, %v3506
    %v3521 = vpack.c.bf16 %v3509, %v3508
    %v3522 = vpack.c.bf16 %v3511, %v3510
    %v3523 = vpack.c.bf16 %v3513, %v3512
    %v3524 = vpack.c.bf16 %v3515, %v3514
    %v3525 = vpack.c.bf16 %v3517, %v3516
    %v3526 = vld [vmem:[#allocation6] sm:$0xf]
    %v3527 = vld [vmem:[#allocation6 + $0x4] sm:$0xf]
    %v3528 = vld [vmem:[#allocation6 + $0x8] sm:$0xf]
    %v3529 = vld [vmem:[#allocation6 + $0xc] sm:$0xf]
    %v3530 = vld [vmem:[#allocation6 + $0x10] sm:$0xf]
    %v3531 = vld [vmem:[#allocation6 + $0x14] sm:$0xf]
    %v3532 = vld [vmem:[#allocation6 + $0x18] sm:$0xf]
    %v3533 = vld [vmem:[#allocation6 + $0x1c] sm:$0xf]
    %v3534 = vld [vmem:[#allocation6 + $0x20] sm:$0xf]
    %v3535 = vld [vmem:[#allocation6 + $0x24] sm:$0xf]
    %v3536 = vld [vmem:[#allocation6 + $0x28] sm:$0xf]
    %v3537 = vld [vmem:[#allocation6 + $0x2c] sm:$0xf]
    %v3538 = vld [vmem:[#allocation6 + $0x30] sm:$0xf]
    %v3539 = vld [vmem:[#allocation6 + $0x34] sm:$0xf]
    %v3540 = vld [vmem:[#allocation6 + $0x38] sm:$0xf]
    %v3541 = vld [vmem:[#allocation6 + $0x3c] sm:$0xf]
    %v3542 = vld [vmem:[%s9] sm:$0x1]
    %v3544 = vlaneseq
    %v3545 = vshrl.u32 %v3544, 7
    %v3546 = vsub.s32 0, %v3545
    %v3547 = vrot.slane %v3542, %v3546
    %v3565 = vunpack.c.l.b16 %v3526
    %v3566 = vunpack.c.l.b16 %v3527
    %v3567 = vunpack.c.l.b16 %v3528
    %v3568 = vunpack.c.l.b16 %v3529
    %v3569 = vunpack.c.l.b16 %v3530
    %v3570 = vunpack.c.l.b16 %v3531
    %v3571 = vunpack.c.l.b16 %v3532
    %v3572 = vunpack.c.l.b16 %v3533
    %v3573 = vunpack.c.l.b16 %v3534
    %v3574 = vunpack.c.l.b16 %v3535
    %v3575 = vunpack.c.l.b16 %v3536
    %v3576 = vunpack.c.l.b16 %v3537
    %v3577 = vunpack.c.l.b16 %v3538
    %v3578 = vunpack.c.l.b16 %v3539
    %v3579 = vunpack.c.l.b16 %v3540
    %v3580 = vunpack.c.l.b16 %v3541
    %v3581 = vpack.c.b16 %v3566, %v3565
    %v3582 = vpack.c.b16 %v3568, %v3567
    %v3583 = vpack.c.b16 %v3570, %v3569
    %v3584 = vpack.c.b16 %v3572, %v3571
    %v3585 = vpack.c.b16 %v3574, %v3573
    %v3586 = vpack.c.b16 %v3576, %v3575
    %v3587 = vpack.c.b16 %v3578, %v3577
    %v3588 = vpack.c.b16 %v3580, %v3579
    %3597 = vmatprep.subr.bf16.mxu0 0
    %3598 = vmatpush1.bf16.msra.mxu0 %v3581
    %3599 = vmatprep.subr.bf16.mxu0 0
    %3600 = vmatpush1.bf16.msra.mxu0 %v3582
    %3601 = vmatprep.subr.bf16.mxu0 0
    %3602 = vmatpush1.bf16.msra.mxu0 %v3583
    %3603 = vmatprep.subr.bf16.mxu0 0
    %3604 = vmatpush1.bf16.msra.mxu0 %v3584
    %3605 = vmatprep.subr.bf16.mxu0 0
    %3606 = vmatpush1.bf16.msra.mxu0 %v3585
    %3607 = vmatprep.subr.bf16.mxu0 0
    %3608 = vmatpush1.bf16.msra.mxu0 %v3586
    %3609 = vmatprep.subr.bf16.mxu0 0
    %3610 = vmatpush1.bf16.msra.mxu0 %v3587
    %3611 = vmatprep.subr.bf16.mxu0 0
    %3612 = vmatpush1.bf16.msra.mxu0 %v3588
    %3613 = vmatprep.subr.bf16.mxu0 0
    %3614 = vmatpush1.bf16.msra.mxu0 0
    %3615 = vmatprep.subr.bf16.mxu0 0
    %3616 = vmatpush1.bf16.msra.mxu0 0
    %3617 = vmatprep.subr.bf16.mxu0 0
    %3618 = vmatpush1.bf16.msra.mxu0 0
    %3619 = vmatprep.subr.bf16.mxu0 0
    %3620 = vmatpush1.bf16.msra.mxu0 0
    %3621 = vmatprep.subr.bf16.mxu0 0
    %3622 = vmatpush1.bf16.msra.mxu0 0
    %3623 = vmatprep.subr.bf16.mxu0 0
    %3624 = vmatpush1.bf16.msra.mxu0 0
    %3625 = vmatprep.subr.bf16.mxu0 0
    %3626 = vmatpush1.bf16.msra.mxu0 0
    %3627 = vmatprep.subr.bf16.mxu0 0
    %3628 = vmatpush1.bf16.msra.mxu0 0
    %3629 = vmatprep.mubr.bf16.mxu0 0
    %3630 = vmatmul.mubr.bf16.gmra.mrb[0].mxu0 %v3518
    %v3631 = vpop.f32.mrb[0].mxu0
    %v3632 = vadd.f32 %v3547, %v3631
    %v3633 = vpop.f32.mrb[0].mxu0
    %v3634 = vpop.f32.mrb[0].mxu0
    %v3635 = vadd.f32 %v3547, %v3634
    %v3636 = vpop.f32.mrb[0].mxu0
    %3637 = vmatprep.mubr.bf16.mxu0 0
    %3638 = vmatmul.mubr.bf16.gmra.mrb[0].mxu0 %v3519
    %v3639 = vpop.f32.mrb[0].mxu0
    %v3640 = vadd.f32 %v3547, %v3639
    %v3641 = vpop.f32.mrb[0].mxu0
    %v3642 = vpop.f32.mrb[0].mxu0
    %v3643 = vadd.f32 %v3547, %v3642
    %v3644 = vpop.f32.mrb[0].mxu0
    %3645 = vmatprep.mubr.bf16.mxu0 0
    %3646 = vmatmul.mubr.bf16.gmra.mrb[0].mxu0 %v3520
    %v3647 = vpop.f32.mrb[0].mxu0
    %v3648 = vadd.f32 %v3547, %v3647
    %v3649 = vpop.f32.mrb[0].mxu0
    %v3650 = vpop.f32.mrb[0].mxu0
    %v3651 = vadd.f32 %v3547, %v3650
    %v3652 = vpop.f32.mrb[0].mxu0
    %3653 = vmatprep.mubr.bf16.mxu0 0
    %3654 = vmatmul.mubr.bf16.gmra.mrb[0].mxu0 %v3521
    %v3655 = vpop.f32.mrb[0].mxu0
    %v3656 = vadd.f32 %v3547, %v3655
    %v3657 = vpop.f32.mrb[0].mxu0
    %v3658 = vpop.f32.mrb[0].mxu0
    %v3659 = vadd.f32 %v3547, %v3658
    %v3660 = vpop.f32.mrb[0].mxu0
    %3661 = vmatprep.mubr.bf16.mxu0 0
    %3662 = vmatmul.mubr.bf16.gmra.mrb[0].mxu0 %v3522
    %v3663 = vpop.f32.mrb[0].mxu0
    %v3664 = vadd.f32 %v3547, %v3663
    %v3665 = vpop.f32.mrb[0].mxu0
    %v3666 = vpop.f32.mrb[0].mxu0
    %v3667 = vadd.f32 %v3547, %v3666
    %v3668 = vpop.f32.mrb[0].mxu0
    %3669 = vmatprep.mubr.bf16.mxu0 0
    %3670 = vmatmul.mubr.bf16.gmra.mrb[0].mxu0 %v3523
    %v3671 = vpop.f32.mrb[0].mxu0
    %v3672 = vadd.f32 %v3547, %v3671
    %v3673 = vpop.f32.mrb[0].mxu0
    %v3674 = vpop.f32.mrb[0].mxu0
    %v3675 = vadd.f32 %v3547, %v3674
    %v3676 = vpop.f32.mrb[0].mxu0
    %3677 = vmatprep.mubr.bf16.mxu0 0
    %3678 = vmatmul.mubr.bf16.gmra.mrb[0].mxu0 %v3524
    %v3679 = vpop.f32.mrb[0].mxu0
    %v3680 = vadd.f32 %v3547, %v3679
    %v3681 = vpop.f32.mrb[0].mxu0
    %v3682 = vpop.f32.mrb[0].mxu0
    %v3683 = vadd.f32 %v3547, %v3682
    %v3684 = vpop.f32.mrb[0].mxu0
    %3685 = vmatprep.mubr.bf16.mxu0 0
    %3686 = vmatmul.mubr.bf16.gmra.mrb[0].mxu0 %v3525
    %v3687 = vpop.f32.mrb[0].mxu0
    %v3688 = vadd.f32 %v3547, %v3687
    %v3689 = vpop.f32.mrb[0].mxu0
    %v3690 = vpop.f32.mrb[0].mxu0
    %v3691 = vadd.f32 %v3547, %v3690
    %v3692 = vpop.f32.mrb[0].mxu0
    %3693 = vdwg.mxu0
    %3694 = vst [vmem:[%s10] sm:$0xff] %v3632
    %3695 = vst [vmem:[%s10 + $0x8] sm:$0xff] %v3635
    %3696 = vst [vmem:[%s10 + $0x10] sm:$0xff] %v3640
    %3697 = vst [vmem:[%s10 + $0x18] sm:$0xff] %v3643
    %3698 = vst [vmem:[%s10 + $0x20] sm:$0xff] %v3648
    %3699 = vst [vmem:[%s10 + $0x28] sm:$0xff] %v3651
    %3700 = vst [vmem:[%s10 + $0x30] sm:$0xff] %v3656
    %3701 = vst [vmem:[%s10 + $0x38] sm:$0xff] %v3659
    %3702 = vst [vmem:[%s10 + $0x40] sm:$0xff] %v3664
    %3703 = vst [vmem:[%s10 + $0x48] sm:$0xff] %v3667
    %3704 = vst [vmem:[%s10 + $0x50] sm:$0xff] %v3672
    %3705 = vst [vmem:[%s10 + $0x58] sm:$0xff] %v3675
    %3706 = vst [vmem:[%s10 + $0x60] sm:$0xff] %v3680
    %3707 = vst [vmem:[%s10 + $0x68] sm:$0xff] %v3683
    %3708 = vst [vmem:[%s10 + $0x70] sm:$0xff] %v3688
    %3709 = vst [vmem:[%s10 + $0x78] sm:$0xff] %v3691
    // Predicated region
    $region54: #{spectral_gnn_forward.1} parent=1 // pred_check
      _
    $region55: #{spectral_gnn_forward.1} parent=1 // pred_check_branch
      %3711 = sbr.rel (0) target = $region57
    $region56: #{spectral_gnn_forward.1} parent=1 // pred_region
      _
    $region57: #{spectral_gnn_forward.1} parent=1 // pred_fallthru
      _
    // Predicated region
    $region58: #{spectral_gnn_forward.1} parent=1 // pred_check
      _
    $region59: #{spectral_gnn_forward.1} parent=1 // pred_check_branch
      %3713 = sbr.rel (0) target = $region61
    $region60: #{spectral_gnn_forward.1} parent=1 // pred_region
      _
    $region61: #{spectral_gnn_forward.1} parent=1 // pred_fallthru
      _
    %3714 = vsyncpa [#allocation3], 1
    %3715 = vsyncpa [#allocation5], 1

</llo_original>
